<compile_context>
chip_gen: v6e
topology: v6e:2x2x1
jax: 0.10.0
libtpu: 0.0.40
codegen_flags: <defaults>
</compile_context>

<pallas_src>
import functools

import jax
import jax.numpy as jnp
import numpy as np
from jax.experimental import pallas as pl
from jax.experimental.pallas import tpu as pltpu


# ----------------------------- kernel ---------------------------------------


def _layer_norm(x, g, b, eps=1e-5):
    mu = jnp.mean(x, axis=-1, keepdims=True)
    var = jnp.mean((x - mu) ** 2, axis=-1, keepdims=True)
    return (x - mu) * jax.lax.rsqrt(var + eps) * g + b


def decoder_kernel(
    x_ref, bias_ref, npm_ref,
    wq_ref, bq_ref, wk_ref, bk_ref, wv_ref, bv_ref,
    wo_ref, bo_ref, ln1g_ref, ln1b_ref,
    c1w_ref, c1b_ref, c2w_ref, c2b_ref, ln2g_ref, ln2b_ref,
    o_ref,
    *, n_head, d_k, d_v, k1, p1,
):
    l = pl.program_id(0)

    # Initialize the carried activation (output block is resident across the layer axis).
    @pl.when(l == 0)
    def _():
        o_ref[...] = x_ref[...]

    x3 = o_ref[...]                     # (B, S, D) activation carried in VMEM
    B, S, D = x3.shape
    BS = B * S
    x2 = x3.reshape(BS, D)

    bias = jnp.broadcast_to(bias_ref[...], (B, S, S))   # additive -1e9 on PAD keys, hoisted
    npm = npm_ref[...]                                   # (B*S, 1) non-pad multiplier

    # per-layer weights (leading layer axis already selected by the BlockSpec)
    wq, bq = wq_ref[0], bq_ref[0]       # (H, D, d_k), (H, 1, d_k)  (temperature pre-folded)
    wk, bk = wk_ref[0], bk_ref[0]
    wv, bv = wv_ref[0], bv_ref[0]
    wo, bo = wo_ref[0], bo_ref[0]       # (H, d_v, D), (1, D)

    # ---------------- multi-head self-attention sublayer ----------------
    attn_out = jnp.zeros((BS, D), jnp.float32)
    for h in range(n_head):  # static unroll; all per-head slicing is on leading axes
        qh = (jnp.dot(x2, wq[h], preferred_element_type=jnp.float32) + bq[h]).reshape(B, S, d_k)
        kh = (jnp.dot(x2, wk[h], preferred_element_type=jnp.float32) + bk[h]).reshape(B, S, d_k)
        vh = (jnp.dot(x2, wv[h], preferred_element_type=jnp.float32) + bv[h]).reshape(B, S, d_v)
        s = jnp.einsum("bqd,bkd->bqk", qh, kh,
                       preferred_element_type=jnp.float32) + bias
        m = jnp.max(s, axis=-1, keepdims=True)
        e = jnp.exp(s - m)
        p = e / jnp.sum(e, axis=-1, keepdims=True)        # softmax over keys
        oh = jnp.einsum("bqk,bkd->bqd", p, vh, preferred_element_type=jnp.float32)
        # accumulate directly into the output projection (no lane-axis concat)
        attn_out = attn_out + jnp.dot(oh.reshape(BS, d_v), wo[h],
                                      preferred_element_type=jnp.float32)
    attn_out = attn_out + bo
    # TODO(synk): dropout omitted (eval-mode identity)
    h1 = _layer_norm(attn_out + x2, ln1g_ref[0], ln1b_ref[0]) * npm   # (B*S, D)

    # ------------- position-wise conv feed-forward sublayer -------------
    # Conv1d(D->F, kernel=k1, padding=p1) as im2col -> single matmul; then ReLU; 1x1 conv.
    out3 = h1.reshape(B, S, D)
    zpad = jnp.zeros((B, p1, D), jnp.float32)
    padded = jnp.concatenate([zpad, out3, zpad], axis=1)              # (B, S+2*p1, D)
    cols = jnp.concatenate([padded[:, kk:kk + S, :] for kk in range(k1)], axis=-1)
    f1 = jnp.maximum(
        jnp.dot(cols.reshape(BS, k1 * D), c1w_ref[0],
                preferred_element_type=jnp.float32) + c1b_ref[0], 0.0)
    f2 = jnp.dot(f1, c2w_ref[0], preferred_element_type=jnp.float32) + c2b_ref[0]
    # TODO(synk): dropout omitted (eval-mode identity)
    out2 = _layer_norm(f2 + h1, ln2g_ref[0], ln2b_ref[0]) * npm       # (B*S, D)

    o_ref[...] = out2.reshape(B, S, D)


# -------------------------- decoder wrapper ----------------------------------


def stack_params(layers, *, n_head, d_k, d_v, D, k1):
    """Stack per-layer params with a leading n_layers axis; split heads onto leading axes;
    fold 1/sqrt(d_k) into the Q projection; flatten conv taps for im2col."""
    L = len(layers)
    st = lambda name: jnp.stack([lp[name] for lp in layers], axis=0)
    scale = 1.0 / float(d_k) ** 0.5
    wq = st("w_q").reshape(L, D, n_head, d_k).transpose(0, 2, 1, 3) * scale   # (L,H,D,dk)
    bq = st("b_q").reshape(L, 1, n_head, d_k).transpose(0, 2, 1, 3) * scale   # (L,H,1,dk)
    wk = st("w_k").reshape(L, D, n_head, d_k).transpose(0, 2, 1, 3)
    bk = st("b_k").reshape(L, 1, n_head, d_k).transpose(0, 2, 1, 3)
    wv = st("w_v").reshape(L, D, n_head, d_v).transpose(0, 2, 1, 3)
    bv = st("b_v").reshape(L, 1, n_head, d_v).transpose(0, 2, 1, 3)
    wo = st("w_o").reshape(L, n_head, d_v, D)                                  # (L,H,dv,D)
    c1w = st("c1_w")
    c1w = c1w.reshape(L, c1w.shape[1] * c1w.shape[2], c1w.shape[3])            # (L,k1*D,F)
    return dict(wq=wq, bq=bq, wk=wk, bk=bk, wv=wv, bv=bv, wo=wo, bo=st("b_o"),
                ln1g=st("ln1_g"), ln1b=st("ln1_b"),
                c1w=c1w, c1b=st("c1_b"), c2w=st("c2_w"), c2b=st("c2_b"),
                ln2g=st("ln2_g"), ln2b=st("ln2_b"))


def decoder_forward(enc_seq, enc_pos, params, cfg):
    D = cfg["decoder_dim"]
    H = cfg["n_head"]
    d_k = d_v = D // H
    k1, k2 = cfg["fft_conv1d_kernel"]
    p1, p2 = cfg["fft_conv1d_padding"]
    assert k2 == 1 and p2 == 0 and 2 * p1 == k1 - 1
    PAD = cfg["PAD"]
    B, S, _ = enc_seq.shape
    L = len(params["layers"])

    # Compact masks: additive key-pad bias (B,1,S) and flat non-pad multiplier (B*S,1).
    keypad = (enc_pos == PAD).astype(jnp.float32)
    attn_bias = keypad[:, None, :] * jnp.float32(-1e9)
    npm = (enc_pos != PAD).astype(jnp.float32).reshape(B * S, 1)

    x = enc_seq + params["pos_emb"][enc_pos]          # embedding gather (glue)
    sp = stack_params(params["layers"], n_head=H, d_k=d_k, d_v=d_v, D=D, k1=k1)

    kern = functools.partial(decoder_kernel, n_head=H, d_k=d_k, d_v=d_v, k1=k1, p1=p1)

    def wspec(arr):  # per-layer weight block, indexed by the layer grid coordinate
        bs = (1,) + arr.shape[1:]
        if arr.ndim == 4:
            return pl.BlockSpec(bs, lambda l: (l, 0, 0, 0))
        return pl.BlockSpec(bs, lambda l: (l, 0, 0))

    in_specs = [
        pl.BlockSpec((B, S, D), lambda l: (0, 0, 0)),    # x (DMA'd once)
        pl.BlockSpec((B, 1, S), lambda l: (0, 0, 0)),    # additive key-pad bias
        pl.BlockSpec((B * S, 1), lambda l: (0, 0)),      # non-pad mask
        wspec(sp["wq"]), wspec(sp["bq"]),
        wspec(sp["wk"]), wspec(sp["bk"]),
        wspec(sp["wv"]), wspec(sp["bv"]),
        wspec(sp["wo"]), wspec(sp["bo"]),
        wspec(sp["ln1g"]), wspec(sp["ln1b"]),
        wspec(sp["c1w"]), wspec(sp["c1b"]),
        wspec(sp["c2w"]), wspec(sp["c2b"]),
        wspec(sp["ln2g"]), wspec(sp["ln2b"]),
    ]
    return pl.pallas_call(
        kern,
        out_shape=jax.ShapeDtypeStruct((B, S, D), jnp.float32),
        grid=(L,),
        in_specs=in_specs,
        # Constant output block index => activation stays VMEM-resident across layers and
        # is written back to HBM once at the end of the grid.
        out_specs=pl.BlockSpec((B, S, D), lambda l: (0, 0, 0)),
        compiler_params=pltpu.CompilerParams(dimension_semantics=("arbitrary",)),
    )(x, attn_bias, npm,
      sp["wq"], sp["bq"], sp["wk"], sp["bk"], sp["wv"], sp["bv"],
      sp["wo"], sp["bo"], sp["ln1g"], sp["ln1b"],
      sp["c1w"], sp["c1b"], sp["c2w"], sp["c2b"], sp["ln2g"], sp["ln2b"])


# ------------------------- pure-JAX reference ---------------------------------


def build_masks(enc_pos, PAD):
    B, S = enc_pos.shape
    key_pad = (enc_pos == PAD)                                        # (B, S)
    slf_attn_mask = jnp.broadcast_to(key_pad[:, None, :], (B, S, S)).astype(jnp.float32)
    non_pad = (enc_pos != PAD).astype(jnp.float32)[..., None]         # (B, S, 1)
    return slf_attn_mask, non_pad


def _ref_ln(x, g, b, eps=1e-5):
    mu = jnp.mean(x, axis=-1, keepdims=True)
    var = jnp.mean((x - mu) ** 2, axis=-1, keepdims=True)
    return (x - mu) / jnp.sqrt(var + eps) * g + b


def ref_fft_block(x, mask_f, npm, p, n_head, d_k, d_v, k1, p1):
    B, S, D = x.shape
    q = x @ p["w_q"] + p["b_q"][0]
    k = x @ p["w_k"] + p["b_k"][0]
    v = x @ p["w_v"] + p["b_v"][0]
    qh = q.reshape(B, S, n_head, d_k).transpose(0, 2, 1, 3)
    kh = k.reshape(B, S, n_head, d_k).transpose(0, 2, 1, 3)
    vh = v.reshape(B, S, n_head, d_v).transpose(0, 2, 1, 3)
    s = jnp.einsum("bhqd,bhkd->bhqk", qh, kh) / (float(d_k) ** 0.5)
    s = jnp.where(mask_f[:, None, :, :] > 0.5, -jnp.inf, s)
    a = jax.nn.softmax(s, axis=-1)
    o = jnp.einsum("bhqk,bhkd->bhqd", a, vh).transpose(0, 2, 1, 3).reshape(B, S, n_head * d_v)
    o = o @ p["w_o"] + p["b_o"][0]
    o = _ref_ln(o + x, p["ln1_g"][0], p["ln1_b"][0]) * npm
    resid = o
    padded = jnp.pad(o, ((0, 0), (p1, p1), (0, 0)))
    acc = sum(padded[:, kk:kk + S, :] @ p["c1_w"][kk] for kk in range(k1)) + p["c1_b"][0]
    h1 = jnp.maximum(acc, 0.0)
    h2 = h1 @ p["c2_w"] + p["c2_b"][0]
    return _ref_ln(h2 + resid, p["ln2_g"][0], p["ln2_b"][0]) * npm


def decoder_reference(enc_seq, enc_pos, params, cfg):
    D = cfg["decoder_dim"]
    H = cfg["n_head"]
    d_k = d_v = D // H
    k1, _ = cfg["fft_conv1d_kernel"]
    p1, _ = cfg["fft_conv1d_padding"]
    slf_attn_mask, non_pad = build_masks(enc_pos, cfg["PAD"])
    dec = enc_seq + params["pos_emb"][enc_pos]
    for lp in params["layers"]:
        dec = ref_fft_block(dec, slf_attn_mask, non_pad, lp, H, d_k, d_v, k1, p1)
    return dec


# --------------------------- parameter init -----------------------------------


def init_params(key, cfg):
    D = cfg["decoder_dim"]
    F = cfg["decoder_conv1d_filter_size"]
    H = cfg["n_head"]
    d_k = d_v = D // H
    K1, K2 = cfg["fft_conv1d_kernel"]
    n_pos = cfg["max_seq_len"] + 1

    keys = jax.random.split(key, 1 + cfg["n_layers"])
    pos_emb = jax.random.normal(keys[0], (n_pos, D), jnp.float32) * 0.5
    pos_emb = pos_emb.at[cfg["PAD"]].set(0.0)  # nn.Embedding padding_idx row = 0

    def nrm(kk, shape, scale=0.1):
        return jax.random.normal(kk, shape, jnp.float32) * scale

    layers = []
    for li in range(cfg["n_layers"]):
        ks = jax.random.split(keys[1 + li], 9)
        layers.append(dict(
            w_q=nrm(ks[0], (D, H * d_k)), b_q=jnp.zeros((1, H * d_k), jnp.float32),
            w_k=nrm(ks[1], (D, H * d_k)), b_k=jnp.zeros((1, H * d_k), jnp.float32),
            w_v=nrm(ks[2], (D, H * d_v)), b_v=jnp.zeros((1, H * d_v), jnp.float32),
            w_o=nrm(ks[3], (H * d_v, D)), b_o=nrm(ks[4], (1, D), 0.02),
            ln1_g=jnp.ones((1, D), jnp.float32), ln1_b=jnp.zeros((1, D), jnp.float32),
            c1_w=nrm(ks[5], (K1, D, F)),  c1_b=nrm(ks[6], (1, F), 0.02),
            c2_w=nrm(ks[7], (F, D)),      c2_b=nrm(ks[8], (1, D), 0.02),
            ln2_g=jnp.ones((1, D), jnp.float32), ln2_b=jnp.zeros((1, D), jnp.float32),
        ))
    return dict(pos_emb=pos_emb, layers=layers)


# -------------------------------- main -----------------------------------------


if __name__ == "__main__":
    cfg = dict(
        max_seq_len=16,
        n_layers=2,
        decoder_dim=32,
        PAD=0,
        decoder_conv1d_filter_size=64,
        fft_conv1d_kernel=(9, 1),
        fft_conv1d_padding=(4, 0),
        n_head=2,
        dropout=0.1,   # identity at inference
    )
    B, S = 2, 8

    key = jax.random.PRNGKey(0)
    k_params, k_seq = jax.random.split(key)
    params = init_params(k_params, cfg)

    enc_seq = jax.random.normal(k_seq, (B, S, cfg["decoder_dim"]), jnp.float32)
    enc_pos = jnp.array([[1, 2, 3, 4, 5, 6, 0, 0],
                         [1, 2, 3, 4, 5, 6, 7, 8]], dtype=jnp.int32)

    out = decoder_forward(enc_seq, enc_pos, params, cfg)
    out = jax.block_until_ready(out)

    ref = decoder_reference(enc_seq, enc_pos, params, cfg)
    assert out.shape == (B, S, cfg["decoder_dim"])
    np.testing.assert_allclose(np.asarray(out), np.asarray(ref), atol=2e-4, rtol=2e-4)

    print("KERNEL_OK")
</pallas_src>

<mosaic_0001>
module attributes {stable_mosaic.version = 11 : i64} {
  func.func @decoder_kernel(%arg0: i32, %arg1: memref<2x8x32xf32, #tpu.memory_space<vmem>>, %arg2: memref<2x1x8xf32, #tpu.memory_space<vmem>>, %arg3: memref<16x1xf32, #tpu.memory_space<vmem>>, %arg4: memref<1x2x32x16xf32, #tpu.memory_space<vmem>>, %arg5: memref<1x2x1x16xf32, #tpu.memory_space<vmem>>, %arg6: memref<1x2x32x16xf32, #tpu.memory_space<vmem>>, %arg7: memref<1x2x1x16xf32, #tpu.memory_space<vmem>>, %arg8: memref<1x2x32x16xf32, #tpu.memory_space<vmem>>, %arg9: memref<1x2x1x16xf32, #tpu.memory_space<vmem>>, %arg10: memref<1x2x16x32xf32, #tpu.memory_space<vmem>>, %arg11: memref<1x1x32xf32, #tpu.memory_space<vmem>>, %arg12: memref<1x1x32xf32, #tpu.memory_space<vmem>>, %arg13: memref<1x1x32xf32, #tpu.memory_space<vmem>>, %arg14: memref<1x288x64xf32, #tpu.memory_space<vmem>>, %arg15: memref<1x1x64xf32, #tpu.memory_space<vmem>>, %arg16: memref<1x64x32xf32, #tpu.memory_space<vmem>>, %arg17: memref<1x1x32xf32, #tpu.memory_space<vmem>>, %arg18: memref<1x1x32xf32, #tpu.memory_space<vmem>>, %arg19: memref<1x1x32xf32, #tpu.memory_space<vmem>>, %arg20: memref<2x8x32xf32, #tpu.memory_space<vmem>>) attributes {dimension_semantics = [#tpu.dimension_semantics<arbitrary>], iteration_bounds = array<i64: 2>, scalar_prefetch = 0 : i64, scratch_operands = 0 : i64, tpu.core_type = #tpu.core_type<tc>, window_params = [{pipeline_mode = #tpu.pipeline_mode<synchronous>, transform_indices = @transform_0, window_bounds = array<i64: 2, 8, 32>}, {pipeline_mode = #tpu.pipeline_mode<synchronous>, transform_indices = @transform_1, window_bounds = array<i64: 2, 1, 8>}, {pipeline_mode = #tpu.pipeline_mode<synchronous>, transform_indices = @transform_2, window_bounds = array<i64: 16, 1>}, {transform_indices = @transform_3, window_bounds = array<i64: 1, 2, 32, 16>}, {transform_indices = @transform_4, window_bounds = array<i64: 1, 2, 1, 16>}, {transform_indices = @transform_5, window_bounds = array<i64: 1, 2, 32, 16>}, {transform_indices = @transform_6, window_bounds = array<i64: 1, 2, 1, 16>}, {transform_indices = @transform_7, window_bounds = array<i64: 1, 2, 32, 16>}, {transform_indices = @transform_8, window_bounds = array<i64: 1, 2, 1, 16>}, {transform_indices = @transform_9, window_bounds = array<i64: 1, 2, 16, 32>}, {transform_indices = @transform_10, window_bounds = array<i64: 1, 1, 32>}, {transform_indices = @transform_11, window_bounds = array<i64: 1, 1, 32>}, {transform_indices = @transform_12, window_bounds = array<i64: 1, 1, 32>}, {transform_indices = @transform_13, window_bounds = array<i64: 1, 288, 64>}, {transform_indices = @transform_14, window_bounds = array<i64: 1, 1, 64>}, {transform_indices = @transform_15, window_bounds = array<i64: 1, 64, 32>}, {transform_indices = @transform_16, window_bounds = array<i64: 1, 1, 32>}, {transform_indices = @transform_17, window_bounds = array<i64: 1, 1, 32>}, {transform_indices = @transform_18, window_bounds = array<i64: 1, 1, 32>}, {pipeline_mode = #tpu.pipeline_mode<synchronous>, transform_indices = @transform_19, window_bounds = array<i64: 2, 8, 32>}]} {
    %c0_i32 = arith.constant 0 : i32
    %0 = arith.cmpi eq, %arg0, %c0_i32 : i32
    %1 = arith.extui %0 : i1 to i32
    %c0_i32_0 = arith.constant 0 : i32
    %2 = arith.cmpi ne, %1, %c0_i32_0 : i32
    scf.if %2 {
      %c0_96 = arith.constant 0 : index
      %c0_97 = arith.constant 0 : index
      %c0_98 = arith.constant 0 : index
      %200 = vector.load %arg1[%c0_96, %c0_97, %c0_98] : memref<2x8x32xf32, #tpu.memory_space<vmem>>, vector<2x8x32xf32>
      %c0_99 = arith.constant 0 : index
      %c0_100 = arith.constant 0 : index
      %c0_101 = arith.constant 0 : index
      %201 = vector.load %arg20[%c0_99, %c0_100, %c0_101] : memref<2x8x32xf32, #tpu.memory_space<vmem>>, vector<2x8x32xf32>
      tpu.vector_store %arg20[%c0_99, %c0_100, %c0_101], %200 {strides = array<i32>} : memref<2x8x32xf32, #tpu.memory_space<vmem>>, vector<2x8x32xf32>,
    } else {
    }
    %c0 = arith.constant 0 : index
    %c0_1 = arith.constant 0 : index
    %c0_2 = arith.constant 0 : index
    %3 = vector.load %arg20[%c0, %c0_1, %c0_2] : memref<2x8x32xf32, #tpu.memory_space<vmem>>, vector<2x8x32xf32>
    %4 = vector.shape_cast %3 : vector<2x8x32xf32> to vector<16x32xf32>
    %c0_3 = arith.constant 0 : index
    %c0_4 = arith.constant 0 : index
    %c0_5 = arith.constant 0 : index
    %5 = vector.load %arg2[%c0_3, %c0_4, %c0_5] : memref<2x1x8xf32, #tpu.memory_space<vmem>>, vector<2x1x8xf32>
    %6 = vector.shape_cast %5 : vector<2x1x8xf32> to vector<2x1x8xf32>
    %7 = vector.broadcast %6 : vector<2x1x8xf32> to vector<2x8x8xf32>
    %c0_6 = arith.constant 0 : index
    %c0_7 = arith.constant 0 : index
    %8 = vector.load %arg3[%c0_6, %c0_7] : memref<16x1xf32, #tpu.memory_space<vmem>>, vector<16x1xf32>
    %c0_8 = arith.constant 0 : index
    %c0_9 = arith.constant 0 : index
    %c0_10 = arith.constant 0 : index
    %c0_11 = arith.constant 0 : index
    %9 = vector.load %arg4[%c0_8, %c0_9, %c0_10, %c0_11] : memref<1x2x32x16xf32, #tpu.memory_space<vmem>>, vector<1x2x32x16xf32>
    %10 = vector.shape_cast %9 : vector<1x2x32x16xf32> to vector<2x32x16xf32>
    %c0_12 = arith.constant 0 : index
    %c0_13 = arith.constant 0 : index
    %c0_14 = arith.constant 0 : index
    %c0_15 = arith.constant 0 : index
    %11 = vector.load %arg5[%c0_12, %c0_13, %c0_14, %c0_15] : memref<1x2x1x16xf32, #tpu.memory_space<vmem>>, vector<1x2x1x16xf32>
    %12 = vector.shape_cast %11 : vector<1x2x1x16xf32> to vector<2x1x16xf32>
    %c0_16 = arith.constant 0 : index
    %c0_17 = arith.constant 0 : index
    %c0_18 = arith.constant 0 : index
    %c0_19 = arith.constant 0 : index
    %13 = vector.load %arg6[%c0_16, %c0_17, %c0_18, %c0_19] : memref<1x2x32x16xf32, #tpu.memory_space<vmem>>, vector<1x2x32x16xf32>
    %14 = vector.shape_cast %13 : vector<1x2x32x16xf32> to vector<2x32x16xf32>
    %c0_20 = arith.constant 0 : index
    %c0_21 = arith.constant 0 : index
    %c0_22 = arith.constant 0 : index
    %c0_23 = arith.constant 0 : index
    %15 = vector.load %arg7[%c0_20, %c0_21, %c0_22, %c0_23] : memref<1x2x1x16xf32, #tpu.memory_space<vmem>>, vector<1x2x1x16xf32>
    %16 = vector.shape_cast %15 : vector<1x2x1x16xf32> to vector<2x1x16xf32>
    %c0_24 = arith.constant 0 : index
    %c0_25 = arith.constant 0 : index
    %c0_26 = arith.constant 0 : index
    %c0_27 = arith.constant 0 : index
    %17 = vector.load %arg8[%c0_24, %c0_25, %c0_26, %c0_27] : memref<1x2x32x16xf32, #tpu.memory_space<vmem>>, vector<1x2x32x16xf32>
    %18 = vector.shape_cast %17 : vector<1x2x32x16xf32> to vector<2x32x16xf32>
    %c0_28 = arith.constant 0 : index
    %c0_29 = arith.constant 0 : index
    %c0_30 = arith.constant 0 : index
    %c0_31 = arith.constant 0 : index
    %19 = vector.load %arg9[%c0_28, %c0_29, %c0_30, %c0_31] : memref<1x2x1x16xf32, #tpu.memory_space<vmem>>, vector<1x2x1x16xf32>
    %20 = vector.shape_cast %19 : vector<1x2x1x16xf32> to vector<2x1x16xf32>
    %c0_32 = arith.constant 0 : index
    %c0_33 = arith.constant 0 : index
    %c0_34 = arith.constant 0 : index
    %c0_35 = arith.constant 0 : index
    %21 = vector.load %arg10[%c0_32, %c0_33, %c0_34, %c0_35] : memref<1x2x16x32xf32, #tpu.memory_space<vmem>>, vector<1x2x16x32xf32>
    %22 = vector.shape_cast %21 : vector<1x2x16x32xf32> to vector<2x16x32xf32>
    %c0_36 = arith.constant 0 : index
    %c0_37 = arith.constant 0 : index
    %c0_38 = arith.constant 0 : index
    %23 = vector.load %arg11[%c0_36, %c0_37, %c0_38] : memref<1x1x32xf32, #tpu.memory_space<vmem>>, vector<1x1x32xf32>
    %24 = vector.shape_cast %23 : vector<1x1x32xf32> to vector<1x32xf32>
    %cst = arith.constant 0.000000e+00 : f32
    %25 = vector.broadcast %cst : f32 to vector<16x32xf32>
    %26 = vector.extract_strided_slice %10 {offsets = [0, 0, 0], sizes = [1, 32, 16], strides = [1, 1, 1]} : vector<2x32x16xf32> to vector<1x32x16xf32>
    %27 = vector.shape_cast %26 : vector<1x32x16xf32> to vector<32x16xf32>
    %cst_39 = arith.constant dense<0.000000e+00> : vector<16x16xf32>
    %28 = tpu.matmul %4, %27, %cst_39 {dimension_numbers = #tpu.dot_dimension_numbers<[1], [0], [0], [1], [0, 0, 1, 1], [], []>} : vector<16x32xf32>, vector<32x16xf32>, vector<16x16xf32> -> vector<16x16xf32>
    %29 = vector.extract_strided_slice %12 {offsets = [0, 0, 0], sizes = [1, 1, 16], strides = [1, 1, 1]} : vector<2x1x16xf32> to vector<1x1x16xf32>
    %30 = vector.shape_cast %29 : vector<1x1x16xf32> to vector<1x16xf32>
    %31 = vector.broadcast %30 : vector<1x16xf32> to vector<16x16xf32>
    %32 = arith.addf %28, %31 : vector<16x16xf32>
    %33 = vector.shape_cast %32 : vector<16x16xf32> to vector<2x8x16xf32>
    %34 = vector.extract_strided_slice %14 {offsets = [0, 0, 0], sizes = [1, 32, 16], strides = [1, 1, 1]} : vector<2x32x16xf32> to vector<1x32x16xf32>
    %35 = vector.shape_cast %34 : vector<1x32x16xf32> to vector<32x16xf32>
    %cst_40 = arith.constant dense<0.000000e+00> : vector<16x16xf32>
    %36 = tpu.matmul %4, %35, %cst_40 {dimension_numbers = #tpu.dot_dimension_numbers<[1], [0], [0], [1], [0, 0, 1, 1], [], []>} : vector<16x32xf32>, vector<32x16xf32>, vector<16x16xf32> -> vector<16x16xf32>
    %37 = vector.extract_strided_slice %16 {offsets = [0, 0, 0], sizes = [1, 1, 16], strides = [1, 1, 1]} : vector<2x1x16xf32> to vector<1x1x16xf32>
    %38 = vector.shape_cast %37 : vector<1x1x16xf32> to vector<1x16xf32>
    %39 = vector.broadcast %38 : vector<1x16xf32> to vector<16x16xf32>
    %40 = arith.addf %36, %39 : vector<16x16xf32>
    %41 = vector.shape_cast %40 : vector<16x16xf32> to vector<2x8x16xf32>
    %42 = vector.extract_strided_slice %18 {offsets = [0, 0, 0], sizes = [1, 32, 16], strides = [1, 1, 1]} : vector<2x32x16xf32> to vector<1x32x16xf32>
    %43 = vector.shape_cast %42 : vector<1x32x16xf32> to vector<32x16xf32>
    %cst_41 = arith.constant dense<0.000000e+00> : vector<16x16xf32>
    %44 = tpu.matmul %4, %43, %cst_41 {dimension_numbers = #tpu.dot_dimension_numbers<[1], [0], [0], [1], [0, 0, 1, 1], [], []>} : vector<16x32xf32>, vector<32x16xf32>, vector<16x16xf32> -> vector<16x16xf32>
    %45 = vector.extract_strided_slice %20 {offsets = [0, 0, 0], sizes = [1, 1, 16], strides = [1, 1, 1]} : vector<2x1x16xf32> to vector<1x1x16xf32>
    %46 = vector.shape_cast %45 : vector<1x1x16xf32> to vector<1x16xf32>
    %47 = vector.broadcast %46 : vector<1x16xf32> to vector<16x16xf32>
    %48 = arith.addf %44, %47 : vector<16x16xf32>
    %49 = vector.shape_cast %48 : vector<16x16xf32> to vector<2x8x16xf32>
    "tpu.trace_start"() <{level = 10 : i32, message = "bqd,bkd->bqk"}> : () -> ()
    %cst_42 = arith.constant dense<0.000000e+00> : vector<2x8x8xf32>
    %50 = tpu.matmul %33, %41, %cst_42 {dimension_numbers = #tpu.dot_dimension_numbers<[2], [2], [1], [1], [0, 0, 0, 1, 1, 1], [0], [0]>} : vector<2x8x16xf32>, vector<2x8x16xf32>, vector<2x8x8xf32> -> vector<2x8x8xf32>
    "tpu.trace_stop"() : () -> ()
    %51 = arith.addf %50, %7 : vector<2x8x8xf32>
    %cst_43 = arith.constant dense<0xFF800000> : vector<2x8xf32>
    %52 = vector.multi_reduction <maximumf>, %51, %cst_43 [2] : vector<2x8x8xf32> to vector<2x8xf32>
    %53 = vector.shape_cast %52 : vector<2x8xf32> to vector<2x8x1xf32>
    %54 = vector.broadcast %53 : vector<2x8x1xf32> to vector<2x8x8xf32>
    %55 = arith.subf %51, %54 : vector<2x8x8xf32>
    %56 = math.exp %55 : vector<2x8x8xf32>
    %cst_44 = arith.constant dense<0.000000e+00> : vector<2x8xf32>
    %57 = vector.multi_reduction <add>, %56, %cst_44 [2] : vector<2x8x8xf32> to vector<2x8xf32>
    %58 = vector.shape_cast %57 : vector<2x8xf32> to vector<2x8x1xf32>
    %59 = vector.broadcast %58 : vector<2x8x1xf32> to vector<2x8x8xf32>
    %60 = arith.divf %56, %59 : vector<2x8x8xf32>
    "tpu.trace_start"() <{level = 10 : i32, message = "bqk,bkd->bqd"}> : () -> ()
    %cst_45 = arith.constant dense<0.000000e+00> : vector<2x8x16xf32>
    %61 = tpu.matmul %60, %49, %cst_45 {dimension_numbers = #tpu.dot_dimension_numbers<[2], [1], [1], [2], [0, 0, 0, 1, 1, 2], [0], [0]>} : vector<2x8x8xf32>, vector<2x8x16xf32>, vector<2x8x16xf32> -> vector<2x8x16xf32>
    "tpu.trace_stop"() : () -> ()
    %62 = vector.shape_cast %61 : vector<2x8x16xf32> to vector<16x16xf32>
    %63 = vector.extract_strided_slice %22 {offsets = [0, 0, 0], sizes = [1, 16, 32], strides = [1, 1, 1]} : vector<2x16x32xf32> to vector<1x16x32xf32>
    %64 = vector.shape_cast %63 : vector<1x16x32xf32> to vector<16x32xf32>
    %cst_46 = arith.constant dense<0.000000e+00> : vector<16x32xf32>
    %65 = tpu.matmul %62, %64, %cst_46 {dimension_numbers = #tpu.dot_dimension_numbers<[1], [0], [0], [1], [0, 0, 1, 1], [], []>} : vector<16x16xf32>, vector<16x32xf32>, vector<16x32xf32> -> vector<16x32xf32>
    %66 = arith.addf %25, %65 : vector<16x32xf32>
    %67 = vector.extract_strided_slice %10 {offsets = [1, 0, 0], sizes = [1, 32, 16], strides = [1, 1, 1]} : vector<2x32x16xf32> to vector<1x32x16xf32>
    %68 = vector.shape_cast %67 : vector<1x32x16xf32> to vector<32x16xf32>
    %cst_47 = arith.constant dense<0.000000e+00> : vector<16x16xf32>
    %69 = tpu.matmul %4, %68, %cst_47 {dimension_numbers = #tpu.dot_dimension_numbers<[1], [0], [0], [1], [0, 0, 1, 1], [], []>} : vector<16x32xf32>, vector<32x16xf32>, vector<16x16xf32> -> vector<16x16xf32>
    %70 = vector.extract_strided_slice %12 {offsets = [1, 0, 0], sizes = [1, 1, 16], strides = [1, 1, 1]} : vector<2x1x16xf32> to vector<1x1x16xf32>
    %71 = vector.shape_cast %70 : vector<1x1x16xf32> to vector<1x16xf32>
    %72 = vector.broadcast %71 : vector<1x16xf32> to vector<16x16xf32>
    %73 = arith.addf %69, %72 : vector<16x16xf32>
    %74 = vector.shape_cast %73 : vector<16x16xf32> to vector<2x8x16xf32>
    %75 = vector.extract_strided_slice %14 {offsets = [1, 0, 0], sizes = [1, 32, 16], strides = [1, 1, 1]} : vector<2x32x16xf32> to vector<1x32x16xf32>
    %76 = vector.shape_cast %75 : vector<1x32x16xf32> to vector<32x16xf32>
    %cst_48 = arith.constant dense<0.000000e+00> : vector<16x16xf32>
    %77 = tpu.matmul %4, %76, %cst_48 {dimension_numbers = #tpu.dot_dimension_numbers<[1], [0], [0], [1], [0, 0, 1, 1], [], []>} : vector<16x32xf32>, vector<32x16xf32>, vector<16x16xf32> -> vector<16x16xf32>
    %78 = vector.extract_strided_slice %16 {offsets = [1, 0, 0], sizes = [1, 1, 16], strides = [1, 1, 1]} : vector<2x1x16xf32> to vector<1x1x16xf32>
    %79 = vector.shape_cast %78 : vector<1x1x16xf32> to vector<1x16xf32>
    %80 = vector.broadcast %79 : vector<1x16xf32> to vector<16x16xf32>
    %81 = arith.addf %77, %80 : vector<16x16xf32>
    %82 = vector.shape_cast %81 : vector<16x16xf32> to vector<2x8x16xf32>
    %83 = vector.extract_strided_slice %18 {offsets = [1, 0, 0], sizes = [1, 32, 16], strides = [1, 1, 1]} : vector<2x32x16xf32> to vector<1x32x16xf32>
    %84 = vector.shape_cast %83 : vector<1x32x16xf32> to vector<32x16xf32>
    %cst_49 = arith.constant dense<0.000000e+00> : vector<16x16xf32>
    %85 = tpu.matmul %4, %84, %cst_49 {dimension_numbers = #tpu.dot_dimension_numbers<[1], [0], [0], [1], [0, 0, 1, 1], [], []>} : vector<16x32xf32>, vector<32x16xf32>, vector<16x16xf32> -> vector<16x16xf32>
    %86 = vector.extract_strided_slice %20 {offsets = [1, 0, 0], sizes = [1, 1, 16], strides = [1, 1, 1]} : vector<2x1x16xf32> to vector<1x1x16xf32>
    %87 = vector.shape_cast %86 : vector<1x1x16xf32> to vector<1x16xf32>
    %88 = vector.broadcast %87 : vector<1x16xf32> to vector<16x16xf32>
    %89 = arith.addf %85, %88 : vector<16x16xf32>
    %90 = vector.shape_cast %89 : vector<16x16xf32> to vector<2x8x16xf32>
    "tpu.trace_start"() <{level = 10 : i32, message = "bqd,bkd->bqk"}> : () -> ()
    %cst_50 = arith.constant dense<0.000000e+00> : vector<2x8x8xf32>
    %91 = tpu.matmul %74, %82, %cst_50 {dimension_numbers = #tpu.dot_dimension_numbers<[2], [2], [1], [1], [0, 0, 0, 1, 1, 1], [0], [0]>} : vector<2x8x16xf32>, vector<2x8x16xf32>, vector<2x8x8xf32> -> vector<2x8x8xf32>
    "tpu.trace_stop"() : () -> ()
    %92 = arith.addf %91, %7 : vector<2x8x8xf32>
    %cst_51 = arith.constant dense<0xFF800000> : vector<2x8xf32>
    %93 = vector.multi_reduction <maximumf>, %92, %cst_51 [2] : vector<2x8x8xf32> to vector<2x8xf32>
    %94 = vector.shape_cast %93 : vector<2x8xf32> to vector<2x8x1xf32>
    %95 = vector.broadcast %94 : vector<2x8x1xf32> to vector<2x8x8xf32>
    %96 = arith.subf %92, %95 : vector<2x8x8xf32>
    %97 = math.exp %96 : vector<2x8x8xf32>
    %cst_52 = arith.constant dense<0.000000e+00> : vector<2x8xf32>
    %98 = vector.multi_reduction <add>, %97, %cst_52 [2] : vector<2x8x8xf32> to vector<2x8xf32>
    %99 = vector.shape_cast %98 : vector<2x8xf32> to vector<2x8x1xf32>
    %100 = vector.broadcast %99 : vector<2x8x1xf32> to vector<2x8x8xf32>
    %101 = arith.divf %97, %100 : vector<2x8x8xf32>
    "tpu.trace_start"() <{level = 10 : i32, message = "bqk,bkd->bqd"}> : () -> ()
    %cst_53 = arith.constant dense<0.000000e+00> : vector<2x8x16xf32>
    %102 = tpu.matmul %101, %90, %cst_53 {dimension_numbers = #tpu.dot_dimension_numbers<[2], [1], [1], [2], [0, 0, 0, 1, 1, 2], [0], [0]>} : vector<2x8x8xf32>, vector<2x8x16xf32>, vector<2x8x16xf32> -> vector<2x8x16xf32>
    "tpu.trace_stop"() : () -> ()
    %103 = vector.shape_cast %102 : vector<2x8x16xf32> to vector<16x16xf32>
    %104 = vector.extract_strided_slice %22 {offsets = [1, 0, 0], sizes = [1, 16, 32], strides = [1, 1, 1]} : vector<2x16x32xf32> to vector<1x16x32xf32>
    %105 = vector.shape_cast %104 : vector<1x16x32xf32> to vector<16x32xf32>
    %cst_54 = arith.constant dense<0.000000e+00> : vector<16x32xf32>
    %106 = tpu.matmul %103, %105, %cst_54 {dimension_numbers = #tpu.dot_dimension_numbers<[1], [0], [0], [1], [0, 0, 1, 1], [], []>} : vector<16x16xf32>, vector<16x32xf32>, vector<16x32xf32> -> vector<16x32xf32>
    %107 = arith.addf %66, %106 : vector<16x32xf32>
    %108 = vector.broadcast %24 : vector<1x32xf32> to vector<16x32xf32>
    %109 = arith.addf %107, %108 : vector<16x32xf32>
    %110 = arith.addf %109, %4 : vector<16x32xf32>
    %c0_55 = arith.constant 0 : index
    %c0_56 = arith.constant 0 : index
    %c0_57 = arith.constant 0 : index
    %111 = vector.load %arg12[%c0_55, %c0_56, %c0_57] : memref<1x1x32xf32, #tpu.memory_space<vmem>>, vector<1x1x32xf32>
    %112 = vector.shape_cast %111 : vector<1x1x32xf32> to vector<1x32xf32>
    %c0_58 = arith.constant 0 : index
    %c0_59 = arith.constant 0 : index
    %c0_60 = arith.constant 0 : index
    %113 = vector.load %arg13[%c0_58, %c0_59, %c0_60] : memref<1x1x32xf32, #tpu.memory_space<vmem>>, vector<1x1x32xf32>
    %114 = vector.shape_cast %113 : vector<1x1x32xf32> to vector<1x32xf32>
    %cst_61 = arith.constant dense<0.000000e+00> : vector<16xf32>
    %115 = vector.multi_reduction <add>, %110, %cst_61 [1] : vector<16x32xf32> to vector<16xf32>
    %116 = vector.shape_cast %115 : vector<16xf32> to vector<16x1xf32>
    %cst_62 = arith.constant 3.200000e+01 : f32
    %117 = vector.broadcast %cst_62 : f32 to vector<16x1xf32>
    %118 = arith.divf %116, %117 : vector<16x1xf32>
    %119 = vector.broadcast %118 : vector<16x1xf32> to vector<16x32xf32>
    %120 = arith.subf %110, %119 : vector<16x32xf32>
    %121 = arith.mulf %120, %120 : vector<16x32xf32>
    %cst_63 = arith.constant dense<0.000000e+00> : vector<16xf32>
    %122 = vector.multi_reduction <add>, %121, %cst_63 [1] : vector<16x32xf32> to vector<16xf32>
    %123 = vector.shape_cast %122 : vector<16xf32> to vector<16x1xf32>
    %cst_64 = arith.constant 3.200000e+01 : f32
    %124 = vector.broadcast %cst_64 : f32 to vector<16x1xf32>
    %125 = arith.divf %123, %124 : vector<16x1xf32>
    %126 = vector.broadcast %118 : vector<16x1xf32> to vector<16x32xf32>
    %127 = arith.subf %110, %126 : vector<16x32xf32>
    %cst_65 = arith.constant 9.99999974E-6 : f32
    %128 = vector.broadcast %cst_65 : f32 to vector<16x1xf32>
    %129 = arith.addf %125, %128 : vector<16x1xf32>
    %130 = math.rsqrt %129 : vector<16x1xf32>
    %131 = vector.broadcast %130 : vector<16x1xf32> to vector<16x32xf32>
    %132 = arith.mulf %127, %131 : vector<16x32xf32>
    %133 = vector.broadcast %112 : vector<1x32xf32> to vector<16x32xf32>
    %134 = arith.mulf %132, %133 : vector<16x32xf32>
    %135 = vector.broadcast %114 : vector<1x32xf32> to vector<16x32xf32>
    %136 = arith.addf %134, %135 : vector<16x32xf32>
    %137 = vector.broadcast %8 : vector<16x1xf32> to vector<16x32xf32>
    %138 = arith.mulf %136, %137 : vector<16x32xf32>
    %139 = vector.shape_cast %138 : vector<16x32xf32> to vector<2x8x32xf32>
    %cst_66 = arith.constant 0.000000e+00 : f32
    %140 = vector.broadcast %cst_66 : f32 to vector<2x4x32xf32>
    %141 = tpu.concatenate %140, %139, %140 in 1 : vector<2x4x32xf32>, vector<2x8x32xf32>, vector<2x4x32xf32> -> vector<2x16x32xf32>
    %142 = vector.extract_strided_slice %141 {offsets = [0, 0, 0], sizes = [2, 8, 32], strides = [1, 1, 1]} : vector<2x16x32xf32> to vector<2x8x32xf32>
    %143 = vector.extract_strided_slice %141 {offsets = [0, 1, 0], sizes = [2, 8, 32], strides = [1, 1, 1]} : vector<2x16x32xf32> to vector<2x8x32xf32>
    %144 = vector.extract_strided_slice %141 {offsets = [0, 2, 0], sizes = [2, 8, 32], strides = [1, 1, 1]} : vector<2x16x32xf32> to vector<2x8x32xf32>
    %145 = vector.extract_strided_slice %141 {offsets = [0, 3, 0], sizes = [2, 8, 32], strides = [1, 1, 1]} : vector<2x16x32xf32> to vector<2x8x32xf32>
    %146 = vector.extract_strided_slice %141 {offsets = [0, 4, 0], sizes = [2, 8, 32], strides = [1, 1, 1]} : vector<2x16x32xf32> to vector<2x8x32xf32>
    %147 = vector.extract_strided_slice %141 {offsets = [0, 5, 0], sizes = [2, 8, 32], strides = [1, 1, 1]} : vector<2x16x32xf32> to vector<2x8x32xf32>
    %148 = vector.extract_strided_slice %141 {offsets = [0, 6, 0], sizes = [2, 8, 32], strides = [1, 1, 1]} : vector<2x16x32xf32> to vector<2x8x32xf32>
    %149 = vector.extract_strided_slice %141 {offsets = [0, 7, 0], sizes = [2, 8, 32], strides = [1, 1, 1]} : vector<2x16x32xf32> to vector<2x8x32xf32>
    %150 = vector.extract_strided_slice %141 {offsets = [0, 8, 0], sizes = [2, 8, 32], strides = [1, 1, 1]} : vector<2x16x32xf32> to vector<2x8x32xf32>
    %151 = tpu.concatenate %142, %143, %144, %145, %146, %147, %148, %149, %150 in 2 : vector<2x8x32xf32>, vector<2x8x32xf32>, vector<2x8x32xf32>, vector<2x8x32xf32>, vector<2x8x32xf32>, vector<2x8x32xf32>, vector<2x8x32xf32>, vector<2x8x32xf32>, vector<2x8x32xf32> -> vector<2x8x288xf32>
    %152 = vector.shape_cast %151 : vector<2x8x288xf32> to vector<16x288xf32>
    %c0_67 = arith.constant 0 : index
    %c0_68 = arith.constant 0 : index
    %c0_69 = arith.constant 0 : index
    %153 = vector.load %arg14[%c0_67, %c0_68, %c0_69] : memref<1x288x64xf32, #tpu.memory_space<vmem>>, vector<1x288x64xf32>
    %154 = vector.shape_cast %153 : vector<1x288x64xf32> to vector<288x64xf32>
    %cst_70 = arith.constant dense<0.000000e+00> : vector<16x64xf32>
    %155 = tpu.matmul %152, %154, %cst_70 {dimension_numbers = #tpu.dot_dimension_numbers<[1], [0], [0], [1], [0, 0, 1, 1], [], []>} : vector<16x288xf32>, vector<288x64xf32>, vector<16x64xf32> -> vector<16x64xf32>
    %c0_71 = arith.constant 0 : index
    %c0_72 = arith.constant 0 : index
    %c0_73 = arith.constant 0 : index
    %156 = vector.load %arg15[%c0_71, %c0_72, %c0_73] : memref<1x1x64xf32, #tpu.memory_space<vmem>>, vector<1x1x64xf32>
    %157 = vector.shape_cast %156 : vector<1x1x64xf32> to vector<1x64xf32>
    %158 = vector.broadcast %157 : vector<1x64xf32> to vector<16x64xf32>
    %159 = arith.addf %155, %158 : vector<16x64xf32>
    %cst_74 = arith.constant 0.000000e+00 : f32
    %160 = vector.broadcast %cst_74 : f32 to vector<16x64xf32>
    %161 = arith.maximumf %159, %160 : vector<16x64xf32>
    %c0_75 = arith.constant 0 : index
    %c0_76 = arith.constant 0 : index
    %c0_77 = arith.constant 0 : index
    %162 = vector.load %arg16[%c0_75, %c0_76, %c0_77] : memref<1x64x32xf32, #tpu.memory_space<vmem>>, vector<1x64x32xf32>
    %163 = vector.shape_cast %162 : vector<1x64x32xf32> to vector<64x32xf32>
    %cst_78 = arith.constant dense<0.000000e+00> : vector<16x32xf32>
    %164 = tpu.matmul %161, %163, %cst_78 {dimension_numbers = #tpu.dot_dimension_numbers<[1], [0], [0], [1], [0, 0, 1, 1], [], []>} : vector<16x64xf32>, vector<64x32xf32>, vector<16x32xf32> -> vector<16x32xf32>
    %c0_79 = arith.constant 0 : index
    %c0_80 = arith.constant 0 : index
    %c0_81 = arith.constant 0 : index
    %165 = vector.load %arg17[%c0_79, %c0_80, %c0_81] : memref<1x1x32xf32, #tpu.memory_space<vmem>>, vector<1x1x32xf32>
    %166 = vector.shape_cast %165 : vector<1x1x32xf32> to vector<1x32xf32>
    %167 = vector.broadcast %166 : vector<1x32xf32> to vector<16x32xf32>
    %168 = arith.addf %164, %167 : vector<16x32xf32>
    %169 = arith.addf %168, %138 : vector<16x32xf32>
    %c0_82 = arith.constant 0 : index
    %c0_83 = arith.constant 0 : index
    %c0_84 = arith.constant 0 : index
    %170 = vector.load %arg18[%c0_82, %c0_83, %c0_84] : memref<1x1x32xf32, #tpu.memory_space<vmem>>, vector<1x1x32xf32>
    %171 = vector.shape_cast %170 : vector<1x1x32xf32> to vector<1x32xf32>
    %c0_85 = arith.constant 0 : index
    %c0_86 = arith.constant 0 : index
    %c0_87 = arith.constant 0 : index
    %172 = vector.load %arg19[%c0_85, %c0_86, %c0_87] : memref<1x1x32xf32, #tpu.memory_space<vmem>>, vector<1x1x32xf32>
    %173 = vector.shape_cast %172 : vector<1x1x32xf32> to vector<1x32xf32>
    %cst_88 = arith.constant dense<0.000000e+00> : vector<16xf32>
    %174 = vector.multi_reduction <add>, %169, %cst_88 [1] : vector<16x32xf32> to vector<16xf32>
    %175 = vector.shape_cast %174 : vector<16xf32> to vector<16x1xf32>
    %cst_89 = arith.constant 3.200000e+01 : f32
    %176 = vector.broadcast %cst_89 : f32 to vector<16x1xf32>
    %177 = arith.divf %175, %176 : vector<16x1xf32>
    %178 = vector.broadcast %177 : vector<16x1xf32> to vector<16x32xf32>
    %179 = arith.subf %169, %178 : vector<16x32xf32>
    %180 = arith.mulf %179, %179 : vector<16x32xf32>
    %cst_90 = arith.constant dense<0.000000e+00> : vector<16xf32>
    %181 = vector.multi_reduction <add>, %180, %cst_90 [1] : vector<16x32xf32> to vector<16xf32>
    %182 = vector.shape_cast %181 : vector<16xf32> to vector<16x1xf32>
    %cst_91 = arith.constant 3.200000e+01 : f32
    %183 = vector.broadcast %cst_91 : f32 to vector<16x1xf32>
    %184 = arith.divf %182, %183 : vector<16x1xf32>
    %185 = vector.broadcast %177 : vector<16x1xf32> to vector<16x32xf32>
    %186 = arith.subf %169, %185 : vector<16x32xf32>
    %cst_92 = arith.constant 9.99999974E-6 : f32
    %187 = vector.broadcast %cst_92 : f32 to vector<16x1xf32>
    %188 = arith.addf %184, %187 : vector<16x1xf32>
    %189 = math.rsqrt %188 : vector<16x1xf32>
    %190 = vector.broadcast %189 : vector<16x1xf32> to vector<16x32xf32>
    %191 = arith.mulf %186, %190 : vector<16x32xf32>
    %192 = vector.broadcast %171 : vector<1x32xf32> to vector<16x32xf32>
    %193 = arith.mulf %191, %192 : vector<16x32xf32>
    %194 = vector.broadcast %173 : vector<1x32xf32> to vector<16x32xf32>
    %195 = arith.addf %193, %194 : vector<16x32xf32>
    %196 = vector.broadcast %8 : vector<16x1xf32> to vector<16x32xf32>
    %197 = arith.mulf %195, %196 : vector<16x32xf32>
    %198 = vector.shape_cast %197 : vector<16x32xf32> to vector<2x8x32xf32>
    %c0_93 = arith.constant 0 : index
    %c0_94 = arith.constant 0 : index
    %c0_95 = arith.constant 0 : index
    %199 = vector.load %arg20[%c0_93, %c0_94, %c0_95] : memref<2x8x32xf32, #tpu.memory_space<vmem>>, vector<2x8x32xf32>
    tpu.vector_store %arg20[%c0_93, %c0_94, %c0_95], %198 {strides = array<i32>} : memref<2x8x32xf32, #tpu.memory_space<vmem>>, vector<2x8x32xf32>,
    return
  }
  func.func @transform_0(%arg0: i32) -> (i32, i32, i32) {
    %c0_i32 = arith.constant 0 : i32
    %c0_i32_0 = arith.constant 0 : i32
    %c0_i32_1 = arith.constant 0 : i32
    %c0_i32_2 = arith.constant 0 : i32
    return %c0_i32, %c0_i32_0, %c0_i32_1 : i32, i32, i32
  }
  func.func @transform_1(%arg0: i32) -> (i32, i32, i32) {
    %c0_i32 = arith.constant 0 : i32
    %c0_i32_0 = arith.constant 0 : i32
    %c0_i32_1 = arith.constant 0 : i32
    %c0_i32_2 = arith.constant 0 : i32
    return %c0_i32, %c0_i32_0, %c0_i32_1 : i32, i32, i32
  }
  func.func @transform_2(%arg0: i32) -> (i32, i32) {
    %c0_i32 = arith.constant 0 : i32
    %c0_i32_0 = arith.constant 0 : i32
    %c0_i32_1 = arith.constant 0 : i32
    return %c0_i32, %c0_i32_0 : i32, i32
  }
  func.func @transform_3(%arg0: i32) -> (i32, i32, i32, i32) {
    %c0_i32 = arith.constant 0 : i32
    %c0_i32_0 = arith.constant 0 : i32
    %c0_i32_1 = arith.constant 0 : i32
    %c0_i32_2 = arith.constant 0 : i32
    return %arg0, %c0_i32, %c0_i32_0, %c0_i32_1 : i32, i32, i32, i32
  }
  func.func @transform_4(%arg0: i32) -> (i32, i32, i32, i32) {
    %c0_i32 = arith.constant 0 : i32
    %c0_i32_0 = arith.constant 0 : i32
    %c0_i32_1 = arith.constant 0 : i32
    %c0_i32_2 = arith.constant 0 : i32
    return %arg0, %c0_i32, %c0_i32_0, %c0_i32_1 : i32, i32, i32, i32
  }
  func.func @transform_5(%arg0: i32) -> (i32, i32, i32, i32) {
    %c0_i32 = arith.constant 0 : i32
    %c0_i32_0 = arith.constant 0 : i32
    %c0_i32_1 = arith.constant 0 : i32
    %c0_i32_2 = arith.constant 0 : i32
    return %arg0, %c0_i32, %c0_i32_0, %c0_i32_1 : i32, i32, i32, i32
  }
  func.func @transform_6(%arg0: i32) -> (i32, i32, i32, i32) {
    %c0_i32 = arith.constant 0 : i32
    %c0_i32_0 = arith.constant 0 : i32
    %c0_i32_1 = arith.constant 0 : i32
    %c0_i32_2 = arith.constant 0 : i32
    return %arg0, %c0_i32, %c0_i32_0, %c0_i32_1 : i32, i32, i32, i32
  }
  func.func @transform_7(%arg0: i32) -> (i32, i32, i32, i32) {
    %c0_i32 = arith.constant 0 : i32
    %c0_i32_0 = arith.constant 0 : i32
    %c0_i32_1 = arith.constant 0 : i32
    %c0_i32_2 = arith.constant 0 : i32
    return %arg0, %c0_i32, %c0_i32_0, %c0_i32_1 : i32, i32, i32, i32
  }
  func.func @transform_8(%arg0: i32) -> (i32, i32, i32, i32) {
    %c0_i32 = arith.constant 0 : i32
    %c0_i32_0 = arith.constant 0 : i32
    %c0_i32_1 = arith.constant 0 : i32
    %c0_i32_2 = arith.constant 0 : i32
    return %arg0, %c0_i32, %c0_i32_0, %c0_i32_1 : i32, i32, i32, i32
  }
  func.func @transform_9(%arg0: i32) -> (i32, i32, i32, i32) {
    %c0_i32 = arith.constant 0 : i32
    %c0_i32_0 = arith.constant 0 : i32
    %c0_i32_1 = arith.constant 0 : i32
    %c0_i32_2 = arith.constant 0 : i32
    return %arg0, %c0_i32, %c0_i32_0, %c0_i32_1 : i32, i32, i32, i32
  }
  func.func @transform_10(%arg0: i32) -> (i32, i32, i32) {
    %c0_i32 = arith.constant 0 : i32
    %c0_i32_0 = arith.constant 0 : i32
    %c0_i32_1 = arith.constant 0 : i32
    return %arg0, %c0_i32, %c0_i32_0 : i32, i32, i32
  }
  func.func @transform_11(%arg0: i32) -> (i32, i32, i32) {
    %c0_i32 = arith.constant 0 : i32
    %c0_i32_0 = arith.constant 0 : i32
    %c0_i32_1 = arith.constant 0 : i32
    return %arg0, %c0_i32, %c0_i32_0 : i32, i32, i32
  }
  func.func @transform_12(%arg0: i32) -> (i32, i32, i32) {
    %c0_i32 = arith.constant 0 : i32
    %c0_i32_0 = arith.constant 0 : i32
    %c0_i32_1 = arith.constant 0 : i32
    return %arg0, %c0_i32, %c0_i32_0 : i32, i32, i32
  }
  func.func @transform_13(%arg0: i32) -> (i32, i32, i32) {
    %c0_i32 = arith.constant 0 : i32
    %c0_i32_0 = arith.constant 0 : i32
    %c0_i32_1 = arith.constant 0 : i32
    return %arg0, %c0_i32, %c0_i32_0 : i32, i32, i32
  }
  func.func @transform_14(%arg0: i32) -> (i32, i32, i32) {
    %c0_i32 = arith.constant 0 : i32
    %c0_i32_0 = arith.constant 0 : i32
    %c0_i32_1 = arith.constant 0 : i32
    return %arg0, %c0_i32, %c0_i32_0 : i32, i32, i32
  }
  func.func @transform_15(%arg0: i32) -> (i32, i32, i32) {
    %c0_i32 = arith.constant 0 : i32
    %c0_i32_0 = arith.constant 0 : i32
    %c0_i32_1 = arith.constant 0 : i32
    return %arg0, %c0_i32, %c0_i32_0 : i32, i32, i32
  }
  func.func @transform_16(%arg0: i32) -> (i32, i32, i32) {
    %c0_i32 = arith.constant 0 : i32
    %c0_i32_0 = arith.constant 0 : i32
    %c0_i32_1 = arith.constant 0 : i32
    return %arg0, %c0_i32, %c0_i32_0 : i32, i32, i32
  }
  func.func @transform_17(%arg0: i32) -> (i32, i32, i32) {
    %c0_i32 = arith.constant 0 : i32
    %c0_i32_0 = arith.constant 0 : i32
    %c0_i32_1 = arith.constant 0 : i32
    return %arg0, %c0_i32, %c0_i32_0 : i32, i32, i32
  }
  func.func @transform_18(%arg0: i32) -> (i32, i32, i32) {
    %c0_i32 = arith.constant 0 : i32
    %c0_i32_0 = arith.constant 0 : i32
    %c0_i32_1 = arith.constant 0 : i32
    return %arg0, %c0_i32, %c0_i32_0 : i32, i32, i32
  }
  func.func @transform_19(%arg0: i32) -> (i32, i32, i32) {
    %c0_i32 = arith.constant 0 : i32
    %c0_i32_0 = arith.constant 0 : i32
    %c0_i32_1 = arith.constant 0 : i32
    %c0_i32_2 = arith.constant 0 : i32
    return %c0_i32, %c0_i32_0, %c0_i32_1 : i32, i32, i32
  }
}

</mosaic_0001>

<llo_original>
// kernel: tpu_custom_call.1
$region0: #{tpu_custom_call.1}
  #allocation0 [shape = 'u32[]', space=smem, size = 0x4, offset = 0x4, fixed_abs, tag = 'smem constant byte address 0x4 - core index']
  #allocation1 [shape = 'u32[144,128]{1,0:T(1,128)}', space=vmem, size = 0x12000, scoped, tag = 'internal scratch']
  %s0 = inlined_call_operand.vmem [shape: f32[2,8,32], index: 0, kind: input, shape index: {}]
  %s1 = inlined_call_operand.vmem [shape: f32[2,1,8], index: 1, kind: input, shape index: {}]
  %s2 = inlined_call_operand.vmem [shape: f32[16,1], index: 2, kind: input, shape index: {}]
  %s3 = inlined_call_operand.vmem [shape: f32[2,2,32,16], index: 3, kind: input, shape index: {}]
  %s4 = inlined_call_operand.vmem [shape: f32[2,2,1,16], index: 4, kind: input, shape index: {}]
  %s5 = inlined_call_operand.vmem [shape: f32[2,2,32,16], index: 5, kind: input, shape index: {}]
  %s6 = inlined_call_operand.vmem [shape: f32[2,2,1,16], index: 6, kind: input, shape index: {}]
  %s7 = inlined_call_operand.vmem [shape: f32[2,2,32,16], index: 7, kind: input, shape index: {}]
  %s8 = inlined_call_operand.vmem [shape: f32[2,2,1,16], index: 8, kind: input, shape index: {}]
  %s9 = inlined_call_operand.vmem [shape: f32[2,2,16,32], index: 9, kind: input, shape index: {}]
  %s10 = inlined_call_operand.vmem [shape: f32[2,1,32], index: 10, kind: input, shape index: {}]
  %s11 = inlined_call_operand.vmem [shape: f32[2,1,32], index: 11, kind: input, shape index: {}]
  %s12 = inlined_call_operand.vmem [shape: f32[2,1,32], index: 12, kind: input, shape index: {}]
  %s13 = inlined_call_operand.vmem [shape: f32[2,288,64], index: 13, kind: input, shape index: {}]
  %s14 = inlined_call_operand.vmem [shape: f32[2,1,64], index: 14, kind: input, shape index: {}]
  %s15 = inlined_call_operand.vmem [shape: f32[2,64,32], index: 15, kind: input, shape index: {}]
  %s16 = inlined_call_operand.vmem [shape: f32[2,1,32], index: 16, kind: input, shape index: {}]
  %s17 = inlined_call_operand.vmem [shape: f32[2,1,32], index: 17, kind: input, shape index: {}]
  %s18 = inlined_call_operand.vmem [shape: f32[2,1,32], index: 18, kind: input, shape index: {}]
  %s19 = inlined_call_operand.hbm [shape: f32[2,8,32], index: 19, kind: output, shape index: {}]
  %s20 = sld [smem:[#allocation0]]
  $region113: #{tpu_custom_call.1} parent=0
    _
  %s22 = ssub.s32 1, %s20
  %s23 = scalar_select 0, %s22, %s20
  $region1: #{tpu_custom_call.1} parent=0
    #allocation2 [shape = 'u8[8192]{0}', space=vmem, size = 0x2000, scoped, tag = 'output window, operand 0, single buffered']
    #allocation3 [shape = 's32[2]{0}', space=sflag, size = 0x8, scoped, tag = 'scoped memory for tpu_custom_call.1']
    %24 = vsyncpa [#allocation3], 0
    loop: start=0, step=1, limit=4
    $region2: #{tpu_custom_call.1} parent=1 // loop_pre_header
      _
    $region3: #{tpu_custom_call.1} parent=1 // loop_header
      %s26 = sphi 0, %s30
      %p27 = scmp.ge.s32.totalorder %s26, 4
      %s34 = sphi 0, %s34
      %s36 = sphi 0, %s34
      %s37 = sphi 0, %s36
      %s51 = sphi 0, %s37
      %s55 = sphi 0, %s55
      %s57 = sphi 0, %s55
      %s58 = sphi 0, %s57
      %s72 = sphi 0, %s58
      %s76 = sphi 0, %s76
      %s78 = sphi 0, %s76
      %s79 = sphi 0, %s78
      %s93 = sphi 0, %s79
      %s99 = sphi 0, %s101
      %s102 = sphi 0, %s99
      %s103 = sphi 0, %s102
      %s119 = sphi 0, %s103
      %s125 = sphi 0, %s127
      %s128 = sphi 0, %s125
      %s129 = sphi 0, %s128
      %s145 = sphi 0, %s129
      %s151 = sphi 0, %s153
      %s154 = sphi 0, %s151
      %s155 = sphi 0, %s154
      %s171 = sphi 0, %s155
      %s177 = sphi 0, %s179
      %s180 = sphi 0, %s177
      %s181 = sphi 0, %s180
      %s197 = sphi 0, %s181
      %s203 = sphi 0, %s205
      %s206 = sphi 0, %s203
      %s207 = sphi 0, %s206
      %s223 = sphi 0, %s207
      %s229 = sphi 0, %s231
      %s232 = sphi 0, %s229
      %s233 = sphi 0, %s232
      %s249 = sphi 0, %s233
      %s255 = sphi 0, %s257
      %s258 = sphi 0, %s255
      %s259 = sphi 0, %s258
      %s275 = sphi 0, %s259
      %s281 = sphi 0, %s283
      %s284 = sphi 0, %s281
      %s285 = sphi 0, %s284
      %s301 = sphi 0, %s285
      %s307 = sphi 0, %s309
      %s310 = sphi 0, %s307
      %s311 = sphi 0, %s310
      %s327 = sphi 0, %s311
      %s333 = sphi 0, %s335
      %s336 = sphi 0, %s333
      %s337 = sphi 0, %s336
      %s353 = sphi 0, %s337
      %s359 = sphi 0, %s361
      %s362 = sphi 0, %s359
      %s363 = sphi 0, %s362
      %s379 = sphi 0, %s363
      %s385 = sphi 0, %s387
      %s388 = sphi 0, %s385
      %s389 = sphi 0, %s388
      %s405 = sphi 0, %s389
      %s411 = sphi 0, %s413
      %s414 = sphi 0, %s411
      %s415 = sphi 0, %s414
      %s431 = sphi 0, %s415
      %s437 = sphi 0, %s439
      %s440 = sphi 0, %s437
      %s441 = sphi 0, %s440
      %s457 = sphi 0, %s441
      %s463 = sphi 0, %s465
      %s466 = sphi 0, %s463
      %s467 = sphi 0, %s466
      %s483 = sphi 0, %s467
      %s489 = sphi 0, %s491
      %s492 = sphi 0, %s489
      %s493 = sphi 0, %s492
      %s509 = sphi 0, %s493
      %s513 = sphi 0, %s513
      %s515 = sphi 0, %s513
      %s516 = sphi 0, %s515
      %s530 = sphi 0, %s516
    $region4: #{tpu_custom_call.1} parent=1 // loop_header_branch
      %29 = sbr.rel (%p27) target = $region8
    $region5: #{tpu_custom_call.1} parent=1 // loop_body
      %s31 = ssub.s32 %s26, 1
      %s32 = ssub.s32 %s26, 2
      %s33 = sadd.s32 %s26, 1
      %s35 = sadd.s32 %s34, 1
      %p38 = scmp.eq.s32.totalorder %s26, 1
      %p39 = scmp.ne.s32.totalorder %s34, %s36
      %p40 = scmp.eq.s32.totalorder %s26, 0
      %p41 = por %p39, %p40
      %p42 = scmp.ne.s32.totalorder %s34, %s36
      %p43 = scmp.eq.s32.totalorder %s31, 1
      %p44 = por %p42, %p43
      %p45 = scmp.ne.s32.totalorder %s36, %s37
      %p46 = scmp.eq.s32.totalorder %s31, 0
      %p47 = por %p45, %p46
      %p48 = scmp.ne.s32.totalorder %s36, %s37
      %p49 = scmp.eq.s32.totalorder %s32, 1
      %p50 = por %p48, %p49
      %p52 = scmp.ne.s32.totalorder %s37, %s51
      %p53 = scmp.eq.s32.totalorder %s32, 0
      %p54 = por %p52, %p53
      %s56 = sadd.s32 %s55, 1
      %p59 = scmp.eq.s32.totalorder %s26, 1
      %p60 = scmp.ne.s32.totalorder %s55, %s57
      %p61 = scmp.eq.s32.totalorder %s26, 0
      %p62 = por %p60, %p61
      %p63 = scmp.ne.s32.totalorder %s55, %s57
      %p64 = scmp.eq.s32.totalorder %s31, 1
      %p65 = por %p63, %p64
      %p66 = scmp.ne.s32.totalorder %s57, %s58
      %p67 = scmp.eq.s32.totalorder %s31, 0
      %p68 = por %p66, %p67
      %p69 = scmp.ne.s32.totalorder %s57, %s58
      %p70 = scmp.eq.s32.totalorder %s32, 1
      %p71 = por %p69, %p70
      %p73 = scmp.ne.s32.totalorder %s58, %s72
      %p74 = scmp.eq.s32.totalorder %s32, 0
      %p75 = por %p73, %p74
      %s77 = sadd.s32 %s76, 1
      %p80 = scmp.eq.s32.totalorder %s26, 1
      %p81 = scmp.ne.s32.totalorder %s76, %s78
      %p82 = scmp.eq.s32.totalorder %s26, 0
      %p83 = por %p81, %p82
      %p84 = scmp.ne.s32.totalorder %s76, %s78
      %p85 = scmp.eq.s32.totalorder %s31, 1
      %p86 = por %p84, %p85
      %p87 = scmp.ne.s32.totalorder %s78, %s79
      %p88 = scmp.eq.s32.totalorder %s31, 0
      %p89 = por %p87, %p88
      %p90 = scmp.ne.s32.totalorder %s78, %s79
      %p91 = scmp.eq.s32.totalorder %s32, 1
      %p92 = por %p90, %p91
      %p94 = scmp.ne.s32.totalorder %s79, %s93
      %p95 = scmp.eq.s32.totalorder %s32, 0
      %p96 = por %p94, %p95
      %s97 = ssub.s32 %s26, %s33
      %p98 = scmp.eq.s32.totalorder %s97, 0
      %s100 = sadd.s32 %s99, 1
      %s101 = scalar_select %p98, %s99, %s100
      %p104 = pneg %p98
      %p105 = scmp.eq.s32.totalorder %s26, 1
      %p106 = por %p104, %p105
      %p107 = scmp.ne.s32.totalorder %s99, %s102
      %p108 = scmp.eq.s32.totalorder %s26, 0
      %p109 = por %p107, %p108
      %p110 = scmp.ne.s32.totalorder %s99, %s102
      %p111 = scmp.eq.s32.totalorder %s31, 1
      %p112 = por %p110, %p111
      %p113 = scmp.ne.s32.totalorder %s102, %s103
      %p114 = scmp.eq.s32.totalorder %s31, 0
      %p115 = por %p113, %p114
      %p116 = scmp.ne.s32.totalorder %s102, %s103
      %p117 = scmp.eq.s32.totalorder %s32, 1
      %p118 = por %p116, %p117
      %p120 = scmp.ne.s32.totalorder %s103, %s119
      %p121 = scmp.eq.s32.totalorder %s32, 0
      %p122 = por %p120, %p121
      %s123 = ssub.s32 %s26, %s33
      %p124 = scmp.eq.s32.totalorder %s123, 0
      %s126 = sadd.s32 %s125, 1
      %s127 = scalar_select %p124, %s125, %s126
      %p130 = pneg %p124
      %p131 = scmp.eq.s32.totalorder %s26, 1
      %p132 = por %p130, %p131
      %p133 = scmp.ne.s32.totalorder %s125, %s128
      %p134 = scmp.eq.s32.totalorder %s26, 0
      %p135 = por %p133, %p134
      %p136 = scmp.ne.s32.totalorder %s125, %s128
      %p137 = scmp.eq.s32.totalorder %s31, 1
      %p138 = por %p136, %p137
      %p139 = scmp.ne.s32.totalorder %s128, %s129
      %p140 = scmp.eq.s32.totalorder %s31, 0
      %p141 = por %p139, %p140
      %p142 = scmp.ne.s32.totalorder %s128, %s129
      %p143 = scmp.eq.s32.totalorder %s32, 1
      %p144 = por %p142, %p143
      %p146 = scmp.ne.s32.totalorder %s129, %s145
      %p147 = scmp.eq.s32.totalorder %s32, 0
      %p148 = por %p146, %p147
      %s149 = ssub.s32 %s26, %s33
      %p150 = scmp.eq.s32.totalorder %s149, 0
      %s152 = sadd.s32 %s151, 1
      %s153 = scalar_select %p150, %s151, %s152
      %p156 = pneg %p150
      %p157 = scmp.eq.s32.totalorder %s26, 1
      %p158 = por %p156, %p157
      %p159 = scmp.ne.s32.totalorder %s151, %s154
      %p160 = scmp.eq.s32.totalorder %s26, 0
      %p161 = por %p159, %p160
      %p162 = scmp.ne.s32.totalorder %s151, %s154
      %p163 = scmp.eq.s32.totalorder %s31, 1
      %p164 = por %p162, %p163
      %p165 = scmp.ne.s32.totalorder %s154, %s155
      %p166 = scmp.eq.s32.totalorder %s31, 0
      %p167 = por %p165, %p166
      %p168 = scmp.ne.s32.totalorder %s154, %s155
      %p169 = scmp.eq.s32.totalorder %s32, 1
      %p170 = por %p168, %p169
      %p172 = scmp.ne.s32.totalorder %s155, %s171
      %p173 = scmp.eq.s32.totalorder %s32, 0
      %p174 = por %p172, %p173
      %s175 = ssub.s32 %s26, %s33
      %p176 = scmp.eq.s32.totalorder %s175, 0
      %s178 = sadd.s32 %s177, 1
      %s179 = scalar_select %p176, %s177, %s178
      %p182 = pneg %p176
      %p183 = scmp.eq.s32.totalorder %s26, 1
      %p184 = por %p182, %p183
      %p185 = scmp.ne.s32.totalorder %s177, %s180
      %p186 = scmp.eq.s32.totalorder %s26, 0
      %p187 = por %p185, %p186
      %p188 = scmp.ne.s32.totalorder %s177, %s180
      %p189 = scmp.eq.s32.totalorder %s31, 1
      %p190 = por %p188, %p189
      %p191 = scmp.ne.s32.totalorder %s180, %s181
      %p192 = scmp.eq.s32.totalorder %s31, 0
      %p193 = por %p191, %p192
      %p194 = scmp.ne.s32.totalorder %s180, %s181
      %p195 = scmp.eq.s32.totalorder %s32, 1
      %p196 = por %p194, %p195
      %p198 = scmp.ne.s32.totalorder %s181, %s197
      %p199 = scmp.eq.s32.totalorder %s32, 0
      %p200 = por %p198, %p199
      %s201 = ssub.s32 %s26, %s33
      %p202 = scmp.eq.s32.totalorder %s201, 0
      %s204 = sadd.s32 %s203, 1
      %s205 = scalar_select %p202, %s203, %s204
      %p208 = pneg %p202
      %p209 = scmp.eq.s32.totalorder %s26, 1
      %p210 = por %p208, %p209
      %p211 = scmp.ne.s32.totalorder %s203, %s206
      %p212 = scmp.eq.s32.totalorder %s26, 0
      %p213 = por %p211, %p212
      %p214 = scmp.ne.s32.totalorder %s203, %s206
      %p215 = scmp.eq.s32.totalorder %s31, 1
      %p216 = por %p214, %p215
      %p217 = scmp.ne.s32.totalorder %s206, %s207
      %p218 = scmp.eq.s32.totalorder %s31, 0
      %p219 = por %p217, %p218
      %p220 = scmp.ne.s32.totalorder %s206, %s207
      %p221 = scmp.eq.s32.totalorder %s32, 1
      %p222 = por %p220, %p221
      %p224 = scmp.ne.s32.totalorder %s207, %s223
      %p225 = scmp.eq.s32.totalorder %s32, 0
      %p226 = por %p224, %p225
      %s227 = ssub.s32 %s26, %s33
      %p228 = scmp.eq.s32.totalorder %s227, 0
      %s230 = sadd.s32 %s229, 1
      %s231 = scalar_select %p228, %s229, %s230
      %p234 = pneg %p228
      %p235 = scmp.eq.s32.totalorder %s26, 1
      %p236 = por %p234, %p235
      %p237 = scmp.ne.s32.totalorder %s229, %s232
      %p238 = scmp.eq.s32.totalorder %s26, 0
      %p239 = por %p237, %p238
      %p240 = scmp.ne.s32.totalorder %s229, %s232
      %p241 = scmp.eq.s32.totalorder %s31, 1
      %p242 = por %p240, %p241
      %p243 = scmp.ne.s32.totalorder %s232, %s233
      %p244 = scmp.eq.s32.totalorder %s31, 0
      %p245 = por %p243, %p244
      %p246 = scmp.ne.s32.totalorder %s232, %s233
      %p247 = scmp.eq.s32.totalorder %s32, 1
      %p248 = por %p246, %p247
      %p250 = scmp.ne.s32.totalorder %s233, %s249
      %p251 = scmp.eq.s32.totalorder %s32, 0
      %p252 = por %p250, %p251
      %s253 = ssub.s32 %s26, %s33
      %p254 = scmp.eq.s32.totalorder %s253, 0
      %s256 = sadd.s32 %s255, 1
      %s257 = scalar_select %p254, %s255, %s256
      %p260 = pneg %p254
      %p261 = scmp.eq.s32.totalorder %s26, 1
      %p262 = por %p260, %p261
      %p263 = scmp.ne.s32.totalorder %s255, %s258
      %p264 = scmp.eq.s32.totalorder %s26, 0
      %p265 = por %p263, %p264
      %p266 = scmp.ne.s32.totalorder %s255, %s258
      %p267 = scmp.eq.s32.totalorder %s31, 1
      %p268 = por %p266, %p267
      %p269 = scmp.ne.s32.totalorder %s258, %s259
      %p270 = scmp.eq.s32.totalorder %s31, 0
      %p271 = por %p269, %p270
      %p272 = scmp.ne.s32.totalorder %s258, %s259
      %p273 = scmp.eq.s32.totalorder %s32, 1
      %p274 = por %p272, %p273
      %p276 = scmp.ne.s32.totalorder %s259, %s275
      %p277 = scmp.eq.s32.totalorder %s32, 0
      %p278 = por %p276, %p277
      %s279 = ssub.s32 %s26, %s33
      %p280 = scmp.eq.s32.totalorder %s279, 0
      %s282 = sadd.s32 %s281, 1
      %s283 = scalar_select %p280, %s281, %s282
      %p286 = pneg %p280
      %p287 = scmp.eq.s32.totalorder %s26, 1
      %p288 = por %p286, %p287
      %p289 = scmp.ne.s32.totalorder %s281, %s284
      %p290 = scmp.eq.s32.totalorder %s26, 0
      %p291 = por %p289, %p290
      %p292 = scmp.ne.s32.totalorder %s281, %s284
      %p293 = scmp.eq.s32.totalorder %s31, 1
      %p294 = por %p292, %p293
      %p295 = scmp.ne.s32.totalorder %s284, %s285
      %p296 = scmp.eq.s32.totalorder %s31, 0
      %p297 = por %p295, %p296
      %p298 = scmp.ne.s32.totalorder %s284, %s285
      %p299 = scmp.eq.s32.totalorder %s32, 1
      %p300 = por %p298, %p299
      %p302 = scmp.ne.s32.totalorder %s285, %s301
      %p303 = scmp.eq.s32.totalorder %s32, 0
      %p304 = por %p302, %p303
      %s305 = ssub.s32 %s26, %s33
      %p306 = scmp.eq.s32.totalorder %s305, 0
      %s308 = sadd.s32 %s307, 1
      %s309 = scalar_select %p306, %s307, %s308
      %p312 = pneg %p306
      %p313 = scmp.eq.s32.totalorder %s26, 1
      %p314 = por %p312, %p313
      %p315 = scmp.ne.s32.totalorder %s307, %s310
      %p316 = scmp.eq.s32.totalorder %s26, 0
      %p317 = por %p315, %p316
      %p318 = scmp.ne.s32.totalorder %s307, %s310
      %p319 = scmp.eq.s32.totalorder %s31, 1
      %p320 = por %p318, %p319
      %p321 = scmp.ne.s32.totalorder %s310, %s311
      %p322 = scmp.eq.s32.totalorder %s31, 0
      %p323 = por %p321, %p322
      %p324 = scmp.ne.s32.totalorder %s310, %s311
      %p325 = scmp.eq.s32.totalorder %s32, 1
      %p326 = por %p324, %p325
      %p328 = scmp.ne.s32.totalorder %s311, %s327
      %p329 = scmp.eq.s32.totalorder %s32, 0
      %p330 = por %p328, %p329
      %s331 = ssub.s32 %s26, %s33
      %p332 = scmp.eq.s32.totalorder %s331, 0
      %s334 = sadd.s32 %s333, 1
      %s335 = scalar_select %p332, %s333, %s334
      %p338 = pneg %p332
      %p339 = scmp.eq.s32.totalorder %s26, 1
      %p340 = por %p338, %p339
      %p341 = scmp.ne.s32.totalorder %s333, %s336
      %p342 = scmp.eq.s32.totalorder %s26, 0
      %p343 = por %p341, %p342
      %p344 = scmp.ne.s32.totalorder %s333, %s336
      %p345 = scmp.eq.s32.totalorder %s31, 1
      %p346 = por %p344, %p345
      %p347 = scmp.ne.s32.totalorder %s336, %s337
      %p348 = scmp.eq.s32.totalorder %s31, 0
      %p349 = por %p347, %p348
      %p350 = scmp.ne.s32.totalorder %s336, %s337
      %p351 = scmp.eq.s32.totalorder %s32, 1
      %p352 = por %p350, %p351
      %p354 = scmp.ne.s32.totalorder %s337, %s353
      %p355 = scmp.eq.s32.totalorder %s32, 0
      %p356 = por %p354, %p355
      %s357 = ssub.s32 %s26, %s33
      %p358 = scmp.eq.s32.totalorder %s357, 0
      %s360 = sadd.s32 %s359, 1
      %s361 = scalar_select %p358, %s359, %s360
      %p364 = pneg %p358
      %p365 = scmp.eq.s32.totalorder %s26, 1
      %p366 = por %p364, %p365
      %p367 = scmp.ne.s32.totalorder %s359, %s362
      %p368 = scmp.eq.s32.totalorder %s26, 0
      %p369 = por %p367, %p368
      %p370 = scmp.ne.s32.totalorder %s359, %s362
      %p371 = scmp.eq.s32.totalorder %s31, 1
      %p372 = por %p370, %p371
      %p373 = scmp.ne.s32.totalorder %s362, %s363
      %p374 = scmp.eq.s32.totalorder %s31, 0
      %p375 = por %p373, %p374
      %p376 = scmp.ne.s32.totalorder %s362, %s363
      %p377 = scmp.eq.s32.totalorder %s32, 1
      %p378 = por %p376, %p377
      %p380 = scmp.ne.s32.totalorder %s363, %s379
      %p381 = scmp.eq.s32.totalorder %s32, 0
      %p382 = por %p380, %p381
      %s383 = ssub.s32 %s26, %s33
      %p384 = scmp.eq.s32.totalorder %s383, 0
      %s386 = sadd.s32 %s385, 1
      %s387 = scalar_select %p384, %s385, %s386
      %p390 = pneg %p384
      %p391 = scmp.eq.s32.totalorder %s26, 1
      %p392 = por %p390, %p391
      %p393 = scmp.ne.s32.totalorder %s385, %s388
      %p394 = scmp.eq.s32.totalorder %s26, 0
      %p395 = por %p393, %p394
      %p396 = scmp.ne.s32.totalorder %s385, %s388
      %p397 = scmp.eq.s32.totalorder %s31, 1
      %p398 = por %p396, %p397
      %p399 = scmp.ne.s32.totalorder %s388, %s389
      %p400 = scmp.eq.s32.totalorder %s31, 0
      %p401 = por %p399, %p400
      %p402 = scmp.ne.s32.totalorder %s388, %s389
      %p403 = scmp.eq.s32.totalorder %s32, 1
      %p404 = por %p402, %p403
      %p406 = scmp.ne.s32.totalorder %s389, %s405
      %p407 = scmp.eq.s32.totalorder %s32, 0
      %p408 = por %p406, %p407
      %s409 = ssub.s32 %s26, %s33
      %p410 = scmp.eq.s32.totalorder %s409, 0
      %s412 = sadd.s32 %s411, 1
      %s413 = scalar_select %p410, %s411, %s412
      %p416 = pneg %p410
      %p417 = scmp.eq.s32.totalorder %s26, 1
      %p418 = por %p416, %p417
      %p419 = scmp.ne.s32.totalorder %s411, %s414
      %p420 = scmp.eq.s32.totalorder %s26, 0
      %p421 = por %p419, %p420
      %p422 = scmp.ne.s32.totalorder %s411, %s414
      %p423 = scmp.eq.s32.totalorder %s31, 1
      %p424 = por %p422, %p423
      %p425 = scmp.ne.s32.totalorder %s414, %s415
      %p426 = scmp.eq.s32.totalorder %s31, 0
      %p427 = por %p425, %p426
      %p428 = scmp.ne.s32.totalorder %s414, %s415
      %p429 = scmp.eq.s32.totalorder %s32, 1
      %p430 = por %p428, %p429
      %p432 = scmp.ne.s32.totalorder %s415, %s431
      %p433 = scmp.eq.s32.totalorder %s32, 0
      %p434 = por %p432, %p433
      %s435 = ssub.s32 %s26, %s33
      %p436 = scmp.eq.s32.totalorder %s435, 0
      %s438 = sadd.s32 %s437, 1
      %s439 = scalar_select %p436, %s437, %s438
      %p442 = pneg %p436
      %p443 = scmp.eq.s32.totalorder %s26, 1
      %p444 = por %p442, %p443
      %p445 = scmp.ne.s32.totalorder %s437, %s440
      %p446 = scmp.eq.s32.totalorder %s26, 0
      %p447 = por %p445, %p446
      %p448 = scmp.ne.s32.totalorder %s437, %s440
      %p449 = scmp.eq.s32.totalorder %s31, 1
      %p450 = por %p448, %p449
      %p451 = scmp.ne.s32.totalorder %s440, %s441
      %p452 = scmp.eq.s32.totalorder %s31, 0
      %p453 = por %p451, %p452
      %p454 = scmp.ne.s32.totalorder %s440, %s441
      %p455 = scmp.eq.s32.totalorder %s32, 1
      %p456 = por %p454, %p455
      %p458 = scmp.ne.s32.totalorder %s441, %s457
      %p459 = scmp.eq.s32.totalorder %s32, 0
      %p460 = por %p458, %p459
      %s461 = ssub.s32 %s26, %s33
      %p462 = scmp.eq.s32.totalorder %s461, 0
      %s464 = sadd.s32 %s463, 1
      %s465 = scalar_select %p462, %s463, %s464
      %p468 = pneg %p462
      %p469 = scmp.eq.s32.totalorder %s26, 1
      %p470 = por %p468, %p469
      %p471 = scmp.ne.s32.totalorder %s463, %s466
      %p472 = scmp.eq.s32.totalorder %s26, 0
      %p473 = por %p471, %p472
      %p474 = scmp.ne.s32.totalorder %s463, %s466
      %p475 = scmp.eq.s32.totalorder %s31, 1
      %p476 = por %p474, %p475
      %p477 = scmp.ne.s32.totalorder %s466, %s467
      %p478 = scmp.eq.s32.totalorder %s31, 0
      %p479 = por %p477, %p478
      %p480 = scmp.ne.s32.totalorder %s466, %s467
      %p481 = scmp.eq.s32.totalorder %s32, 1
      %p482 = por %p480, %p481
      %p484 = scmp.ne.s32.totalorder %s467, %s483
      %p485 = scmp.eq.s32.totalorder %s32, 0
      %p486 = por %p484, %p485
      %s487 = ssub.s32 %s26, %s33
      %p488 = scmp.eq.s32.totalorder %s487, 0
      %s490 = sadd.s32 %s489, 1
      %s491 = scalar_select %p488, %s489, %s490
      %p494 = pneg %p488
      %p495 = scmp.eq.s32.totalorder %s26, 1
      %p496 = por %p494, %p495
      %p497 = scmp.ne.s32.totalorder %s489, %s492
      %p498 = scmp.eq.s32.totalorder %s26, 0
      %p499 = por %p497, %p498
      %p500 = scmp.ne.s32.totalorder %s489, %s492
      %p501 = scmp.eq.s32.totalorder %s31, 1
      %p502 = por %p500, %p501
      %p503 = scmp.ne.s32.totalorder %s492, %s493
      %p504 = scmp.eq.s32.totalorder %s31, 0
      %p505 = por %p503, %p504
      %p506 = scmp.ne.s32.totalorder %s492, %s493
      %p507 = scmp.eq.s32.totalorder %s32, 1
      %p508 = por %p506, %p507
      %p510 = scmp.ne.s32.totalorder %s493, %s509
      %p511 = scmp.eq.s32.totalorder %s32, 0
      %p512 = por %p510, %p511
      %s514 = sadd.s32 %s513, 1
      %p517 = scmp.eq.s32.totalorder %s26, 1
      %p518 = scmp.ne.s32.totalorder %s513, %s515
      %p519 = scmp.eq.s32.totalorder %s26, 0
      %p520 = por %p518, %p519
      %p521 = scmp.ne.s32.totalorder %s513, %s515
      %p522 = scmp.eq.s32.totalorder %s31, 1
      %p523 = por %p521, %p522
      %p524 = scmp.ne.s32.totalorder %s515, %s516
      %p525 = scmp.eq.s32.totalorder %s31, 0
      %p526 = por %p524, %p525
      %p527 = scmp.ne.s32.totalorder %s515, %s516
      %p528 = scmp.eq.s32.totalorder %s32, 1
      %p529 = por %p527, %p528
      %p531 = scmp.ne.s32.totalorder %s516, %s530
      %p532 = scmp.eq.s32.totalorder %s32, 0
      %p533 = por %p531, %p532
      %p534 = scmp.le.s32.totalorder 1, %s26
      %p535 = scmp.lt.s32.totalorder %s26, 3
      %p536 = pnand %p534, %p535
      %p537 = pneg %p536
      // Predicated region
      $region9: #{tpu_custom_call.1} parent=5 // pred_check
        _
      $region10: #{tpu_custom_call.1} parent=5 // pred_check_branch
        %539 = sbr.rel (%p536) target = $region12
      $region11: #{tpu_custom_call.1} parent=5 // pred_region
        %s540 = ssub.s32 %s26, 1
        // Predicated region
        $region13: #{tpu_custom_call.1} parent=11 // pred_check
          %p541 = pneg %p47
        $region14: #{tpu_custom_call.1} parent=11 // pred_check_branch
          %543 = sbr.rel (%p541) target = $region16
        $region15: #{tpu_custom_call.1} parent=11 // pred_region
          _
        $region16: #{tpu_custom_call.1} parent=11 // pred_fallthru
          _
        // Predicated region
        $region17: #{tpu_custom_call.1} parent=11 // pred_check
          %p544 = pneg %p68
        $region18: #{tpu_custom_call.1} parent=11 // pred_check_branch
          %546 = sbr.rel (%p544) target = $region20
        $region19: #{tpu_custom_call.1} parent=11 // pred_region
          _
        $region20: #{tpu_custom_call.1} parent=11 // pred_fallthru
          _
        // Predicated region
        $region21: #{tpu_custom_call.1} parent=11 // pred_check
          %p547 = pneg %p89
        $region22: #{tpu_custom_call.1} parent=11 // pred_check_branch
          %549 = sbr.rel (%p547) target = $region24
        $region23: #{tpu_custom_call.1} parent=11 // pred_region
          _
        $region24: #{tpu_custom_call.1} parent=11 // pred_fallthru
          _
      $region12: #{tpu_custom_call.1} parent=5 // pred_fallthru
        _
      %p550 = scmp.lt.s32.totalorder %s26, 2
      // Predicated region
      $region25: #{tpu_custom_call.1} parent=5 // pred_check
        %p551 = pneg %p550
      $region26: #{tpu_custom_call.1} parent=5 // pred_check_branch
        %553 = sbr.rel (%p551) target = $region28
      $region27: #{tpu_custom_call.1} parent=5 // pred_region
        // Predicated region
        $region29: #{tpu_custom_call.1} parent=27 // pred_check
          %p554 = pneg %p109
        $region30: #{tpu_custom_call.1} parent=27 // pred_check_branch
          %556 = sbr.rel (%p554) target = $region32
        $region31: #{tpu_custom_call.1} parent=27 // pred_region
          %p557 = scmp.lt.s32.totalorder %s26, 1
          %s558 = scalar_select %p557, %s26, 1
          %s559 = smul.addr %s558, 8
          %s560 = smul.addr %s559, 8
          %s561 = scalar_lea.vmem %s3, %s560
        $region32: #{tpu_custom_call.1} parent=27 // pred_fallthru
          _
        // Predicated region
        $region33: #{tpu_custom_call.1} parent=27 // pred_check
          %p562 = pneg %p135
        $region34: #{tpu_custom_call.1} parent=27 // pred_check_branch
          %564 = sbr.rel (%p562) target = $region36
        $region35: #{tpu_custom_call.1} parent=27 // pred_region
          %p565 = scmp.lt.s32.totalorder %s26, 1
          %s566 = scalar_select %p565, %s26, 1
          %s567 = smul.addr %s566, 2
          %s568 = scalar_lea.vmem %s4, %s567
        $region36: #{tpu_custom_call.1} parent=27 // pred_fallthru
          _
        // Predicated region
        $region37: #{tpu_custom_call.1} parent=27 // pred_check
          %p569 = pneg %p161
        $region38: #{tpu_custom_call.1} parent=27 // pred_check_branch
          %571 = sbr.rel (%p569) target = $region40
        $region39: #{tpu_custom_call.1} parent=27 // pred_region
          %p572 = scmp.lt.s32.totalorder %s26, 1
          %s573 = scalar_select %p572, %s26, 1
          %s574 = smul.addr %s573, 8
          %s575 = smul.addr %s574, 8
          %s576 = scalar_lea.vmem %s5, %s575
        $region40: #{tpu_custom_call.1} parent=27 // pred_fallthru
          _
        // Predicated region
        $region41: #{tpu_custom_call.1} parent=27 // pred_check
          %p577 = pneg %p187
        $region42: #{tpu_custom_call.1} parent=27 // pred_check_branch
          %579 = sbr.rel (%p577) target = $region44
        $region43: #{tpu_custom_call.1} parent=27 // pred_region
          %p580 = scmp.lt.s32.totalorder %s26, 1
          %s581 = scalar_select %p580, %s26, 1
          %s582 = smul.addr %s581, 2
          %s583 = scalar_lea.vmem %s6, %s582
        $region44: #{tpu_custom_call.1} parent=27 // pred_fallthru
          _
        // Predicated region
        $region45: #{tpu_custom_call.1} parent=27 // pred_check
          %p584 = pneg %p213
        $region46: #{tpu_custom_call.1} parent=27 // pred_check_branch
          %586 = sbr.rel (%p584) target = $region48
        $region47: #{tpu_custom_call.1} parent=27 // pred_region
          %p587 = scmp.lt.s32.totalorder %s26, 1
          %s588 = scalar_select %p587, %s26, 1
          %s589 = smul.addr %s588, 8
          %s590 = smul.addr %s589, 8
          %s591 = scalar_lea.vmem %s7, %s590
        $region48: #{tpu_custom_call.1} parent=27 // pred_fallthru
          _
        // Predicated region
        $region49: #{tpu_custom_call.1} parent=27 // pred_check
          %p592 = pneg %p239
        $region50: #{tpu_custom_call.1} parent=27 // pred_check_branch
          %594 = sbr.rel (%p592) target = $region52
        $region51: #{tpu_custom_call.1} parent=27 // pred_region
          %p595 = scmp.lt.s32.totalorder %s26, 1
          %s596 = scalar_select %p595, %s26, 1
          %s597 = smul.addr %s596, 2
          %s598 = scalar_lea.vmem %s8, %s597
        $region52: #{tpu_custom_call.1} parent=27 // pred_fallthru
          _
        // Predicated region
        $region53: #{tpu_custom_call.1} parent=27 // pred_check
          %p599 = pneg %p265
        $region54: #{tpu_custom_call.1} parent=27 // pred_check_branch
          %601 = sbr.rel (%p599) target = $region56
        $region55: #{tpu_custom_call.1} parent=27 // pred_region
          %p602 = scmp.lt.s32.totalorder %s26, 1
          %s603 = scalar_select %p602, %s26, 1
          %s604 = smul.addr %s603, 4
          %s605 = smul.addr %s604, 8
          %s606 = scalar_lea.vmem %s9, %s605
        $region56: #{tpu_custom_call.1} parent=27 // pred_fallthru
          _
        // Predicated region
        $region57: #{tpu_custom_call.1} parent=27 // pred_check
          %p607 = pneg %p291
        $region58: #{tpu_custom_call.1} parent=27 // pred_check_branch
          %609 = sbr.rel (%p607) target = $region60
        $region59: #{tpu_custom_call.1} parent=27 // pred_region
          %p610 = scmp.lt.s32.totalorder %s26, 1
          %s611 = scalar_select %p610, %s26, 1
          %s612 = scalar_lea.vmem %s10, %s611
        $region60: #{tpu_custom_call.1} parent=27 // pred_fallthru
          _
        // Predicated region
        $region61: #{tpu_custom_call.1} parent=27 // pred_check
          %p613 = pneg %p317
        $region62: #{tpu_custom_call.1} parent=27 // pred_check_branch
          %615 = sbr.rel (%p613) target = $region64
        $region63: #{tpu_custom_call.1} parent=27 // pred_region
          %p616 = scmp.lt.s32.totalorder %s26, 1
          %s617 = scalar_select %p616, %s26, 1
          %s618 = scalar_lea.vmem %s11, %s617
        $region64: #{tpu_custom_call.1} parent=27 // pred_fallthru
          _
        // Predicated region
        $region65: #{tpu_custom_call.1} parent=27 // pred_check
          %p619 = pneg %p343
        $region66: #{tpu_custom_call.1} parent=27 // pred_check_branch
          %621 = sbr.rel (%p619) target = $region68
        $region67: #{tpu_custom_call.1} parent=27 // pred_region
          %p622 = scmp.lt.s32.totalorder %s26, 1
          %s623 = scalar_select %p622, %s26, 1
          %s624 = scalar_lea.vmem %s12, %s623
        $region68: #{tpu_custom_call.1} parent=27 // pred_fallthru
          _
        // Predicated region
        $region69: #{tpu_custom_call.1} parent=27 // pred_check
          %p625 = pneg %p369
        $region70: #{tpu_custom_call.1} parent=27 // pred_check_branch
          %627 = sbr.rel (%p625) target = $region72
        $region71: #{tpu_custom_call.1} parent=27 // pred_region
          %p628 = scmp.lt.s32.totalorder %s26, 1
          %s629 = scalar_select %p628, %s26, 1
          %s630 = smul.addr %s629, 36
          %s631 = smul.addr %s630, 8
          %s632 = scalar_lea.vmem %s13, %s631
        $region72: #{tpu_custom_call.1} parent=27 // pred_fallthru
          _
        // Predicated region
        $region73: #{tpu_custom_call.1} parent=27 // pred_check
          %p633 = pneg %p395
        $region74: #{tpu_custom_call.1} parent=27 // pred_check_branch
          %635 = sbr.rel (%p633) target = $region76
        $region75: #{tpu_custom_call.1} parent=27 // pred_region
          %p636 = scmp.lt.s32.totalorder %s26, 1
          %s637 = scalar_select %p636, %s26, 1
          %s638 = scalar_lea.vmem %s14, %s637
        $region76: #{tpu_custom_call.1} parent=27 // pred_fallthru
          _
        // Predicated region
        $region77: #{tpu_custom_call.1} parent=27 // pred_check
          %p639 = pneg %p421
        $region78: #{tpu_custom_call.1} parent=27 // pred_check_branch
          %641 = sbr.rel (%p639) target = $region80
        $region79: #{tpu_custom_call.1} parent=27 // pred_region
          %p642 = scmp.lt.s32.totalorder %s26, 1
          %s643 = scalar_select %p642, %s26, 1
          %s644 = smul.addr %s643, 8
          %s645 = smul.addr %s644, 8
          %s646 = scalar_lea.vmem %s15, %s645
        $region80: #{tpu_custom_call.1} parent=27 // pred_fallthru
          _
        // Predicated region
        $region81: #{tpu_custom_call.1} parent=27 // pred_check
          %p647 = pneg %p447
        $region82: #{tpu_custom_call.1} parent=27 // pred_check_branch
          %649 = sbr.rel (%p647) target = $region84
        $region83: #{tpu_custom_call.1} parent=27 // pred_region
          %p650 = scmp.lt.s32.totalorder %s26, 1
          %s651 = scalar_select %p650, %s26, 1
          %s652 = scalar_lea.vmem %s16, %s651
        $region84: #{tpu_custom_call.1} parent=27 // pred_fallthru
          _
        // Predicated region
        $region85: #{tpu_custom_call.1} parent=27 // pred_check
          %p653 = pneg %p473
        $region86: #{tpu_custom_call.1} parent=27 // pred_check_branch
          %655 = sbr.rel (%p653) target = $region88
        $region87: #{tpu_custom_call.1} parent=27 // pred_region
          %p656 = scmp.lt.s32.totalorder %s26, 1
          %s657 = scalar_select %p656, %s26, 1
          %s658 = scalar_lea.vmem %s17, %s657
        $region88: #{tpu_custom_call.1} parent=27 // pred_fallthru
          _
        // Predicated region
        $region89: #{tpu_custom_call.1} parent=27 // pred_check
          %p659 = pneg %p499
        $region90: #{tpu_custom_call.1} parent=27 // pred_check_branch
          %661 = sbr.rel (%p659) target = $region92
        $region91: #{tpu_custom_call.1} parent=27 // pred_region
          %p662 = scmp.lt.s32.totalorder %s26, 1
          %s663 = scalar_select %p662, %s26, 1
          %s664 = scalar_lea.vmem %s18, %s663
        $region92: #{tpu_custom_call.1} parent=27 // pred_fallthru
          _
      $region28: #{tpu_custom_call.1} parent=5 // pred_fallthru
        _
      %p665 = scmp.le.s32.totalorder 1, %s26
      %p666 = scmp.lt.s32.totalorder %s26, 3
      %p667 = pnand %p665, %p666
      %p668 = pneg %p667
      // Predicated region
      $region93: #{tpu_custom_call.1} parent=5 // pred_check
        _
      $region94: #{tpu_custom_call.1} parent=5 // pred_check_branch
        %670 = sbr.rel (%p667) target = $region96
      $region95: #{tpu_custom_call.1} parent=5 // pred_region
        %s671 = ssub.s32 %s26, 1
        %p672 = pneg %p47
        %p673 = pneg %p44
        %p674 = pneg %p68
        %p675 = pneg %p65
        %p676 = pneg %p89
        %p677 = pneg %p86
        %p678 = scmp.lt.s32.totalorder %s31, 1
        %s679 = scalar_select %p678, %s31, 1
        %s680 = smul.addr %s679, 8
        %s681 = smul.addr %s680, 8
        %s682 = scalar_lea.vmem %s3, %s681
        %p683 = pneg %p115
        %p684 = pneg %p112
        %p685 = scmp.lt.s32.totalorder %s31, 1
        %s686 = scalar_select %p685, %s31, 1
        %s687 = smul.addr %s686, 2
        %s688 = scalar_lea.vmem %s4, %s687
        %p689 = pneg %p141
        %p690 = pneg %p138
        %p691 = scmp.lt.s32.totalorder %s31, 1
        %s692 = scalar_select %p691, %s31, 1
        %s693 = smul.addr %s692, 8
        %s694 = smul.addr %s693, 8
        %s695 = scalar_lea.vmem %s5, %s694
        %p696 = pneg %p167
        %p697 = pneg %p164
        %p698 = scmp.lt.s32.totalorder %s31, 1
        %s699 = scalar_select %p698, %s31, 1
        %s700 = smul.addr %s699, 2
        %s701 = scalar_lea.vmem %s6, %s700
        %p702 = pneg %p193
        %p703 = pneg %p190
        %p704 = scmp.lt.s32.totalorder %s31, 1
        %s705 = scalar_select %p704, %s31, 1
        %s706 = smul.addr %s705, 8
        %s707 = smul.addr %s706, 8
        %s708 = scalar_lea.vmem %s7, %s707
        %p709 = pneg %p219
        %p710 = pneg %p216
        %p711 = scmp.lt.s32.totalorder %s31, 1
        %s712 = scalar_select %p711, %s31, 1
        %s713 = smul.addr %s712, 2
        %s714 = scalar_lea.vmem %s8, %s713
        %p715 = pneg %p245
        %p716 = pneg %p242
        %p717 = scmp.lt.s32.totalorder %s31, 1
        %s718 = scalar_select %p717, %s31, 1
        %s719 = smul.addr %s718, 4
        %s720 = smul.addr %s719, 8
        %s721 = scalar_lea.vmem %s9, %s720
        %p722 = pneg %p271
        %p723 = pneg %p268
        %p724 = scmp.lt.s32.totalorder %s31, 1
        %s725 = scalar_select %p724, %s31, 1
        %s726 = scalar_lea.vmem %s10, %s725
        %p727 = pneg %p297
        %p728 = pneg %p294
        %p729 = scmp.lt.s32.totalorder %s31, 1
        %s730 = scalar_select %p729, %s31, 1
        %s731 = scalar_lea.vmem %s11, %s730
        %p732 = pneg %p323
        %p733 = pneg %p320
        %p734 = scmp.lt.s32.totalorder %s31, 1
        %s735 = scalar_select %p734, %s31, 1
        %s736 = scalar_lea.vmem %s12, %s735
        %p737 = pneg %p349
        %p738 = pneg %p346
        %p739 = scmp.lt.s32.totalorder %s31, 1
        %s740 = scalar_select %p739, %s31, 1
        %s741 = smul.addr %s740, 36
        %s742 = smul.addr %s741, 8
        %s743 = scalar_lea.vmem %s13, %s742
        %p744 = pneg %p375
        %p745 = pneg %p372
        %p746 = scmp.lt.s32.totalorder %s31, 1
        %s747 = scalar_select %p746, %s31, 1
        %s748 = scalar_lea.vmem %s14, %s747
        %p749 = pneg %p401
        %p750 = pneg %p398
        %p751 = scmp.lt.s32.totalorder %s31, 1
        %s752 = scalar_select %p751, %s31, 1
        %s753 = smul.addr %s752, 8
        %s754 = smul.addr %s753, 8
        %s755 = scalar_lea.vmem %s15, %s754
        %p756 = pneg %p427
        %p757 = pneg %p424
        %p758 = scmp.lt.s32.totalorder %s31, 1
        %s759 = scalar_select %p758, %s31, 1
        %s760 = scalar_lea.vmem %s16, %s759
        %p761 = pneg %p453
        %p762 = pneg %p450
        %p763 = scmp.lt.s32.totalorder %s31, 1
        %s764 = scalar_select %p763, %s31, 1
        %s765 = scalar_lea.vmem %s17, %s764
        %p766 = pneg %p479
        %p767 = pneg %p476
        %p768 = scmp.lt.s32.totalorder %s31, 1
        %s769 = scalar_select %p768, %s31, 1
        %s770 = scalar_lea.vmem %s18, %s769
        %p771 = pneg %p505
        %p772 = pneg %p502
        %p773 = pneg %p526
        %p774 = pneg %p523
        %p775 = scmp.lt.s32.totalorder %s31, 1
        %s776 = scalar_select %p775, %s31, 1
        %s777 = smul.addr %s776, 8
        %s778 = smul.addr %s777, 8
        %s779 = scalar_lea.vmem %s3, %s778
        %p780 = scmp.lt.s32.totalorder %s31, 1
        %s781 = scalar_select %p780, %s31, 1
        %s782 = smul.addr %s781, 2
        %s783 = scalar_lea.vmem %s4, %s782
        %p784 = scmp.lt.s32.totalorder %s31, 1
        %s785 = scalar_select %p784, %s31, 1
        %s786 = smul.addr %s785, 8
        %s787 = smul.addr %s786, 8
        %s788 = scalar_lea.vmem %s5, %s787
        %p789 = scmp.lt.s32.totalorder %s31, 1
        %s790 = scalar_select %p789, %s31, 1
        %s791 = smul.addr %s790, 2
        %s792 = scalar_lea.vmem %s6, %s791
        %p793 = scmp.lt.s32.totalorder %s31, 1
        %s794 = scalar_select %p793, %s31, 1
        %s795 = smul.addr %s794, 8
        %s796 = smul.addr %s795, 8
        %s797 = scalar_lea.vmem %s7, %s796
        %p798 = scmp.lt.s32.totalorder %s31, 1
        %s799 = scalar_select %p798, %s31, 1
        %s800 = smul.addr %s799, 2
        %s801 = scalar_lea.vmem %s8, %s800
        %p802 = scmp.lt.s32.totalorder %s31, 1
        %s803 = scalar_select %p802, %s31, 1
        %s804 = smul.addr %s803, 4
        %s805 = smul.addr %s804, 8
        %s806 = scalar_lea.vmem %s9, %s805
        %p807 = scmp.lt.s32.totalorder %s31, 1
        %s808 = scalar_select %p807, %s31, 1
        %s809 = scalar_lea.vmem %s10, %s808
        %p810 = scmp.lt.s32.totalorder %s31, 1
        %s811 = scalar_select %p810, %s31, 1
        %s812 = scalar_lea.vmem %s11, %s811
        %p813 = scmp.lt.s32.totalorder %s31, 1
        %s814 = scalar_select %p813, %s31, 1
        %s815 = scalar_lea.vmem %s12, %s814
        %p816 = scmp.lt.s32.totalorder %s31, 1
        %s817 = scalar_select %p816, %s31, 1
        %s818 = smul.addr %s817, 36
        %s819 = smul.addr %s818, 8
        %s820 = scalar_lea.vmem %s13, %s819
        %p821 = scmp.lt.s32.totalorder %s31, 1
        %s822 = scalar_select %p821, %s31, 1
        %s823 = scalar_lea.vmem %s14, %s822
        %p824 = scmp.lt.s32.totalorder %s31, 1
        %s825 = scalar_select %p824, %s31, 1
        %s826 = smul.addr %s825, 8
        %s827 = smul.addr %s826, 8
        %s828 = scalar_lea.vmem %s15, %s827
        %p829 = scmp.lt.s32.totalorder %s31, 1
        %s830 = scalar_select %p829, %s31, 1
        %s831 = scalar_lea.vmem %s16, %s830
        %p832 = scmp.lt.s32.totalorder %s31, 1
        %s833 = scalar_select %p832, %s31, 1
        %s834 = scalar_lea.vmem %s17, %s833
        %p835 = scmp.lt.s32.totalorder %s31, 1
        %s836 = scalar_select %p835, %s31, 1
        %s837 = scalar_lea.vmem %s18, %s836
        %p838 = scmp.eq.s32.totalorder %s31, 0
        // Predicated region
        $region97: #{tpu_custom_call.1} parent=95 // pred_check
          %p839 = pneg %p838
        $region98: #{tpu_custom_call.1} parent=95 // pred_check_branch
          %841 = sbr.rel (%p839) target = $region100
        $region99: #{tpu_custom_call.1} parent=95 // pred_region
          %v842 = vld [vmem:[%s0] sm:$0xff]
          %v843 = vld [vmem:[%s0 + $0x8] sm:$0xff]
          %vm844 = vcmask 261120
          %845 = vst.msk [vmem:[#allocation2] sm:$0xff] %vm844, %v842
          %846 = vst.msk [vmem:[#allocation2 + $0x8] sm:$0xff] %vm844, %v843
        $region100: #{tpu_custom_call.1} parent=95 // pred_fallthru
          _
        %v847 = vld [vmem:[#allocation2] sm:$0xff]
        %v848 = vld [vmem:[#allocation2 + $0x8] sm:$0xff]
        %v849 = vld [vmem:[%s1] sm:$0x1]
        %v850 = vld [vmem:[%s1 + $0x1] sm:$0x1]
        %v853 = vlaneseq
        %v854 = vshrl.u32 %v853, 7
        %v855 = vsub.s32 0, %v854
        %v856 = vrot.slane %v849, %v855
        %v857 = vlaneseq
        %v858 = vshrl.u32 %v857, 7
        %v859 = vsub.s32 0, %v858
        %v860 = vrot.slane %v850, %v859
        %v863 = vld [vmem:[%s2] sm:$0xff]
        %v864 = vld [vmem:[%s2 + $0x8] sm:$0xff]
        %v865 = vld [vmem:[%s779] sm:$0xff]
        %v866 = vld [vmem:[%s779 + $0x8] sm:$0xff]
        %v867 = vld [vmem:[%s779 + $0x10] sm:$0xff]
        %v868 = vld [vmem:[%s779 + $0x18] sm:$0xff]
        %v869 = vld [vmem:[%s779 + $0x20] sm:$0xff]
        %v870 = vld [vmem:[%s779 + $0x28] sm:$0xff]
        %v871 = vld [vmem:[%s779 + $0x30] sm:$0xff]
        %v872 = vld [vmem:[%s779 + $0x38] sm:$0xff]
        %v873 = vld [vmem:[%s783] sm:$0x1]
        %v874 = vld [vmem:[%s783 + $0x1] sm:$0x1]
        %v875 = vld [vmem:[%s788] sm:$0xff]
        %v876 = vld [vmem:[%s788 + $0x8] sm:$0xff]
        %v877 = vld [vmem:[%s788 + $0x10] sm:$0xff]
        %v878 = vld [vmem:[%s788 + $0x18] sm:$0xff]
        %v879 = vld [vmem:[%s788 + $0x20] sm:$0xff]
        %v880 = vld [vmem:[%s788 + $0x28] sm:$0xff]
        %v881 = vld [vmem:[%s788 + $0x30] sm:$0xff]
        %v882 = vld [vmem:[%s788 + $0x38] sm:$0xff]
        %v883 = vld [vmem:[%s792] sm:$0x1]
        %v884 = vld [vmem:[%s792 + $0x1] sm:$0x1]
        %v885 = vld [vmem:[%s797] sm:$0xff]
        %v886 = vld [vmem:[%s797 + $0x8] sm:$0xff]
        %v887 = vld [vmem:[%s797 + $0x10] sm:$0xff]
        %v888 = vld [vmem:[%s797 + $0x18] sm:$0xff]
        %v889 = vld [vmem:[%s797 + $0x20] sm:$0xff]
        %v890 = vld [vmem:[%s797 + $0x28] sm:$0xff]
        %v891 = vld [vmem:[%s797 + $0x30] sm:$0xff]
        %v892 = vld [vmem:[%s797 + $0x38] sm:$0xff]
        %v893 = vld [vmem:[%s801] sm:$0x1]
        %v894 = vld [vmem:[%s801 + $0x1] sm:$0x1]
        %v895 = vld [vmem:[%s806] sm:$0xff]
        %v896 = vld [vmem:[%s806 + $0x8] sm:$0xff]
        %v897 = vld [vmem:[%s806 + $0x10] sm:$0xff]
        %v898 = vld [vmem:[%s806 + $0x18] sm:$0xff]
        %v899 = vld [vmem:[%s809] sm:$0x1]
        %v901 = vlaneseq
        %v902 = vshrl.u32 %v901, 7
        %v903 = vsub.s32 0, %v902
        %v904 = vrot.slane %v873, %v903
        %vm906 = vcmask 261120
        %v908 = vsel %vm906, %v847, 0
        %v911 = vsel %vm906, %v848, 0
        %913 = vmatprep.subr.mxu0 0.0
        %914 = vmatpush1.msra.mxu0 0.0
        %915 = vmatprep.subr.mxu0 0.0
        %916 = vmatpush1.msra.mxu0 0.0
        %917 = vmatprep.subr.mxu0 0.0
        %918 = vmatpush1.msra.mxu0 0.0
        %919 = vmatprep.subr.mxu0 0.0
        %920 = vmatpush1.msra.mxu0 0.0
        %921 = vmatprep.subr.mxu0 0.0
        %922 = vmatpush1.msra.mxu0 0.0
        %923 = vmatprep.subr.mxu0 0.0
        %924 = vmatpush1.msra.mxu0 0.0
        %925 = vmatprep.subr.mxu0 0.0
        %926 = vmatpush1.msra.mxu0 0.0
        %927 = vmatprep.subr.mxu0 0.0
        %928 = vmatpush1.msra.mxu0 0.0
        %929 = vmatprep.subr.mxu0 0.0
        %930 = vmatpush1.msra.mxu0 0.0
        %931 = vmatprep.subr.mxu0 0.0
        %932 = vmatpush1.msra.mxu0 0.0
        %933 = vmatprep.subr.mxu0 0.0
        %934 = vmatpush1.msra.mxu0 0.0
        %935 = vmatprep.subr.mxu0 0.0
        %936 = vmatpush1.msra.mxu0 0.0
        %937 = vmatprep.subr.mxu0 0.0
        %938 = vmatpush1.msra.mxu0 %v868
        %939 = vmatprep.subr.mxu0 0.0
        %940 = vmatpush1.msra.mxu0 %v867
        %941 = vmatprep.subr.mxu0 0.0
        %942 = vmatpush1.msra.mxu0 %v866
        %943 = vmatprep.subr.mxu0 0.0
        %944 = vmatpush1.msra.mxu0 %v865
        %945 = vmatprep.subr.mxu0 0.0
        %946 = vmatpush2.msra.mxu0 0.0
        %947 = vmatprep.subr.mxu0 0.0
        %948 = vmatpush2.msra.mxu0 0.0
        %949 = vmatprep.subr.mxu0 0.0
        %950 = vmatpush2.msra.mxu0 0.0
        %951 = vmatprep.subr.mxu0 0.0
        %952 = vmatpush2.msra.mxu0 0.0
        %953 = vmatprep.subr.mxu0 0.0
        %954 = vmatpush2.msra.mxu0 0.0
        %955 = vmatprep.subr.mxu0 0.0
        %956 = vmatpush2.msra.mxu0 0.0
        %957 = vmatprep.subr.mxu0 0.0
        %958 = vmatpush2.msra.mxu0 0.0
        %959 = vmatprep.subr.mxu0 0.0
        %960 = vmatpush2.msra.mxu0 0.0
        %961 = vmatprep.subr.mxu0 0.0
        %962 = vmatpush2.msra.mxu0 0.0
        %963 = vmatprep.subr.mxu0 0.0
        %964 = vmatpush2.msra.mxu0 0.0
        %965 = vmatprep.subr.mxu0 0.0
        %966 = vmatpush2.msra.mxu0 0.0
        %967 = vmatprep.subr.mxu0 0.0
        %968 = vmatpush2.msra.mxu0 0.0
        %969 = vmatprep.subr.mxu0 0.0
        %970 = vmatpush2.msra.mxu0 0.0
        %971 = vmatprep.subr.mxu0 0.0
        %972 = vmatpush2.msra.mxu0 0.0
        %973 = vmatprep.subr.mxu0 0.0
        %974 = vmatpush2.msra.mxu0 0.0
        %975 = vmatprep.subr.mxu0 0.0
        %976 = vmatpush2.msra.mxu0 0.0
        %977 = vmatprep.mubr.f32.mxu0 0.0
        %978 = vmatmul.mubr.f32.gmra.mxu0 %v908
        %v979 = vpop.f32.mrf.mxu0
        %v980 = vadd.f32 %v904, %v979
        %v981 = vpop.f32.mrf.mxu0
        %982 = vmatprep.mubr.f32.mxu0 0.0
        %983 = vmatmul.mubr.f32.gmra.mxu0 %v911
        %v984 = vpop.f32.mrf.mxu0
        %v985 = vadd.f32 %v904, %v984
        %v986 = vpop.f32.mrf.mxu0
        %987 = vdwg.mxu0
        %v989 = vlaneseq
        %v990 = vshrl.u32 %v989, 7
        %v991 = vsub.s32 0, %v990
        %v992 = vrot.slane %v883, %v991
        %994 = vmatprep.subr.mxu0 0.0
        %995 = vmatpush1.msra.mxu0 0.0
        %996 = vmatprep.subr.mxu0 0.0
        %997 = vmatpush1.msra.mxu0 0.0
        %998 = vmatprep.subr.mxu0 0.0
        %999 = vmatpush1.msra.mxu0 0.0
        %1000 = vmatprep.subr.mxu0 0.0
        %1001 = vmatpush1.msra.mxu0 0.0
        %1002 = vmatprep.subr.mxu0 0.0
        %1003 = vmatpush1.msra.mxu0 0.0
        %1004 = vmatprep.subr.mxu0 0.0
        %1005 = vmatpush1.msra.mxu0 0.0
        %1006 = vmatprep.subr.mxu0 0.0
        %1007 = vmatpush1.msra.mxu0 0.0
        %1008 = vmatprep.subr.mxu0 0.0
        %1009 = vmatpush1.msra.mxu0 0.0
        %1010 = vmatprep.subr.mxu0 0.0
        %1011 = vmatpush1.msra.mxu0 0.0
        %1012 = vmatprep.subr.mxu0 0.0
        %1013 = vmatpush1.msra.mxu0 0.0
        %1014 = vmatprep.subr.mxu0 0.0
        %1015 = vmatpush1.msra.mxu0 0.0
        %1016 = vmatprep.subr.mxu0 0.0
        %1017 = vmatpush1.msra.mxu0 0.0
        %1018 = vmatprep.subr.mxu0 0.0
        %1019 = vmatpush1.msra.mxu0 %v878
        %1020 = vmatprep.subr.mxu0 0.0
        %1021 = vmatpush1.msra.mxu0 %v877
        %1022 = vmatprep.subr.mxu0 0.0
        %1023 = vmatpush1.msra.mxu0 %v876
        %1024 = vmatprep.subr.mxu0 0.0
        %1025 = vmatpush1.msra.mxu0 %v875
        %1026 = vmatprep.subr.mxu0 0.0
        %1027 = vmatpush2.msra.mxu0 0.0
        %1028 = vmatprep.subr.mxu0 0.0
        %1029 = vmatpush2.msra.mxu0 0.0
        %1030 = vmatprep.subr.mxu0 0.0
        %1031 = vmatpush2.msra.mxu0 0.0
        %1032 = vmatprep.subr.mxu0 0.0
        %1033 = vmatpush2.msra.mxu0 0.0
        %1034 = vmatprep.subr.mxu0 0.0
        %1035 = vmatpush2.msra.mxu0 0.0
        %1036 = vmatprep.subr.mxu0 0.0
        %1037 = vmatpush2.msra.mxu0 0.0
        %1038 = vmatprep.subr.mxu0 0.0
        %1039 = vmatpush2.msra.mxu0 0.0
        %1040 = vmatprep.subr.mxu0 0.0
        %1041 = vmatpush2.msra.mxu0 0.0
        %1042 = vmatprep.subr.mxu0 0.0
        %1043 = vmatpush2.msra.mxu0 0.0
        %1044 = vmatprep.subr.mxu0 0.0
        %1045 = vmatpush2.msra.mxu0 0.0
        %1046 = vmatprep.subr.mxu0 0.0
        %1047 = vmatpush2.msra.mxu0 0.0
        %1048 = vmatprep.subr.mxu0 0.0
        %1049 = vmatpush2.msra.mxu0 0.0
        %1050 = vmatprep.subr.mxu0 0.0
        %1051 = vmatpush2.msra.mxu0 0.0
        %1052 = vmatprep.subr.mxu0 0.0
        %1053 = vmatpush2.msra.mxu0 0.0
        %1054 = vmatprep.subr.mxu0 0.0
        %1055 = vmatpush2.msra.mxu0 0.0
        %1056 = vmatprep.subr.mxu0 0.0
        %1057 = vmatpush2.msra.mxu0 0.0
        %1058 = vmatprep.mubr.f32.mxu0 0.0
        %1059 = vmatmul.mubr.f32.gmra.mxu0 %v908
        %v1060 = vpop.f32.mrf.mxu0
        %v1061 = vadd.f32 %v992, %v1060
        %v1062 = vpop.f32.mrf.mxu0
        %1063 = vmatprep.mubr.f32.mxu0 0.0
        %1064 = vmatmul.mubr.f32.gmra.mxu0 %v911
        %v1065 = vpop.f32.mrf.mxu0
        %v1066 = vadd.f32 %v992, %v1065
        %v1067 = vpop.f32.mrf.mxu0
        %1068 = vdwg.mxu0
        %v1070 = vlaneseq
        %v1071 = vshrl.u32 %v1070, 7
        %v1072 = vsub.s32 0, %v1071
        %v1073 = vrot.slane %v893, %v1072
        %1075 = vmatprep.subr.mxu0 0.0
        %1076 = vmatpush1.msra.mxu0 0.0
        %1077 = vmatprep.subr.mxu0 0.0
        %1078 = vmatpush1.msra.mxu0 0.0
        %1079 = vmatprep.subr.mxu0 0.0
        %1080 = vmatpush1.msra.mxu0 0.0
        %1081 = vmatprep.subr.mxu0 0.0
        %1082 = vmatpush1.msra.mxu0 0.0
        %1083 = vmatprep.subr.mxu0 0.0
        %1084 = vmatpush1.msra.mxu0 0.0
        %1085 = vmatprep.subr.mxu0 0.0
        %1086 = vmatpush1.msra.mxu0 0.0
        %1087 = vmatprep.subr.mxu0 0.0
        %1088 = vmatpush1.msra.mxu0 0.0
        %1089 = vmatprep.subr.mxu0 0.0
        %1090 = vmatpush1.msra.mxu0 0.0
        %1091 = vmatprep.subr.mxu0 0.0
        %1092 = vmatpush1.msra.mxu0 0.0
        %1093 = vmatprep.subr.mxu0 0.0
        %1094 = vmatpush1.msra.mxu0 0.0
        %1095 = vmatprep.subr.mxu0 0.0
        %1096 = vmatpush1.msra.mxu0 0.0
        %1097 = vmatprep.subr.mxu0 0.0
        %1098 = vmatpush1.msra.mxu0 0.0
        %1099 = vmatprep.subr.mxu0 0.0
        %1100 = vmatpush1.msra.mxu0 %v888
        %1101 = vmatprep.subr.mxu0 0.0
        %1102 = vmatpush1.msra.mxu0 %v887
        %1103 = vmatprep.subr.mxu0 0.0
        %1104 = vmatpush1.msra.mxu0 %v886
        %1105 = vmatprep.subr.mxu0 0.0
        %1106 = vmatpush1.msra.mxu0 %v885
        %1107 = vmatprep.subr.mxu0 0.0
        %1108 = vmatpush2.msra.mxu0 0.0
        %1109 = vmatprep.subr.mxu0 0.0
        %1110 = vmatpush2.msra.mxu0 0.0
        %1111 = vmatprep.subr.mxu0 0.0
        %1112 = vmatpush2.msra.mxu0 0.0
        %1113 = vmatprep.subr.mxu0 0.0
        %1114 = vmatpush2.msra.mxu0 0.0
        %1115 = vmatprep.subr.mxu0 0.0
        %1116 = vmatpush2.msra.mxu0 0.0
        %1117 = vmatprep.subr.mxu0 0.0
        %1118 = vmatpush2.msra.mxu0 0.0
        %1119 = vmatprep.subr.mxu0 0.0
        %1120 = vmatpush2.msra.mxu0 0.0
        %1121 = vmatprep.subr.mxu0 0.0
        %1122 = vmatpush2.msra.mxu0 0.0
        %1123 = vmatprep.subr.mxu0 0.0
        %1124 = vmatpush2.msra.mxu0 0.0
        %1125 = vmatprep.subr.mxu0 0.0
        %1126 = vmatpush2.msra.mxu0 0.0
        %1127 = vmatprep.subr.mxu0 0.0
        %1128 = vmatpush2.msra.mxu0 0.0
        %1129 = vmatprep.subr.mxu0 0.0
        %1130 = vmatpush2.msra.mxu0 0.0
        %1131 = vmatprep.subr.mxu0 0.0
        %1132 = vmatpush2.msra.mxu0 0.0
        %1133 = vmatprep.subr.mxu0 0.0
        %1134 = vmatpush2.msra.mxu0 0.0
        %1135 = vmatprep.subr.mxu0 0.0
        %1136 = vmatpush2.msra.mxu0 0.0
        %1137 = vmatprep.subr.mxu0 0.0
        %1138 = vmatpush2.msra.mxu0 0.0
        %1139 = vmatprep.mubr.f32.mxu0 0.0
        %1140 = vmatmul.mubr.f32.gmra.mxu0 %v908
        %v1141 = vpop.f32.mrf.mxu0
        %v1142 = vadd.f32 %v1073, %v1141
        %v1143 = vpop.f32.mrf.mxu0
        %1144 = vmatprep.mubr.f32.mxu0 0.0
        %1145 = vmatmul.mubr.f32.gmra.mxu0 %v911
        %v1146 = vpop.f32.mrf.mxu0
        %v1147 = vadd.f32 %v1073, %v1146
        %v1148 = vpop.f32.mrf.mxu0
        %1149 = vdwg.mxu0
        %vm1150 = vcmask 130048
        %v1152 = vsel %vm1150, %v980, 0
        %v1155 = vsel %vm1150, %v1061, 0
        %1157 = vmatprep.subr.mxu0 0.0
        %1158 = vmatpush1.xpose.msra.mxu0 0.0
        %1159 = vmatprep.subr.mxu0 0.0
        %1160 = vmatpush1.xpose.msra.mxu0 0.0
        %1161 = vmatprep.subr.mxu0 0.0
        %1162 = vmatpush1.xpose.msra.mxu0 0.0
        %1163 = vmatprep.subr.mxu0 0.0
        %1164 = vmatpush1.xpose.msra.mxu0 0.0
        %1165 = vmatprep.subr.mxu0 0.0
        %1166 = vmatpush1.xpose.msra.mxu0 0.0
        %1167 = vmatprep.subr.mxu0 0.0
        %1168 = vmatpush1.xpose.msra.mxu0 0.0
        %1169 = vmatprep.subr.mxu0 0.0
        %1170 = vmatpush1.xpose.msra.mxu0 0.0
        %1171 = vmatprep.subr.mxu0 0.0
        %1172 = vmatpush1.xpose.msra.mxu0 0.0
        %1173 = vmatprep.subr.mxu0 0.0
        %1174 = vmatpush1.xpose.msra.mxu0 0.0
        %1175 = vmatprep.subr.mxu0 0.0
        %1176 = vmatpush1.xpose.msra.mxu0 0.0
        %1177 = vmatprep.subr.mxu0 0.0
        %1178 = vmatpush1.xpose.msra.mxu0 0.0
        %1179 = vmatprep.subr.mxu0 0.0
        %1180 = vmatpush1.xpose.msra.mxu0 0.0
        %1181 = vmatprep.subr.mxu0 0.0
        %1182 = vmatpush1.xpose.msra.mxu0 0.0
        %1183 = vmatprep.subr.mxu0 0.0
        %1184 = vmatpush1.xpose.msra.mxu0 0.0
        %1185 = vmatprep.subr.mxu0 0.0
        %1186 = vmatpush1.xpose.msra.mxu0 0.0
        %1187 = vmatprep.subr.mxu0 0.0
        %1188 = vmatpush1.xpose.msra.mxu0 %v1155
        %1189 = vmatprep.subr.mxu0 0.0
        %1190 = vmatpush2.xpose.msra.mxu0 0.0
        %1191 = vmatprep.subr.mxu0 0.0
        %1192 = vmatpush2.xpose.msra.mxu0 0.0
        %1193 = vmatprep.subr.mxu0 0.0
        %1194 = vmatpush2.xpose.msra.mxu0 0.0
        %1195 = vmatprep.subr.mxu0 0.0
        %1196 = vmatpush2.xpose.msra.mxu0 0.0
        %1197 = vmatprep.subr.mxu0 0.0
        %1198 = vmatpush2.xpose.msra.mxu0 0.0
        %1199 = vmatprep.subr.mxu0 0.0
        %1200 = vmatpush2.xpose.msra.mxu0 0.0
        %1201 = vmatprep.subr.mxu0 0.0
        %1202 = vmatpush2.xpose.msra.mxu0 0.0
        %1203 = vmatprep.subr.mxu0 0.0
        %1204 = vmatpush2.xpose.msra.mxu0 0.0
        %1205 = vmatprep.subr.mxu0 0.0
        %1206 = vmatpush2.xpose.msra.mxu0 0.0
        %1207 = vmatprep.subr.mxu0 0.0
        %1208 = vmatpush2.xpose.msra.mxu0 0.0
        %1209 = vmatprep.subr.mxu0 0.0
        %1210 = vmatpush2.xpose.msra.mxu0 0.0
        %1211 = vmatprep.subr.mxu0 0.0
        %1212 = vmatpush2.xpose.msra.mxu0 0.0
        %1213 = vmatprep.subr.mxu0 0.0
        %1214 = vmatpush2.xpose.msra.mxu0 0.0
        %1215 = vmatprep.subr.mxu0 0.0
        %1216 = vmatpush2.xpose.msra.mxu0 0.0
        %1217 = vmatprep.subr.mxu0 0.0
        %1218 = vmatpush2.xpose.msra.mxu0 0.0
        %1219 = vmatprep.subr.mxu0 0.0
        %1220 = vmatpush2.xpose.msra.mxu0 0.0
        %1221 = vmatprep.mubr.f32.mxu0 0.0
        %1222 = vmatmul.mubr.f32.gmra.mxu0 %v1152
        %v1223 = vpop.f32.mrf.mxu0
        %v1224 = vadd.f32 %v856, %v1223
        %v1225 = vpop.f32.mrf.mxu0
        %1226 = vdwg.mxu0
        %v1228 = vsel %vm1150, %v985, 0
        %v1231 = vsel %vm1150, %v1066, 0
        %1233 = vmatprep.subr.mxu0 0.0
        %1234 = vmatpush1.xpose.msra.mxu0 0.0
        %1235 = vmatprep.subr.mxu0 0.0
        %1236 = vmatpush1.xpose.msra.mxu0 0.0
        %1237 = vmatprep.subr.mxu0 0.0
        %1238 = vmatpush1.xpose.msra.mxu0 0.0
        %1239 = vmatprep.subr.mxu0 0.0
        %1240 = vmatpush1.xpose.msra.mxu0 0.0
        %1241 = vmatprep.subr.mxu0 0.0
        %1242 = vmatpush1.xpose.msra.mxu0 0.0
        %1243 = vmatprep.subr.mxu0 0.0
        %1244 = vmatpush1.xpose.msra.mxu0 0.0
        %1245 = vmatprep.subr.mxu0 0.0
        %1246 = vmatpush1.xpose.msra.mxu0 0.0
        %1247 = vmatprep.subr.mxu0 0.0
        %1248 = vmatpush1.xpose.msra.mxu0 0.0
        %1249 = vmatprep.subr.mxu0 0.0
        %1250 = vmatpush1.xpose.msra.mxu0 0.0
        %1251 = vmatprep.subr.mxu0 0.0
        %1252 = vmatpush1.xpose.msra.mxu0 0.0
        %1253 = vmatprep.subr.mxu0 0.0
        %1254 = vmatpush1.xpose.msra.mxu0 0.0
        %1255 = vmatprep.subr.mxu0 0.0
        %1256 = vmatpush1.xpose.msra.mxu0 0.0
        %1257 = vmatprep.subr.mxu0 0.0
        %1258 = vmatpush1.xpose.msra.mxu0 0.0
        %1259 = vmatprep.subr.mxu0 0.0
        %1260 = vmatpush1.xpose.msra.mxu0 0.0
        %1261 = vmatprep.subr.mxu0 0.0
        %1262 = vmatpush1.xpose.msra.mxu0 0.0
        %1263 = vmatprep.subr.mxu0 0.0
        %1264 = vmatpush1.xpose.msra.mxu0 %v1231
        %1265 = vmatprep.subr.mxu0 0.0
        %1266 = vmatpush2.xpose.msra.mxu0 0.0
        %1267 = vmatprep.subr.mxu0 0.0
        %1268 = vmatpush2.xpose.msra.mxu0 0.0
        %1269 = vmatprep.subr.mxu0 0.0
        %1270 = vmatpush2.xpose.msra.mxu0 0.0
        %1271 = vmatprep.subr.mxu0 0.0
        %1272 = vmatpush2.xpose.msra.mxu0 0.0
        %1273 = vmatprep.subr.mxu0 0.0
        %1274 = vmatpush2.xpose.msra.mxu0 0.0
        %1275 = vmatprep.subr.mxu0 0.0
        %1276 = vmatpush2.xpose.msra.mxu0 0.0
        %1277 = vmatprep.subr.mxu0 0.0
        %1278 = vmatpush2.xpose.msra.mxu0 0.0
        %1279 = vmatprep.subr.mxu0 0.0
        %1280 = vmatpush2.xpose.msra.mxu0 0.0
        %1281 = vmatprep.subr.mxu0 0.0
        %1282 = vmatpush2.xpose.msra.mxu0 0.0
        %1283 = vmatprep.subr.mxu0 0.0
        %1284 = vmatpush2.xpose.msra.mxu0 0.0
        %1285 = vmatprep.subr.mxu0 0.0
        %1286 = vmatpush2.xpose.msra.mxu0 0.0
        %1287 = vmatprep.subr.mxu0 0.0
        %1288 = vmatpush2.xpose.msra.mxu0 0.0
        %1289 = vmatprep.subr.mxu0 0.0
        %1290 = vmatpush2.xpose.msra.mxu0 0.0
        %1291 = vmatprep.subr.mxu0 0.0
        %1292 = vmatpush2.xpose.msra.mxu0 0.0
        %1293 = vmatprep.subr.mxu0 0.0
        %1294 = vmatpush2.xpose.msra.mxu0 0.0
        %1295 = vmatprep.subr.mxu0 0.0
        %1296 = vmatpush2.xpose.msra.mxu0 0.0
        %1297 = vmatprep.mubr.f32.mxu0 0.0
        %1298 = vmatmul.mubr.f32.gmra.mxu0 %v1228
        %v1299 = vpop.f32.mrf.mxu0
        %v1300 = vadd.f32 %v860, %v1299
        %v1301 = vpop.f32.mrf.mxu0
        %1302 = vdwg.mxu0
        %vm1303 = vcmask 64512
        %v1304 = vsel %vm1303, %v1224, -inf
        %1305 = vmax.xlane.f32.xlu0 %v1304
        %v1306 = vpop.xlane.xlu0 %1305
        %v1307 = vsel %vm1303, %v1300, -inf
        %1308 = vmax.xlane.f32.xlu0 %v1307
        %v1309 = vpop.xlane.xlu0 %1308
        %v1310 = vsub.f32 %v1224, %v1306
        %v1311 = vsub.f32 %v1300, %v1309
        %v1312 = vmul.f32 %v1310, 1.442695
        %v1313 = vpow.pop %v1312
        %v1314 = vmul.f32 %v1311, 1.442695
        %v1315 = vpow.pop %v1314
        %v1316 = vsel %vm1303, %v1313, 0.0
        %1317 = vadd.xlane.f32.xlu0 %v1316
        %v1318 = vpop.xlane.xlu0 %1317
        %v1319 = vsel %vm1303, %v1315, 0.0
        %1320 = vadd.xlane.f32.xlu0 %v1319
        %v1321 = vpop.xlane.xlu0 %1320
        %v1322 = vrcp.pop %v1318
        %v1323 = vmul.f32 %v1313, %v1322
        %v1324 = vrcp.pop %v1321
        %v1325 = vmul.f32 %v1315, %v1324
        %v1327 = vsel %vm1303, %v1323, 0
        %1329 = vmatprep.subr.mxu0 0.0
        %1330 = vmatpush1.msra.mxu0 0.0
        %1331 = vmatprep.subr.mxu0 0.0
        %1332 = vmatpush1.msra.mxu0 0.0
        %1333 = vmatprep.subr.mxu0 0.0
        %1334 = vmatpush1.msra.mxu0 0.0
        %1335 = vmatprep.subr.mxu0 0.0
        %1336 = vmatpush1.msra.mxu0 0.0
        %1337 = vmatprep.subr.mxu0 0.0
        %1338 = vmatpush1.msra.mxu0 0.0
        %1339 = vmatprep.subr.mxu0 0.0
        %1340 = vmatpush1.msra.mxu0 0.0
        %1341 = vmatprep.subr.mxu0 0.0
        %1342 = vmatpush1.msra.mxu0 0.0
        %1343 = vmatprep.subr.mxu0 0.0
        %1344 = vmatpush1.msra.mxu0 0.0
        %1345 = vmatprep.subr.mxu0 0.0
        %1346 = vmatpush1.msra.mxu0 0.0
        %1347 = vmatprep.subr.mxu0 0.0
        %1348 = vmatpush1.msra.mxu0 0.0
        %1349 = vmatprep.subr.mxu0 0.0
        %1350 = vmatpush1.msra.mxu0 0.0
        %1351 = vmatprep.subr.mxu0 0.0
        %1352 = vmatpush1.msra.mxu0 0.0
        %1353 = vmatprep.subr.mxu0 0.0
        %1354 = vmatpush1.msra.mxu0 0.0
        %1355 = vmatprep.subr.mxu0 0.0
        %1356 = vmatpush1.msra.mxu0 0.0
        %1357 = vmatprep.subr.mxu0 0.0
        %1358 = vmatpush1.msra.mxu0 0.0
        %1359 = vmatprep.subr.mxu0 0.0
        %1360 = vmatpush1.msra.mxu0 %v1142
        %1361 = vmatprep.subr.mxu0 0.0
        %1362 = vmatpush2.msra.mxu0 0.0
        %1363 = vmatprep.subr.mxu0 0.0
        %1364 = vmatpush2.msra.mxu0 0.0
        %1365 = vmatprep.subr.mxu0 0.0
        %1366 = vmatpush2.msra.mxu0 0.0
        %1367 = vmatprep.subr.mxu0 0.0
        %1368 = vmatpush2.msra.mxu0 0.0
        %1369 = vmatprep.subr.mxu0 0.0
        %1370 = vmatpush2.msra.mxu0 0.0
        %1371 = vmatprep.subr.mxu0 0.0
        %1372 = vmatpush2.msra.mxu0 0.0
        %1373 = vmatprep.subr.mxu0 0.0
        %1374 = vmatpush2.msra.mxu0 0.0
        %1375 = vmatprep.subr.mxu0 0.0
        %1376 = vmatpush2.msra.mxu0 0.0
        %1377 = vmatprep.subr.mxu0 0.0
        %1378 = vmatpush2.msra.mxu0 0.0
        %1379 = vmatprep.subr.mxu0 0.0
        %1380 = vmatpush2.msra.mxu0 0.0
        %1381 = vmatprep.subr.mxu0 0.0
        %1382 = vmatpush2.msra.mxu0 0.0
        %1383 = vmatprep.subr.mxu0 0.0
        %1384 = vmatpush2.msra.mxu0 0.0
        %1385 = vmatprep.subr.mxu0 0.0
        %1386 = vmatpush2.msra.mxu0 0.0
        %1387 = vmatprep.subr.mxu0 0.0
        %1388 = vmatpush2.msra.mxu0 0.0
        %1389 = vmatprep.subr.mxu0 0.0
        %1390 = vmatpush2.msra.mxu0 0.0
        %1391 = vmatprep.subr.mxu0 0.0
        %1392 = vmatpush2.msra.mxu0 0.0
        %1393 = vmatprep.mubr.f32.mxu0 0.0
        %1394 = vmatmul.mubr.f32.gmra.mxu0 %v1327
        %v1395 = vpop.f32.mrf.mxu0
        %v1396 = vadd.f32 0.0, %v1395
        %v1397 = vpop.f32.mrf.mxu0
        %1398 = vdwg.mxu0
        %v1400 = vsel %vm1303, %v1325, 0
        %1402 = vmatprep.subr.mxu0 0.0
        %1403 = vmatpush1.msra.mxu0 0.0
        %1404 = vmatprep.subr.mxu0 0.0
        %1405 = vmatpush1.msra.mxu0 0.0
        %1406 = vmatprep.subr.mxu0 0.0
        %1407 = vmatpush1.msra.mxu0 0.0
        %1408 = vmatprep.subr.mxu0 0.0
        %1409 = vmatpush1.msra.mxu0 0.0
        %1410 = vmatprep.subr.mxu0 0.0
        %1411 = vmatpush1.msra.mxu0 0.0
        %1412 = vmatprep.subr.mxu0 0.0
        %1413 = vmatpush1.msra.mxu0 0.0
        %1414 = vmatprep.subr.mxu0 0.0
        %1415 = vmatpush1.msra.mxu0 0.0
        %1416 = vmatprep.subr.mxu0 0.0
        %1417 = vmatpush1.msra.mxu0 0.0
        %1418 = vmatprep.subr.mxu0 0.0
        %1419 = vmatpush1.msra.mxu0 0.0
        %1420 = vmatprep.subr.mxu0 0.0
        %1421 = vmatpush1.msra.mxu0 0.0
        %1422 = vmatprep.subr.mxu0 0.0
        %1423 = vmatpush1.msra.mxu0 0.0
        %1424 = vmatprep.subr.mxu0 0.0
        %1425 = vmatpush1.msra.mxu0 0.0
        %1426 = vmatprep.subr.mxu0 0.0
        %1427 = vmatpush1.msra.mxu0 0.0
        %1428 = vmatprep.subr.mxu0 0.0
        %1429 = vmatpush1.msra.mxu0 0.0
        %1430 = vmatprep.subr.mxu0 0.0
        %1431 = vmatpush1.msra.mxu0 0.0
        %1432 = vmatprep.subr.mxu0 0.0
        %1433 = vmatpush1.msra.mxu0 %v1147
        %1434 = vmatprep.subr.mxu0 0.0
        %1435 = vmatpush2.msra.mxu0 0.0
        %1436 = vmatprep.subr.mxu0 0.0
        %1437 = vmatpush2.msra.mxu0 0.0
        %1438 = vmatprep.subr.mxu0 0.0
        %1439 = vmatpush2.msra.mxu0 0.0
        %1440 = vmatprep.subr.mxu0 0.0
        %1441 = vmatpush2.msra.mxu0 0.0
        %1442 = vmatprep.subr.mxu0 0.0
        %1443 = vmatpush2.msra.mxu0 0.0
        %1444 = vmatprep.subr.mxu0 0.0
        %1445 = vmatpush2.msra.mxu0 0.0
        %1446 = vmatprep.subr.mxu0 0.0
        %1447 = vmatpush2.msra.mxu0 0.0
        %1448 = vmatprep.subr.mxu0 0.0
        %1449 = vmatpush2.msra.mxu0 0.0
        %1450 = vmatprep.subr.mxu0 0.0
        %1451 = vmatpush2.msra.mxu0 0.0
        %1452 = vmatprep.subr.mxu0 0.0
        %1453 = vmatpush2.msra.mxu0 0.0
        %1454 = vmatprep.subr.mxu0 0.0
        %1455 = vmatpush2.msra.mxu0 0.0
        %1456 = vmatprep.subr.mxu0 0.0
        %1457 = vmatpush2.msra.mxu0 0.0
        %1458 = vmatprep.subr.mxu0 0.0
        %1459 = vmatpush2.msra.mxu0 0.0
        %1460 = vmatprep.subr.mxu0 0.0
        %1461 = vmatpush2.msra.mxu0 0.0
        %1462 = vmatprep.subr.mxu0 0.0
        %1463 = vmatpush2.msra.mxu0 0.0
        %1464 = vmatprep.subr.mxu0 0.0
        %1465 = vmatpush2.msra.mxu0 0.0
        %1466 = vmatprep.mubr.f32.mxu0 0.0
        %1467 = vmatmul.mubr.f32.gmra.mxu0 %v1400
        %v1468 = vpop.f32.mrf.mxu0
        %v1469 = vadd.f32 0.0, %v1468
        %v1470 = vpop.f32.mrf.mxu0
        %1471 = vdwg.mxu0
        %v1473 = vlaneseq
        %v1474 = vshrl.u32 %v1473, 7
        %v1475 = vsub.s32 0, %v1474
        %v1476 = vrot.slane %v874, %v1475
        %1478 = vmatprep.subr.mxu0 0.0
        %1479 = vmatpush1.msra.mxu0 0.0
        %1480 = vmatprep.subr.mxu0 0.0
        %1481 = vmatpush1.msra.mxu0 0.0
        %1482 = vmatprep.subr.mxu0 0.0
        %1483 = vmatpush1.msra.mxu0 0.0
        %1484 = vmatprep.subr.mxu0 0.0
        %1485 = vmatpush1.msra.mxu0 0.0
        %1486 = vmatprep.subr.mxu0 0.0
        %1487 = vmatpush1.msra.mxu0 0.0
        %1488 = vmatprep.subr.mxu0 0.0
        %1489 = vmatpush1.msra.mxu0 0.0
        %1490 = vmatprep.subr.mxu0 0.0
        %1491 = vmatpush1.msra.mxu0 0.0
        %1492 = vmatprep.subr.mxu0 0.0
        %1493 = vmatpush1.msra.mxu0 0.0
        %1494 = vmatprep.subr.mxu0 0.0
        %1495 = vmatpush1.msra.mxu0 0.0
        %1496 = vmatprep.subr.mxu0 0.0
        %1497 = vmatpush1.msra.mxu0 0.0
        %1498 = vmatprep.subr.mxu0 0.0
        %1499 = vmatpush1.msra.mxu0 0.0
        %1500 = vmatprep.subr.mxu0 0.0
        %1501 = vmatpush1.msra.mxu0 0.0
        %1502 = vmatprep.subr.mxu0 0.0
        %1503 = vmatpush1.msra.mxu0 %v872
        %1504 = vmatprep.subr.mxu0 0.0
        %1505 = vmatpush1.msra.mxu0 %v871
        %1506 = vmatprep.subr.mxu0 0.0
        %1507 = vmatpush1.msra.mxu0 %v870
        %1508 = vmatprep.subr.mxu0 0.0
        %1509 = vmatpush1.msra.mxu0 %v869
        %1510 = vmatprep.subr.mxu0 0.0
        %1511 = vmatpush2.msra.mxu0 0.0
        %1512 = vmatprep.subr.mxu0 0.0
        %1513 = vmatpush2.msra.mxu0 0.0
        %1514 = vmatprep.subr.mxu0 0.0
        %1515 = vmatpush2.msra.mxu0 0.0
        %1516 = vmatprep.subr.mxu0 0.0
        %1517 = vmatpush2.msra.mxu0 0.0
        %1518 = vmatprep.subr.mxu0 0.0
        %1519 = vmatpush2.msra.mxu0 0.0
        %1520 = vmatprep.subr.mxu0 0.0
        %1521 = vmatpush2.msra.mxu0 0.0
        %1522 = vmatprep.subr.mxu0 0.0
        %1523 = vmatpush2.msra.mxu0 0.0
        %1524 = vmatprep.subr.mxu0 0.0
        %1525 = vmatpush2.msra.mxu0 0.0
        %1526 = vmatprep.subr.mxu0 0.0
        %1527 = vmatpush2.msra.mxu0 0.0
        %1528 = vmatprep.subr.mxu0 0.0
        %1529 = vmatpush2.msra.mxu0 0.0
        %1530 = vmatprep.subr.mxu0 0.0
        %1531 = vmatpush2.msra.mxu0 0.0
        %1532 = vmatprep.subr.mxu0 0.0
        %1533 = vmatpush2.msra.mxu0 0.0
        %1534 = vmatprep.subr.mxu0 0.0
        %1535 = vmatpush2.msra.mxu0 0.0
        %1536 = vmatprep.subr.mxu0 0.0
        %1537 = vmatpush2.msra.mxu0 0.0
        %1538 = vmatprep.subr.mxu0 0.0
        %1539 = vmatpush2.msra.mxu0 0.0
        %1540 = vmatprep.subr.mxu0 0.0
        %1541 = vmatpush2.msra.mxu0 0.0
        %1542 = vmatprep.mubr.f32.mxu0 0.0
        %1543 = vmatmul.mubr.f32.gmra.mxu0 %v908
        %v1544 = vpop.f32.mrf.mxu0
        %v1545 = vadd.f32 %v1476, %v1544
        %v1546 = vpop.f32.mrf.mxu0
        %1547 = vmatprep.mubr.f32.mxu0 0.0
        %1548 = vmatmul.mubr.f32.gmra.mxu0 %v911
        %v1549 = vpop.f32.mrf.mxu0
        %v1550 = vadd.f32 %v1476, %v1549
        %v1551 = vpop.f32.mrf.mxu0
        %1552 = vdwg.mxu0
        %v1554 = vlaneseq
        %v1555 = vshrl.u32 %v1554, 7
        %v1556 = vsub.s32 0, %v1555
        %v1557 = vrot.slane %v884, %v1556
        %1559 = vmatprep.subr.mxu0 0.0
        %1560 = vmatpush1.msra.mxu0 0.0
        %1561 = vmatprep.subr.mxu0 0.0
        %1562 = vmatpush1.msra.mxu0 0.0
        %1563 = vmatprep.subr.mxu0 0.0
        %1564 = vmatpush1.msra.mxu0 0.0
        %1565 = vmatprep.subr.mxu0 0.0
        %1566 = vmatpush1.msra.mxu0 0.0
        %1567 = vmatprep.subr.mxu0 0.0
        %1568 = vmatpush1.msra.mxu0 0.0
        %1569 = vmatprep.subr.mxu0 0.0
        %1570 = vmatpush1.msra.mxu0 0.0
        %1571 = vmatprep.subr.mxu0 0.0
        %1572 = vmatpush1.msra.mxu0 0.0
        %1573 = vmatprep.subr.mxu0 0.0
        %1574 = vmatpush1.msra.mxu0 0.0
        %1575 = vmatprep.subr.mxu0 0.0
        %1576 = vmatpush1.msra.mxu0 0.0
        %1577 = vmatprep.subr.mxu0 0.0
        %1578 = vmatpush1.msra.mxu0 0.0
        %1579 = vmatprep.subr.mxu0 0.0
        %1580 = vmatpush1.msra.mxu0 0.0
        %1581 = vmatprep.subr.mxu0 0.0
        %1582 = vmatpush1.msra.mxu0 0.0
        %1583 = vmatprep.subr.mxu0 0.0
        %1584 = vmatpush1.msra.mxu0 %v882
        %1585 = vmatprep.subr.mxu0 0.0
        %1586 = vmatpush1.msra.mxu0 %v881
        %1587 = vmatprep.subr.mxu0 0.0
        %1588 = vmatpush1.msra.mxu0 %v880
        %1589 = vmatprep.subr.mxu0 0.0
        %1590 = vmatpush1.msra.mxu0 %v879
        %1591 = vmatprep.subr.mxu0 0.0
        %1592 = vmatpush2.msra.mxu0 0.0
        %1593 = vmatprep.subr.mxu0 0.0
        %1594 = vmatpush2.msra.mxu0 0.0
        %1595 = vmatprep.subr.mxu0 0.0
        %1596 = vmatpush2.msra.mxu0 0.0
        %1597 = vmatprep.subr.mxu0 0.0
        %1598 = vmatpush2.msra.mxu0 0.0
        %1599 = vmatprep.subr.mxu0 0.0
        %1600 = vmatpush2.msra.mxu0 0.0
        %1601 = vmatprep.subr.mxu0 0.0
        %1602 = vmatpush2.msra.mxu0 0.0
        %1603 = vmatprep.subr.mxu0 0.0
        %1604 = vmatpush2.msra.mxu0 0.0
        %1605 = vmatprep.subr.mxu0 0.0
        %1606 = vmatpush2.msra.mxu0 0.0
        %1607 = vmatprep.subr.mxu0 0.0
        %1608 = vmatpush2.msra.mxu0 0.0
        %1609 = vmatprep.subr.mxu0 0.0
        %1610 = vmatpush2.msra.mxu0 0.0
        %1611 = vmatprep.subr.mxu0 0.0
        %1612 = vmatpush2.msra.mxu0 0.0
        %1613 = vmatprep.subr.mxu0 0.0
        %1614 = vmatpush2.msra.mxu0 0.0
        %1615 = vmatprep.subr.mxu0 0.0
        %1616 = vmatpush2.msra.mxu0 0.0
        %1617 = vmatprep.subr.mxu0 0.0
        %1618 = vmatpush2.msra.mxu0 0.0
        %1619 = vmatprep.subr.mxu0 0.0
        %1620 = vmatpush2.msra.mxu0 0.0
        %1621 = vmatprep.subr.mxu0 0.0
        %1622 = vmatpush2.msra.mxu0 0.0
        %1623 = vmatprep.mubr.f32.mxu0 0.0
        %1624 = vmatmul.mubr.f32.gmra.mxu0 %v908
        %v1625 = vpop.f32.mrf.mxu0
        %v1626 = vadd.f32 %v1557, %v1625
        %v1627 = vpop.f32.mrf.mxu0
        %1628 = vmatprep.mubr.f32.mxu0 0.0
        %1629 = vmatmul.mubr.f32.gmra.mxu0 %v911
        %v1630 = vpop.f32.mrf.mxu0
        %v1631 = vadd.f32 %v1557, %v1630
        %v1632 = vpop.f32.mrf.mxu0
        %1633 = vdwg.mxu0
        %v1635 = vlaneseq
        %v1636 = vshrl.u32 %v1635, 7
        %v1637 = vsub.s32 0, %v1636
        %v1638 = vrot.slane %v894, %v1637
        %1640 = vmatprep.subr.mxu0 0.0
        %1641 = vmatpush1.msra.mxu0 0.0
        %1642 = vmatprep.subr.mxu0 0.0
        %1643 = vmatpush1.msra.mxu0 0.0
        %1644 = vmatprep.subr.mxu0 0.0
        %1645 = vmatpush1.msra.mxu0 0.0
        %1646 = vmatprep.subr.mxu0 0.0
        %1647 = vmatpush1.msra.mxu0 0.0
        %1648 = vmatprep.subr.mxu0 0.0
        %1649 = vmatpush1.msra.mxu0 0.0
        %1650 = vmatprep.subr.mxu0 0.0
        %1651 = vmatpush1.msra.mxu0 0.0
        %1652 = vmatprep.subr.mxu0 0.0
        %1653 = vmatpush1.msra.mxu0 0.0
        %1654 = vmatprep.subr.mxu0 0.0
        %1655 = vmatpush1.msra.mxu0 0.0
        %1656 = vmatprep.subr.mxu0 0.0
        %1657 = vmatpush1.msra.mxu0 0.0
        %1658 = vmatprep.subr.mxu0 0.0
        %1659 = vmatpush1.msra.mxu0 0.0
        %1660 = vmatprep.subr.mxu0 0.0
        %1661 = vmatpush1.msra.mxu0 0.0
        %1662 = vmatprep.subr.mxu0 0.0
        %1663 = vmatpush1.msra.mxu0 0.0
        %1664 = vmatprep.subr.mxu0 0.0
        %1665 = vmatpush1.msra.mxu0 %v892
        %1666 = vmatprep.subr.mxu0 0.0
        %1667 = vmatpush1.msra.mxu0 %v891
        %1668 = vmatprep.subr.mxu0 0.0
        %1669 = vmatpush1.msra.mxu0 %v890
        %1670 = vmatprep.subr.mxu0 0.0
        %1671 = vmatpush1.msra.mxu0 %v889
        %1672 = vmatprep.subr.mxu0 0.0
        %1673 = vmatpush2.msra.mxu0 0.0
        %1674 = vmatprep.subr.mxu0 0.0
        %1675 = vmatpush2.msra.mxu0 0.0
        %1676 = vmatprep.subr.mxu0 0.0
        %1677 = vmatpush2.msra.mxu0 0.0
        %1678 = vmatprep.subr.mxu0 0.0
        %1679 = vmatpush2.msra.mxu0 0.0
        %1680 = vmatprep.subr.mxu0 0.0
        %1681 = vmatpush2.msra.mxu0 0.0
        %1682 = vmatprep.subr.mxu0 0.0
        %1683 = vmatpush2.msra.mxu0 0.0
        %1684 = vmatprep.subr.mxu0 0.0
        %1685 = vmatpush2.msra.mxu0 0.0
        %1686 = vmatprep.subr.mxu0 0.0
        %1687 = vmatpush2.msra.mxu0 0.0
        %1688 = vmatprep.subr.mxu0 0.0
        %1689 = vmatpush2.msra.mxu0 0.0
        %1690 = vmatprep.subr.mxu0 0.0
        %1691 = vmatpush2.msra.mxu0 0.0
        %1692 = vmatprep.subr.mxu0 0.0
        %1693 = vmatpush2.msra.mxu0 0.0
        %1694 = vmatprep.subr.mxu0 0.0
        %1695 = vmatpush2.msra.mxu0 0.0
        %1696 = vmatprep.subr.mxu0 0.0
        %1697 = vmatpush2.msra.mxu0 0.0
        %1698 = vmatprep.subr.mxu0 0.0
        %1699 = vmatpush2.msra.mxu0 0.0
        %1700 = vmatprep.subr.mxu0 0.0
        %1701 = vmatpush2.msra.mxu0 0.0
        %1702 = vmatprep.subr.mxu0 0.0
        %1703 = vmatpush2.msra.mxu0 0.0
        %1704 = vmatprep.mubr.f32.mxu0 0.0
        %1705 = vmatmul.mubr.f32.gmra.mxu0 %v908
        %v1706 = vpop.f32.mrf.mxu0
        %v1707 = vadd.f32 %v1638, %v1706
        %v1708 = vpop.f32.mrf.mxu0
        %1709 = vmatprep.mubr.f32.mxu0 0.0
        %1710 = vmatmul.mubr.f32.gmra.mxu0 %v911
        %v1711 = vpop.f32.mrf.mxu0
        %v1712 = vadd.f32 %v1638, %v1711
        %v1713 = vpop.f32.mrf.mxu0
        %1714 = vdwg.mxu0
        %v1716 = vsel %vm1150, %v1545, 0
        %v1719 = vsel %vm1150, %v1626, 0
        %1721 = vmatprep.subr.mxu0 0.0
        %1722 = vmatpush1.xpose.msra.mxu0 0.0
        %1723 = vmatprep.subr.mxu0 0.0
        %1724 = vmatpush1.xpose.msra.mxu0 0.0
        %1725 = vmatprep.subr.mxu0 0.0
        %1726 = vmatpush1.xpose.msra.mxu0 0.0
        %1727 = vmatprep.subr.mxu0 0.0
        %1728 = vmatpush1.xpose.msra.mxu0 0.0
        %1729 = vmatprep.subr.mxu0 0.0
        %1730 = vmatpush1.xpose.msra.mxu0 0.0
        %1731 = vmatprep.subr.mxu0 0.0
        %1732 = vmatpush1.xpose.msra.mxu0 0.0
        %1733 = vmatprep.subr.mxu0 0.0
        %1734 = vmatpush1.xpose.msra.mxu0 0.0
        %1735 = vmatprep.subr.mxu0 0.0
        %1736 = vmatpush1.xpose.msra.mxu0 0.0
        %1737 = vmatprep.subr.mxu0 0.0
        %1738 = vmatpush1.xpose.msra.mxu0 0.0
        %1739 = vmatprep.subr.mxu0 0.0
        %1740 = vmatpush1.xpose.msra.mxu0 0.0
        %1741 = vmatprep.subr.mxu0 0.0
        %1742 = vmatpush1.xpose.msra.mxu0 0.0
        %1743 = vmatprep.subr.mxu0 0.0
        %1744 = vmatpush1.xpose.msra.mxu0 0.0
        %1745 = vmatprep.subr.mxu0 0.0
        %1746 = vmatpush1.xpose.msra.mxu0 0.0
        %1747 = vmatprep.subr.mxu0 0.0
        %1748 = vmatpush1.xpose.msra.mxu0 0.0
        %1749 = vmatprep.subr.mxu0 0.0
        %1750 = vmatpush1.xpose.msra.mxu0 0.0
        %1751 = vmatprep.subr.mxu0 0.0
        %1752 = vmatpush1.xpose.msra.mxu0 %v1719
        %1753 = vmatprep.subr.mxu0 0.0
        %1754 = vmatpush2.xpose.msra.mxu0 0.0
        %1755 = vmatprep.subr.mxu0 0.0
        %1756 = vmatpush2.xpose.msra.mxu0 0.0
        %1757 = vmatprep.subr.mxu0 0.0
        %1758 = vmatpush2.xpose.msra.mxu0 0.0
        %1759 = vmatprep.subr.mxu0 0.0
        %1760 = vmatpush2.xpose.msra.mxu0 0.0
        %1761 = vmatprep.subr.mxu0 0.0
        %1762 = vmatpush2.xpose.msra.mxu0 0.0
        %1763 = vmatprep.subr.mxu0 0.0
        %1764 = vmatpush2.xpose.msra.mxu0 0.0
        %1765 = vmatprep.subr.mxu0 0.0
        %1766 = vmatpush2.xpose.msra.mxu0 0.0
        %1767 = vmatprep.subr.mxu0 0.0
        %1768 = vmatpush2.xpose.msra.mxu0 0.0
        %1769 = vmatprep.subr.mxu0 0.0
        %1770 = vmatpush2.xpose.msra.mxu0 0.0
        %1771 = vmatprep.subr.mxu0 0.0
        %1772 = vmatpush2.xpose.msra.mxu0 0.0
        %1773 = vmatprep.subr.mxu0 0.0
        %1774 = vmatpush2.xpose.msra.mxu0 0.0
        %1775 = vmatprep.subr.mxu0 0.0
        %1776 = vmatpush2.xpose.msra.mxu0 0.0
        %1777 = vmatprep.subr.mxu0 0.0
        %1778 = vmatpush2.xpose.msra.mxu0 0.0
        %1779 = vmatprep.subr.mxu0 0.0
        %1780 = vmatpush2.xpose.msra.mxu0 0.0
        %1781 = vmatprep.subr.mxu0 0.0
        %1782 = vmatpush2.xpose.msra.mxu0 0.0
        %1783 = vmatprep.subr.mxu0 0.0
        %1784 = vmatpush2.xpose.msra.mxu0 0.0
        %1785 = vmatprep.mubr.f32.mxu0 0.0
        %1786 = vmatmul.mubr.f32.gmra.mxu0 %v1716
        %v1787 = vpop.f32.mrf.mxu0
        %v1788 = vadd.f32 %v856, %v1787
        %v1789 = vpop.f32.mrf.mxu0
        %1790 = vdwg.mxu0
        %v1792 = vsel %vm1150, %v1550, 0
        %v1795 = vsel %vm1150, %v1631, 0
        %1797 = vmatprep.subr.mxu0 0.0
        %1798 = vmatpush1.xpose.msra.mxu0 0.0
        %1799 = vmatprep.subr.mxu0 0.0
        %1800 = vmatpush1.xpose.msra.mxu0 0.0
        %1801 = vmatprep.subr.mxu0 0.0
        %1802 = vmatpush1.xpose.msra.mxu0 0.0
        %1803 = vmatprep.subr.mxu0 0.0
        %1804 = vmatpush1.xpose.msra.mxu0 0.0
        %1805 = vmatprep.subr.mxu0 0.0
        %1806 = vmatpush1.xpose.msra.mxu0 0.0
        %1807 = vmatprep.subr.mxu0 0.0
        %1808 = vmatpush1.xpose.msra.mxu0 0.0
        %1809 = vmatprep.subr.mxu0 0.0
        %1810 = vmatpush1.xpose.msra.mxu0 0.0
        %1811 = vmatprep.subr.mxu0 0.0
        %1812 = vmatpush1.xpose.msra.mxu0 0.0
        %1813 = vmatprep.subr.mxu0 0.0
        %1814 = vmatpush1.xpose.msra.mxu0 0.0
        %1815 = vmatprep.subr.mxu0 0.0
        %1816 = vmatpush1.xpose.msra.mxu0 0.0
        %1817 = vmatprep.subr.mxu0 0.0
        %1818 = vmatpush1.xpose.msra.mxu0 0.0
        %1819 = vmatprep.subr.mxu0 0.0
        %1820 = vmatpush1.xpose.msra.mxu0 0.0
        %1821 = vmatprep.subr.mxu0 0.0
        %1822 = vmatpush1.xpose.msra.mxu0 0.0
        %1823 = vmatprep.subr.mxu0 0.0
        %1824 = vmatpush1.xpose.msra.mxu0 0.0
        %1825 = vmatprep.subr.mxu0 0.0
        %1826 = vmatpush1.xpose.msra.mxu0 0.0
        %1827 = vmatprep.subr.mxu0 0.0
        %1828 = vmatpush1.xpose.msra.mxu0 %v1795
        %1829 = vmatprep.subr.mxu0 0.0
        %1830 = vmatpush2.xpose.msra.mxu0 0.0
        %1831 = vmatprep.subr.mxu0 0.0
        %1832 = vmatpush2.xpose.msra.mxu0 0.0
        %1833 = vmatprep.subr.mxu0 0.0
        %1834 = vmatpush2.xpose.msra.mxu0 0.0
        %1835 = vmatprep.subr.mxu0 0.0
        %1836 = vmatpush2.xpose.msra.mxu0 0.0
        %1837 = vmatprep.subr.mxu0 0.0
        %1838 = vmatpush2.xpose.msra.mxu0 0.0
        %1839 = vmatprep.subr.mxu0 0.0
        %1840 = vmatpush2.xpose.msra.mxu0 0.0
        %1841 = vmatprep.subr.mxu0 0.0
        %1842 = vmatpush2.xpose.msra.mxu0 0.0
        %1843 = vmatprep.subr.mxu0 0.0
        %1844 = vmatpush2.xpose.msra.mxu0 0.0
        %1845 = vmatprep.subr.mxu0 0.0
        %1846 = vmatpush2.xpose.msra.mxu0 0.0
        %1847 = vmatprep.subr.mxu0 0.0
        %1848 = vmatpush2.xpose.msra.mxu0 0.0
        %1849 = vmatprep.subr.mxu0 0.0
        %1850 = vmatpush2.xpose.msra.mxu0 0.0
        %1851 = vmatprep.subr.mxu0 0.0
        %1852 = vmatpush2.xpose.msra.mxu0 0.0
        %1853 = vmatprep.subr.mxu0 0.0
        %1854 = vmatpush2.xpose.msra.mxu0 0.0
        %1855 = vmatprep.subr.mxu0 0.0
        %1856 = vmatpush2.xpose.msra.mxu0 0.0
        %1857 = vmatprep.subr.mxu0 0.0
        %1858 = vmatpush2.xpose.msra.mxu0 0.0
        %1859 = vmatprep.subr.mxu0 0.0
        %1860 = vmatpush2.xpose.msra.mxu0 0.0
        %1861 = vmatprep.mubr.f32.mxu0 0.0
        %1862 = vmatmul.mubr.f32.gmra.mxu0 %v1792
        %v1863 = vpop.f32.mrf.mxu0
        %v1864 = vadd.f32 %v860, %v1863
        %v1865 = vpop.f32.mrf.mxu0
        %1866 = vdwg.mxu0
        %v1867 = vsel %vm1303, %v1788, -inf
        %1868 = vmax.xlane.f32.xlu0 %v1867
        %v1869 = vpop.xlane.xlu0 %1868
        %v1870 = vsel %vm1303, %v1864, -inf
        %1871 = vmax.xlane.f32.xlu0 %v1870
        %v1872 = vpop.xlane.xlu0 %1871
        %v1873 = vsub.f32 %v1788, %v1869
        %v1874 = vsub.f32 %v1864, %v1872
        %v1875 = vmul.f32 %v1873, 1.442695
        %v1876 = vpow.pop %v1875
        %v1877 = vmul.f32 %v1874, 1.442695
        %v1878 = vpow.pop %v1877
        %v1879 = vsel %vm1303, %v1876, 0.0
        %1880 = vadd.xlane.f32.xlu0 %v1879
        %v1881 = vpop.xlane.xlu0 %1880
        %v1882 = vsel %vm1303, %v1878, 0.0
        %1883 = vadd.xlane.f32.xlu0 %v1882
        %v1884 = vpop.xlane.xlu0 %1883
        %v1885 = vrcp.pop %v1881
        %v1886 = vmul.f32 %v1876, %v1885
        %v1887 = vrcp.pop %v1884
        %v1888 = vmul.f32 %v1878, %v1887
        %v1890 = vsel %vm1303, %v1886, 0
        %1892 = vmatprep.subr.mxu0 0.0
        %1893 = vmatpush1.msra.mxu0 0.0
        %1894 = vmatprep.subr.mxu0 0.0
        %1895 = vmatpush1.msra.mxu0 0.0
        %1896 = vmatprep.subr.mxu0 0.0
        %1897 = vmatpush1.msra.mxu0 0.0
        %1898 = vmatprep.subr.mxu0 0.0
        %1899 = vmatpush1.msra.mxu0 0.0
        %1900 = vmatprep.subr.mxu0 0.0
        %1901 = vmatpush1.msra.mxu0 0.0
        %1902 = vmatprep.subr.mxu0 0.0
        %1903 = vmatpush1.msra.mxu0 0.0
        %1904 = vmatprep.subr.mxu0 0.0
        %1905 = vmatpush1.msra.mxu0 0.0
        %1906 = vmatprep.subr.mxu0 0.0
        %1907 = vmatpush1.msra.mxu0 0.0
        %1908 = vmatprep.subr.mxu0 0.0
        %1909 = vmatpush1.msra.mxu0 0.0
        %1910 = vmatprep.subr.mxu0 0.0
        %1911 = vmatpush1.msra.mxu0 0.0
        %1912 = vmatprep.subr.mxu0 0.0
        %1913 = vmatpush1.msra.mxu0 0.0
        %1914 = vmatprep.subr.mxu0 0.0
        %1915 = vmatpush1.msra.mxu0 0.0
        %1916 = vmatprep.subr.mxu0 0.0
        %1917 = vmatpush1.msra.mxu0 0.0
        %1918 = vmatprep.subr.mxu0 0.0
        %1919 = vmatpush1.msra.mxu0 0.0
        %1920 = vmatprep.subr.mxu0 0.0
        %1921 = vmatpush1.msra.mxu0 0.0
        %1922 = vmatprep.subr.mxu0 0.0
        %1923 = vmatpush1.msra.mxu0 %v1707
        %1924 = vmatprep.subr.mxu0 0.0
        %1925 = vmatpush2.msra.mxu0 0.0
        %1926 = vmatprep.subr.mxu0 0.0
        %1927 = vmatpush2.msra.mxu0 0.0
        %1928 = vmatprep.subr.mxu0 0.0
        %1929 = vmatpush2.msra.mxu0 0.0
        %1930 = vmatprep.subr.mxu0 0.0
        %1931 = vmatpush2.msra.mxu0 0.0
        %1932 = vmatprep.subr.mxu0 0.0
        %1933 = vmatpush2.msra.mxu0 0.0
        %1934 = vmatprep.subr.mxu0 0.0
        %1935 = vmatpush2.msra.mxu0 0.0
        %1936 = vmatprep.subr.mxu0 0.0
        %1937 = vmatpush2.msra.mxu0 0.0
        %1938 = vmatprep.subr.mxu0 0.0
        %1939 = vmatpush2.msra.mxu0 0.0
        %1940 = vmatprep.subr.mxu0 0.0
        %1941 = vmatpush2.msra.mxu0 0.0
        %1942 = vmatprep.subr.mxu0 0.0
        %1943 = vmatpush2.msra.mxu0 0.0
        %1944 = vmatprep.subr.mxu0 0.0
        %1945 = vmatpush2.msra.mxu0 0.0
        %1946 = vmatprep.subr.mxu0 0.0
        %1947 = vmatpush2.msra.mxu0 0.0
        %1948 = vmatprep.subr.mxu0 0.0
        %1949 = vmatpush2.msra.mxu0 0.0
        %1950 = vmatprep.subr.mxu0 0.0
        %1951 = vmatpush2.msra.mxu0 0.0
        %1952 = vmatprep.subr.mxu0 0.0
        %1953 = vmatpush2.msra.mxu0 0.0
        %1954 = vmatprep.subr.mxu0 0.0
        %1955 = vmatpush2.msra.mxu0 0.0
        %1956 = vmatprep.mubr.f32.mxu0 0.0
        %1957 = vmatmul.mubr.f32.gmra.mxu0 %v1890
        %v1958 = vpop.f32.mrf.mxu0
        %v1959 = vadd.f32 0.0, %v1958
        %v1960 = vpop.f32.mrf.mxu0
        %1961 = vdwg.mxu0
        %v1963 = vsel %vm1303, %v1888, 0
        %1965 = vmatprep.subr.mxu0 0.0
        %1966 = vmatpush1.msra.mxu0 0.0
        %1967 = vmatprep.subr.mxu0 0.0
        %1968 = vmatpush1.msra.mxu0 0.0
        %1969 = vmatprep.subr.mxu0 0.0
        %1970 = vmatpush1.msra.mxu0 0.0
        %1971 = vmatprep.subr.mxu0 0.0
        %1972 = vmatpush1.msra.mxu0 0.0
        %1973 = vmatprep.subr.mxu0 0.0
        %1974 = vmatpush1.msra.mxu0 0.0
        %1975 = vmatprep.subr.mxu0 0.0
        %1976 = vmatpush1.msra.mxu0 0.0
        %1977 = vmatprep.subr.mxu0 0.0
        %1978 = vmatpush1.msra.mxu0 0.0
        %1979 = vmatprep.subr.mxu0 0.0
        %1980 = vmatpush1.msra.mxu0 0.0
        %1981 = vmatprep.subr.mxu0 0.0
        %1982 = vmatpush1.msra.mxu0 0.0
        %1983 = vmatprep.subr.mxu0 0.0
        %1984 = vmatpush1.msra.mxu0 0.0
        %1985 = vmatprep.subr.mxu0 0.0
        %1986 = vmatpush1.msra.mxu0 0.0
        %1987 = vmatprep.subr.mxu0 0.0
        %1988 = vmatpush1.msra.mxu0 0.0
        %1989 = vmatprep.subr.mxu0 0.0
        %1990 = vmatpush1.msra.mxu0 0.0
        %1991 = vmatprep.subr.mxu0 0.0
        %1992 = vmatpush1.msra.mxu0 0.0
        %1993 = vmatprep.subr.mxu0 0.0
        %1994 = vmatpush1.msra.mxu0 0.0
        %1995 = vmatprep.subr.mxu0 0.0
        %1996 = vmatpush1.msra.mxu0 %v1712
        %1997 = vmatprep.subr.mxu0 0.0
        %1998 = vmatpush2.msra.mxu0 0.0
        %1999 = vmatprep.subr.mxu0 0.0
        %2000 = vmatpush2.msra.mxu0 0.0
        %2001 = vmatprep.subr.mxu0 0.0
        %2002 = vmatpush2.msra.mxu0 0.0
        %2003 = vmatprep.subr.mxu0 0.0
        %2004 = vmatpush2.msra.mxu0 0.0
        %2005 = vmatprep.subr.mxu0 0.0
        %2006 = vmatpush2.msra.mxu0 0.0
        %2007 = vmatprep.subr.mxu0 0.0
        %2008 = vmatpush2.msra.mxu0 0.0
        %2009 = vmatprep.subr.mxu0 0.0
        %2010 = vmatpush2.msra.mxu0 0.0
        %2011 = vmatprep.subr.mxu0 0.0
        %2012 = vmatpush2.msra.mxu0 0.0
        %2013 = vmatprep.subr.mxu0 0.0
        %2014 = vmatpush2.msra.mxu0 0.0
        %2015 = vmatprep.subr.mxu0 0.0
        %2016 = vmatpush2.msra.mxu0 0.0
        %2017 = vmatprep.subr.mxu0 0.0
        %2018 = vmatpush2.msra.mxu0 0.0
        %2019 = vmatprep.subr.mxu0 0.0
        %2020 = vmatpush2.msra.mxu0 0.0
        %2021 = vmatprep.subr.mxu0 0.0
        %2022 = vmatpush2.msra.mxu0 0.0
        %2023 = vmatprep.subr.mxu0 0.0
        %2024 = vmatpush2.msra.mxu0 0.0
        %2025 = vmatprep.subr.mxu0 0.0
        %2026 = vmatpush2.msra.mxu0 0.0
        %2027 = vmatprep.subr.mxu0 0.0
        %2028 = vmatpush2.msra.mxu0 0.0
        %2029 = vmatprep.mubr.f32.mxu0 0.0
        %2030 = vmatmul.mubr.f32.gmra.mxu0 %v1963
        %v2031 = vpop.f32.mrf.mxu0
        %v2032 = vadd.f32 0.0, %v2031
        %v2033 = vpop.f32.mrf.mxu0
        %2034 = vdwg.mxu0
        %v2036 = vsel %vm1150, %v1959, 0
        %v2039 = vsel %vm1150, %v2032, 0
        %2041 = vmatprep.subr.mxu0 0.0
        %2042 = vmatpush1.msra.mxu0 0.0
        %2043 = vmatprep.subr.mxu0 0.0
        %2044 = vmatpush1.msra.mxu0 0.0
        %2045 = vmatprep.subr.mxu0 0.0
        %2046 = vmatpush1.msra.mxu0 0.0
        %2047 = vmatprep.subr.mxu0 0.0
        %2048 = vmatpush1.msra.mxu0 0.0
        %2049 = vmatprep.subr.mxu0 0.0
        %2050 = vmatpush1.msra.mxu0 0.0
        %2051 = vmatprep.subr.mxu0 0.0
        %2052 = vmatpush1.msra.mxu0 0.0
        %2053 = vmatprep.subr.mxu0 0.0
        %2054 = vmatpush1.msra.mxu0 0.0
        %2055 = vmatprep.subr.mxu0 0.0
        %2056 = vmatpush1.msra.mxu0 0.0
        %2057 = vmatprep.subr.mxu0 0.0
        %2058 = vmatpush1.msra.mxu0 0.0
        %2059 = vmatprep.subr.mxu0 0.0
        %2060 = vmatpush1.msra.mxu0 0.0
        %2061 = vmatprep.subr.mxu0 0.0
        %2062 = vmatpush1.msra.mxu0 0.0
        %2063 = vmatprep.subr.mxu0 0.0
        %2064 = vmatpush1.msra.mxu0 0.0
        %2065 = vmatprep.subr.mxu0 0.0
        %2066 = vmatpush1.msra.mxu0 0.0
        %2067 = vmatprep.subr.mxu0 0.0
        %2068 = vmatpush1.msra.mxu0 0.0
        %2069 = vmatprep.subr.mxu0 0.0
        %2070 = vmatpush1.msra.mxu0 %v898
        %2071 = vmatprep.subr.mxu0 0.0
        %2072 = vmatpush1.msra.mxu0 %v897
        %2073 = vmatprep.subr.mxu0 0.0
        %2074 = vmatpush2.msra.mxu0 0.0
        %2075 = vmatprep.subr.mxu0 0.0
        %2076 = vmatpush2.msra.mxu0 0.0
        %2077 = vmatprep.subr.mxu0 0.0
        %2078 = vmatpush2.msra.mxu0 0.0
        %2079 = vmatprep.subr.mxu0 0.0
        %2080 = vmatpush2.msra.mxu0 0.0
        %2081 = vmatprep.subr.mxu0 0.0
        %2082 = vmatpush2.msra.mxu0 0.0
        %2083 = vmatprep.subr.mxu0 0.0
        %2084 = vmatpush2.msra.mxu0 0.0
        %2085 = vmatprep.subr.mxu0 0.0
        %2086 = vmatpush2.msra.mxu0 0.0
        %2087 = vmatprep.subr.mxu0 0.0
        %2088 = vmatpush2.msra.mxu0 0.0
        %2089 = vmatprep.subr.mxu0 0.0
        %2090 = vmatpush2.msra.mxu0 0.0
        %2091 = vmatprep.subr.mxu0 0.0
        %2092 = vmatpush2.msra.mxu0 0.0
        %2093 = vmatprep.subr.mxu0 0.0
        %2094 = vmatpush2.msra.mxu0 0.0
        %2095 = vmatprep.subr.mxu0 0.0
        %2096 = vmatpush2.msra.mxu0 0.0
        %2097 = vmatprep.subr.mxu0 0.0
        %2098 = vmatpush2.msra.mxu0 0.0
        %2099 = vmatprep.subr.mxu0 0.0
        %2100 = vmatpush2.msra.mxu0 0.0
        %2101 = vmatprep.subr.mxu0 0.0
        %2102 = vmatpush2.msra.mxu0 0.0
        %2103 = vmatprep.subr.mxu0 0.0
        %2104 = vmatpush2.msra.mxu0 0.0
        %2105 = vmatprep.mubr.f32.mxu0 0.0
        %2106 = vmatmul.mubr.f32.gmra.mxu0 %v2036
        %v2107 = vpop.f32.mrf.mxu0
        %v2108 = vadd.f32 0.0, %v2107
        %v2109 = vpop.f32.mrf.mxu0
        %2110 = vmatprep.mubr.f32.mxu0 0.0
        %2111 = vmatmul.mubr.f32.gmra.mxu0 %v2039
        %v2112 = vpop.f32.mrf.mxu0
        %v2113 = vadd.f32 0.0, %v2112
        %v2114 = vpop.f32.mrf.mxu0
        %2115 = vdwg.mxu0
        %v2117 = vsel %vm1150, %v1396, 0
        %v2120 = vsel %vm1150, %v1469, 0
        %2122 = vmatprep.subr.mxu0 0.0
        %2123 = vmatpush1.msra.mxu0 0.0
        %2124 = vmatprep.subr.mxu0 0.0
        %2125 = vmatpush1.msra.mxu0 0.0
        %2126 = vmatprep.subr.mxu0 0.0
        %2127 = vmatpush1.msra.mxu0 0.0
        %2128 = vmatprep.subr.mxu0 0.0
        %2129 = vmatpush1.msra.mxu0 0.0
        %2130 = vmatprep.subr.mxu0 0.0
        %2131 = vmatpush1.msra.mxu0 0.0
        %2132 = vmatprep.subr.mxu0 0.0
        %2133 = vmatpush1.msra.mxu0 0.0
        %2134 = vmatprep.subr.mxu0 0.0
        %2135 = vmatpush1.msra.mxu0 0.0
        %2136 = vmatprep.subr.mxu0 0.0
        %2137 = vmatpush1.msra.mxu0 0.0
        %2138 = vmatprep.subr.mxu0 0.0
        %2139 = vmatpush1.msra.mxu0 0.0
        %2140 = vmatprep.subr.mxu0 0.0
        %2141 = vmatpush1.msra.mxu0 0.0
        %2142 = vmatprep.subr.mxu0 0.0
        %2143 = vmatpush1.msra.mxu0 0.0
        %2144 = vmatprep.subr.mxu0 0.0
        %2145 = vmatpush1.msra.mxu0 0.0
        %2146 = vmatprep.subr.mxu0 0.0
        %2147 = vmatpush1.msra.mxu0 0.0
        %2148 = vmatprep.subr.mxu0 0.0
        %2149 = vmatpush1.msra.mxu0 0.0
        %2150 = vmatprep.subr.mxu0 0.0
        %2151 = vmatpush1.msra.mxu0 %v896
        %2152 = vmatprep.subr.mxu0 0.0
        %2153 = vmatpush1.msra.mxu0 %v895
        %2154 = vmatprep.subr.mxu0 0.0
        %2155 = vmatpush2.msra.mxu0 0.0
        %2156 = vmatprep.subr.mxu0 0.0
        %2157 = vmatpush2.msra.mxu0 0.0
        %2158 = vmatprep.subr.mxu0 0.0
        %2159 = vmatpush2.msra.mxu0 0.0
        %2160 = vmatprep.subr.mxu0 0.0
        %2161 = vmatpush2.msra.mxu0 0.0
        %2162 = vmatprep.subr.mxu0 0.0
        %2163 = vmatpush2.msra.mxu0 0.0
        %2164 = vmatprep.subr.mxu0 0.0
        %2165 = vmatpush2.msra.mxu0 0.0
        %2166 = vmatprep.subr.mxu0 0.0
        %2167 = vmatpush2.msra.mxu0 0.0
        %2168 = vmatprep.subr.mxu0 0.0
        %2169 = vmatpush2.msra.mxu0 0.0
        %2170 = vmatprep.subr.mxu0 0.0
        %2171 = vmatpush2.msra.mxu0 0.0
        %2172 = vmatprep.subr.mxu0 0.0
        %2173 = vmatpush2.msra.mxu0 0.0
        %2174 = vmatprep.subr.mxu0 0.0
        %2175 = vmatpush2.msra.mxu0 0.0
        %2176 = vmatprep.subr.mxu0 0.0
        %2177 = vmatpush2.msra.mxu0 0.0
        %2178 = vmatprep.subr.mxu0 0.0
        %2179 = vmatpush2.msra.mxu0 0.0
        %2180 = vmatprep.subr.mxu0 0.0
        %2181 = vmatpush2.msra.mxu0 0.0
        %2182 = vmatprep.subr.mxu0 0.0
        %2183 = vmatpush2.msra.mxu0 0.0
        %2184 = vmatprep.subr.mxu0 0.0
        %2185 = vmatpush2.msra.mxu0 0.0
        %2186 = vmatprep.mubr.f32.mxu0 0.0
        %2187 = vmatmul.mubr.f32.gmra.mxu0 %v2117
        %v2188 = vpop.f32.mrf.mxu0
        %v2189 = vadd.f32 %v2108, %v2188
        %v2190 = vpop.f32.mrf.mxu0
        %2191 = vmatprep.mubr.f32.mxu0 0.0
        %2192 = vmatmul.mubr.f32.gmra.mxu0 %v2120
        %v2193 = vpop.f32.mrf.mxu0
        %v2194 = vadd.f32 %v2113, %v2193
        %v2195 = vpop.f32.mrf.mxu0
        %2196 = vdwg.mxu0
        %v2198 = vlaneseq
        %v2199 = vshrl.u32 %v2198, 7
        %v2200 = vsub.s32 0, %v2199
        %v2201 = vrot.slane %v899, %v2200
        %v2203 = vadd.f32 %v2189, %v2201
        %v2204 = vadd.f32 %v2194, %v2201
        %v2205 = vadd.f32 %v2203, %v847
        %v2206 = vadd.f32 %v2204, %v848
        %v2207 = vld [vmem:[%s812] sm:$0x1]
        %v2208 = vld [vmem:[%s815] sm:$0x1]
        %v2209 = vsel %vm906, %v2205, 0.0
        %2210 = vadd.xlane.f32.xlu0 %v2209
        %v2211 = vpop.xlane.xlu0 %2210
        %v2212 = vsel %vm906, %v2206, 0.0
        %2213 = vadd.xlane.f32.xlu0 %v2212
        %v2214 = vpop.xlane.xlu0 %2213
        %v2215 = vrcp.pop 32.0
        %v2216 = vmul.f32 %v2211, %v2215
        %v2217 = vmul.f32 %v2214, %v2215
        %v2218 = vsub.f32 %v2205, %v2216
        %v2219 = vsub.f32 %v2206, %v2217
        %v2220 = vmul.f32 %v2218, %v2218
        %v2221 = vmul.f32 %v2219, %v2219
        %v2222 = vsel %vm906, %v2220, 0.0
        %2223 = vadd.xlane.f32.xlu0 %v2222
        %v2224 = vpop.xlane.xlu0 %2223
        %v2225 = vsel %vm906, %v2221, 0.0
        %2226 = vadd.xlane.f32.xlu0 %v2225
        %v2227 = vpop.xlane.xlu0 %2226
        %v2228 = vmul.f32 %v2224, %v2215
        %v2229 = vmul.f32 %v2227, %v2215
        %v2230 = vadd.f32 %v2228, 1e-05
        %v2231 = vadd.f32 %v2229, 1e-05
        %v2232 = vrsqrt.pop %v2230
        %v2233 = vrsqrt.pop %v2231
        %v2234 = vmul.f32 %v2218, %v2232
        %v2235 = vmul.f32 %v2219, %v2233
        %v2237 = vlaneseq
        %v2238 = vshrl.u32 %v2237, 7
        %v2239 = vsub.s32 0, %v2238
        %v2240 = vrot.slane %v2207, %v2239
        %v2242 = vmul.f32 %v2234, %v2240
        %v2243 = vmul.f32 %v2235, %v2240
        %v2245 = vlaneseq
        %v2246 = vshrl.u32 %v2245, 7
        %v2247 = vsub.s32 0, %v2246
        %v2248 = vrot.slane %v2208, %v2247
        %v2250 = vadd.f32 %v2242, %v2248
        %v2251 = vadd.f32 %v2243, %v2248
        %2253 = vset.pattern.permute.xlu0 0
        %2254 = vperm.xlu0 %2253, %v863
        %v2255 = vpop.permute.xlu0 %2254
        %2258 = vset.pattern.permute.xlu0 0
        %2259 = vperm.xlu0 %2258, %v864
        %v2260 = vpop.permute.xlu0 %2259
        %v2262 = vmul.f32 %v2250, %v2255
        %v2263 = vmul.f32 %v2251, %v2260
        %v2266 = vrot.slane %v2262, 4
        %v2267 = vrot.slane %v2263, 4
        %vm2270 = vcmask 1043456
        %v2271 = vsel %vm2270, 0.0, %v2266
        %v2272 = vsel %vm2270, 0.0, %v2267
        %v2273 = vsel %vm2270, %v2266, 0.0
        %v2274 = vsel %vm2270, %v2267, 0.0
        %vm2279 = vcmask 1046528
        %v2280 = vrot.slane %v2271, 1
        %v2281 = vrot.slane %v2273, 1
        %v2282 = vsel %vm2279, %v2280, %v2281
        %v2283 = vrot.slane %v2272, 1
        %v2284 = vrot.slane %v2274, 1
        %v2285 = vsel %vm2279, %v2283, %v2284
        %2286 = vrot.lane.b32.xlu0 %v2282, 32
        %v2287 = vpop.permute.xlu0 %2286
        %2288 = vrot.lane.b32.xlu0 %v2285, 32
        %v2289 = vpop.permute.xlu0 %2288
        %vm2292 = vcmask 1045504
        %v2293 = vrot.slane %v2271, 2
        %v2294 = vrot.slane %v2273, 2
        %v2295 = vsel %vm2292, %v2293, %v2294
        %v2296 = vrot.slane %v2272, 2
        %v2297 = vrot.slane %v2274, 2
        %v2298 = vsel %vm2292, %v2296, %v2297
        %2299 = vrot.lane.b32.xlu0 %v2295, 64
        %v2300 = vpop.permute.xlu0 %2299
        %2301 = vrot.lane.b32.xlu0 %v2298, 64
        %v2302 = vpop.permute.xlu0 %2301
        %vm2305 = vcmask 1044480
        %v2306 = vrot.slane %v2271, 3
        %v2307 = vrot.slane %v2273, 3
        %v2308 = vsel %vm2305, %v2306, %v2307
        %v2309 = vrot.slane %v2272, 3
        %v2310 = vrot.slane %v2274, 3
        %v2311 = vsel %vm2305, %v2309, %v2310
        %2312 = vrot.lane.b32.xlu0 %v2308, 96
        %v2313 = vpop.permute.xlu0 %2312
        %2314 = vrot.lane.b32.xlu0 %v2311, 96
        %v2315 = vpop.permute.xlu0 %2314
        %v2318 = vrot.slane %v2271, 4
        %v2319 = vrot.slane %v2273, 4
        %v2320 = vsel %vm2270, %v2318, %v2319
        %v2321 = vrot.slane %v2272, 4
        %v2322 = vrot.slane %v2274, 4
        %v2323 = vsel %vm2270, %v2321, %v2322
        %vm2326 = vcmask 1042432
        %v2327 = vrot.slane %v2271, 5
        %v2328 = vrot.slane %v2273, 5
        %v2329 = vsel %vm2326, %v2327, %v2328
        %v2330 = vrot.slane %v2272, 5
        %v2331 = vrot.slane %v2274, 5
        %v2332 = vsel %vm2326, %v2330, %v2331
        %2333 = vrot.lane.b32.xlu0 %v2329, 32
        %v2334 = vpop.permute.xlu0 %2333
        %2335 = vrot.lane.b32.xlu0 %v2332, 32
        %v2336 = vpop.permute.xlu0 %2335
        %vm2339 = vcmask 1041408
        %v2340 = vrot.slane %v2271, 6
        %v2341 = vrot.slane %v2273, 6
        %v2342 = vsel %vm2339, %v2340, %v2341
        %v2343 = vrot.slane %v2272, 6
        %v2344 = vrot.slane %v2274, 6
        %v2345 = vsel %vm2339, %v2343, %v2344
        %2346 = vrot.lane.b32.xlu0 %v2342, 64
        %v2347 = vpop.permute.xlu0 %2346
        %2348 = vrot.lane.b32.xlu0 %v2345, 64
        %v2349 = vpop.permute.xlu0 %2348
        %vm2352 = vcmask 1040384
        %v2353 = vrot.slane %v2271, 7
        %v2354 = vrot.slane %v2273, 7
        %v2355 = vsel %vm2352, %v2353, %v2354
        %v2356 = vrot.slane %v2272, 7
        %v2357 = vrot.slane %v2274, 7
        %v2358 = vsel %vm2352, %v2356, %v2357
        %2359 = vrot.lane.b32.xlu0 %v2355, 96
        %v2360 = vpop.permute.xlu0 %2359
        %2361 = vrot.lane.b32.xlu0 %v2358, 96
        %v2362 = vpop.permute.xlu0 %2361
        %v2365 = vsel %vm906, %v2271, %v2287
        %v2366 = vsel %vm906, %v2272, %v2289
        %vm2367 = vcmask 523264
        %v2368 = vsel %vm2367, %v2365, %v2300
        %v2369 = vsel %vm2367, %v2366, %v2302
        %vm2370 = vcmask 785408
        %v2371 = vsel %vm2370, %v2368, %v2313
        %v2372 = vsel %vm2370, %v2369, %v2315
        %v2373 = vsel %vm906, %v2320, %v2334
        %v2374 = vsel %vm906, %v2323, %v2336
        %v2375 = vsel %vm2367, %v2373, %v2347
        %v2376 = vsel %vm2367, %v2374, %v2349
        %v2377 = vsel %vm2370, %v2375, %v2360
        %v2378 = vsel %vm2370, %v2376, %v2362
        %v2379 = vld [vmem:[%s820] sm:$0xff]
        %v2380 = vld [vmem:[%s820 + $0x8] sm:$0xff]
        %v2381 = vld [vmem:[%s820 + $0x10] sm:$0xff]
        %v2382 = vld [vmem:[%s820 + $0x18] sm:$0xff]
        %v2383 = vld [vmem:[%s820 + $0x20] sm:$0xff]
        %v2384 = vld [vmem:[%s820 + $0x28] sm:$0xff]
        %v2385 = vld [vmem:[%s820 + $0x30] sm:$0xff]
        %v2386 = vld [vmem:[%s820 + $0x38] sm:$0xff]
        %v2387 = vld [vmem:[%s820 + $0x40] sm:$0xff]
        %v2388 = vld [vmem:[%s820 + $0x48] sm:$0xff]
        %v2389 = vld [vmem:[%s820 + $0x50] sm:$0xff]
        %v2390 = vld [vmem:[%s820 + $0x58] sm:$0xff]
        %v2391 = vld [vmem:[%s820 + $0x60] sm:$0xff]
        %v2392 = vld [vmem:[%s820 + $0x68] sm:$0xff]
        %v2393 = vld [vmem:[%s820 + $0x70] sm:$0xff]
        %v2394 = vld [vmem:[%s820 + $0x78] sm:$0xff]
        %v2395 = vld [vmem:[%s820 + $0x80] sm:$0xff]
        %v2396 = vld [vmem:[%s820 + $0x88] sm:$0xff]
        %v2397 = vld [vmem:[%s820 + $0x90] sm:$0xff]
        %v2398 = vld [vmem:[%s820 + $0x98] sm:$0xff]
        %v2399 = vld [vmem:[%s820 + $0xa0] sm:$0xff]
        %v2400 = vld [vmem:[%s820 + $0xa8] sm:$0xff]
        %v2401 = vld [vmem:[%s820 + $0xb0] sm:$0xff]
        %v2402 = vld [vmem:[%s820 + $0xb8] sm:$0xff]
        %v2403 = vld [vmem:[%s820 + $0xc0] sm:$0xff]
        %v2404 = vld [vmem:[%s820 + $0xc8] sm:$0xff]
        %v2405 = vld [vmem:[%s820 + $0xd0] sm:$0xff]
        %v2406 = vld [vmem:[%s820 + $0xd8] sm:$0xff]
        %v2407 = vld [vmem:[%s820 + $0xe0] sm:$0xff]
        %v2408 = vld [vmem:[%s820 + $0xe8] sm:$0xff]
        %v2409 = vld [vmem:[%s820 + $0xf0] sm:$0xff]
        %v2410 = vld [vmem:[%s820 + $0xf8] sm:$0xff]
        %v2411 = vld [vmem:[%s820 + $0x100] sm:$0xff]
        %v2412 = vld [vmem:[%s820 + $0x108] sm:$0xff]
        %v2413 = vld [vmem:[%s820 + $0x110] sm:$0xff]
        %v2414 = vld [vmem:[%s820 + $0x118] sm:$0xff]
        %v2415 = vld [vmem:[%s823] sm:$0x1]
        %v2417 = vlaneseq
        %v2418 = vshrl.u32 %v2417, 7
        %v2419 = vsub.s32 0, %v2418
        %v2420 = vrot.slane %v2415, %v2419
        %v2422 = vsel %vm906, %v2273, 0
        %v2424 = vsel %vm906, %v2274, 0
        %2426 = vmatprep.subr.mxu0 0.0
        %2427 = vmatpush1.msra.mxu0 %v2394
        %2428 = vmatprep.subr.mxu0 0.0
        %2429 = vmatpush1.msra.mxu0 %v2393
        %2430 = vmatprep.subr.mxu0 0.0
        %2431 = vmatpush1.msra.mxu0 %v2392
        %2432 = vmatprep.subr.mxu0 0.0
        %2433 = vmatpush1.msra.mxu0 %v2391
        %2434 = vmatprep.subr.mxu0 0.0
        %2435 = vmatpush1.msra.mxu0 %v2390
        %2436 = vmatprep.subr.mxu0 0.0
        %2437 = vmatpush1.msra.mxu0 %v2389
        %2438 = vmatprep.subr.mxu0 0.0
        %2439 = vmatpush1.msra.mxu0 %v2388
        %2440 = vmatprep.subr.mxu0 0.0
        %2441 = vmatpush1.msra.mxu0 %v2387
        %2442 = vmatprep.subr.mxu0 0.0
        %2443 = vmatpush1.msra.mxu0 %v2386
        %2444 = vmatprep.subr.mxu0 0.0
        %2445 = vmatpush1.msra.mxu0 %v2385
        %2446 = vmatprep.subr.mxu0 0.0
        %2447 = vmatpush1.msra.mxu0 %v2384
        %2448 = vmatprep.subr.mxu0 0.0
        %2449 = vmatpush1.msra.mxu0 %v2383
        %2450 = vmatprep.subr.mxu0 0.0
        %2451 = vmatpush1.msra.mxu0 %v2382
        %2452 = vmatprep.subr.mxu0 0.0
        %2453 = vmatpush1.msra.mxu0 %v2381
        %2454 = vmatprep.subr.mxu0 0.0
        %2455 = vmatpush1.msra.mxu0 %v2380
        %2456 = vmatprep.subr.mxu0 0.0
        %2457 = vmatpush1.msra.mxu0 %v2379
        %2458 = vmatprep.subr.mxu0 0.0
        %2459 = vmatpush2.msra.mxu0 %v2410
        %2460 = vmatprep.subr.mxu0 0.0
        %2461 = vmatpush2.msra.mxu0 %v2409
        %2462 = vmatprep.subr.mxu0 0.0
        %2463 = vmatpush2.msra.mxu0 %v2408
        %2464 = vmatprep.subr.mxu0 0.0
        %2465 = vmatpush2.msra.mxu0 %v2407
        %2466 = vmatprep.subr.mxu0 0.0
        %2467 = vmatpush2.msra.mxu0 %v2406
        %2468 = vmatprep.subr.mxu0 0.0
        %2469 = vmatpush2.msra.mxu0 %v2405
        %2470 = vmatprep.subr.mxu0 0.0
        %2471 = vmatpush2.msra.mxu0 %v2404
        %2472 = vmatprep.subr.mxu0 0.0
        %2473 = vmatpush2.msra.mxu0 %v2403
        %2474 = vmatprep.subr.mxu0 0.0
        %2475 = vmatpush2.msra.mxu0 %v2402
        %2476 = vmatprep.subr.mxu0 0.0
        %2477 = vmatpush2.msra.mxu0 %v2401
        %2478 = vmatprep.subr.mxu0 0.0
        %2479 = vmatpush2.msra.mxu0 %v2400
        %2480 = vmatprep.subr.mxu0 0.0
        %2481 = vmatpush2.msra.mxu0 %v2399
        %2482 = vmatprep.subr.mxu0 0.0
        %2483 = vmatpush2.msra.mxu0 %v2398
        %2484 = vmatprep.subr.mxu0 0.0
        %2485 = vmatpush2.msra.mxu0 %v2397
        %2486 = vmatprep.subr.mxu0 0.0
        %2487 = vmatpush2.msra.mxu0 %v2396
        %2488 = vmatprep.subr.mxu0 0.0
        %2489 = vmatpush2.msra.mxu0 %v2395
        %2490 = vmatprep.mubr.f32.mxu0 %v2377
        %2491 = vmatmul.mubr.f32.gmra.mxu0 %v2371
        %v2492 = vpop.f32.mrf.mxu0
        %v2493 = vadd.f32 %v2420, %v2492
        %v2494 = vpop.f32.mrf.mxu0
        %2495 = vmatprep.mubr.f32.mxu0 %v2378
        %2496 = vmatmul.mubr.f32.gmra.mxu0 %v2372
        %v2497 = vpop.f32.mrf.mxu0
        %v2498 = vadd.f32 %v2420, %v2497
        %v2499 = vpop.f32.mrf.mxu0
        %2500 = vdwg.mxu0
        %2501 = vmatprep.subr.mxu0 0.0
        %2502 = vmatpush1.msra.mxu0 0.0
        %2503 = vmatprep.subr.mxu0 0.0
        %2504 = vmatpush1.msra.mxu0 0.0
        %2505 = vmatprep.subr.mxu0 0.0
        %2506 = vmatpush1.msra.mxu0 0.0
        %2507 = vmatprep.subr.mxu0 0.0
        %2508 = vmatpush1.msra.mxu0 0.0
        %2509 = vmatprep.subr.mxu0 0.0
        %2510 = vmatpush1.msra.mxu0 0.0
        %2511 = vmatprep.subr.mxu0 0.0
        %2512 = vmatpush1.msra.mxu0 0.0
        %2513 = vmatprep.subr.mxu0 0.0
        %2514 = vmatpush1.msra.mxu0 0.0
        %2515 = vmatprep.subr.mxu0 0.0
        %2516 = vmatpush1.msra.mxu0 0.0
        %2517 = vmatprep.subr.mxu0 0.0
        %2518 = vmatpush1.msra.mxu0 0.0
        %2519 = vmatprep.subr.mxu0 0.0
        %2520 = vmatpush1.msra.mxu0 0.0
        %2521 = vmatprep.subr.mxu0 0.0
        %2522 = vmatpush1.msra.mxu0 0.0
        %2523 = vmatprep.subr.mxu0 0.0
        %2524 = vmatpush1.msra.mxu0 0.0
        %2525 = vmatprep.subr.mxu0 0.0
        %2526 = vmatpush1.msra.mxu0 %v2414
        %2527 = vmatprep.subr.mxu0 0.0
        %2528 = vmatpush1.msra.mxu0 %v2413
        %2529 = vmatprep.subr.mxu0 0.0
        %2530 = vmatpush1.msra.mxu0 %v2412
        %2531 = vmatprep.subr.mxu0 0.0
        %2532 = vmatpush1.msra.mxu0 %v2411
        %2533 = vmatprep.subr.mxu0 0.0
        %2534 = vmatpush2.msra.mxu0 0.0
        %2535 = vmatprep.subr.mxu0 0.0
        %2536 = vmatpush2.msra.mxu0 0.0
        %2537 = vmatprep.subr.mxu0 0.0
        %2538 = vmatpush2.msra.mxu0 0.0
        %2539 = vmatprep.subr.mxu0 0.0
        %2540 = vmatpush2.msra.mxu0 0.0
        %2541 = vmatprep.subr.mxu0 0.0
        %2542 = vmatpush2.msra.mxu0 0.0
        %2543 = vmatprep.subr.mxu0 0.0
        %2544 = vmatpush2.msra.mxu0 0.0
        %2545 = vmatprep.subr.mxu0 0.0
        %2546 = vmatpush2.msra.mxu0 0.0
        %2547 = vmatprep.subr.mxu0 0.0
        %2548 = vmatpush2.msra.mxu0 0.0
        %2549 = vmatprep.subr.mxu0 0.0
        %2550 = vmatpush2.msra.mxu0 0.0
        %2551 = vmatprep.subr.mxu0 0.0
        %2552 = vmatpush2.msra.mxu0 0.0
        %2553 = vmatprep.subr.mxu0 0.0
        %2554 = vmatpush2.msra.mxu0 0.0
        %2555 = vmatprep.subr.mxu0 0.0
        %2556 = vmatpush2.msra.mxu0 0.0
        %2557 = vmatprep.subr.mxu0 0.0
        %2558 = vmatpush2.msra.mxu0 0.0
        %2559 = vmatprep.subr.mxu0 0.0
        %2560 = vmatpush2.msra.mxu0 0.0
        %2561 = vmatprep.subr.mxu0 0.0
        %2562 = vmatpush2.msra.mxu0 0.0
        %2563 = vmatprep.subr.mxu0 0.0
        %2564 = vmatpush2.msra.mxu0 0.0
        %2565 = vmatprep.mubr.f32.mxu0 0.0
        %2566 = vmatmul.mubr.f32.gmra.mxu0 %v2422
        %v2567 = vpop.f32.mrf.mxu0
        %v2568 = vadd.f32 %v2493, %v2567
        %v2569 = vpop.f32.mrf.mxu0
        %2570 = vmatprep.mubr.f32.mxu0 0.0
        %2571 = vmatmul.mubr.f32.gmra.mxu0 %v2424
        %v2572 = vpop.f32.mrf.mxu0
        %v2573 = vadd.f32 %v2498, %v2572
        %v2574 = vpop.f32.mrf.mxu0
        %2575 = vdwg.mxu0
        %v2576 = vmax.f32 %v2568, 0.0
        %v2577 = vmax.f32 %v2573, 0.0
        %v2578 = vld [vmem:[%s828] sm:$0xff]
        %v2579 = vld [vmem:[%s828 + $0x8] sm:$0xff]
        %v2580 = vld [vmem:[%s828 + $0x10] sm:$0xff]
        %v2581 = vld [vmem:[%s828 + $0x18] sm:$0xff]
        %v2582 = vld [vmem:[%s828 + $0x20] sm:$0xff]
        %v2583 = vld [vmem:[%s828 + $0x28] sm:$0xff]
        %v2584 = vld [vmem:[%s828 + $0x30] sm:$0xff]
        %v2585 = vld [vmem:[%s828 + $0x38] sm:$0xff]
        %v2586 = vld [vmem:[%s831] sm:$0x1]
        %v2588 = vlaneseq
        %v2589 = vshrl.u32 %v2588, 7
        %v2590 = vsub.s32 0, %v2589
        %v2591 = vrot.slane %v2586, %v2590
        %v2594 = vsel %vm2367, %v2576, 0
        %v2597 = vsel %vm2367, %v2577, 0
        %2599 = vmatprep.subr.mxu0 0.0
        %2600 = vmatpush1.msra.mxu0 0.0
        %2601 = vmatprep.subr.mxu0 0.0
        %2602 = vmatpush1.msra.mxu0 0.0
        %2603 = vmatprep.subr.mxu0 0.0
        %2604 = vmatpush1.msra.mxu0 0.0
        %2605 = vmatprep.subr.mxu0 0.0
        %2606 = vmatpush1.msra.mxu0 0.0
        %2607 = vmatprep.subr.mxu0 0.0
        %2608 = vmatpush1.msra.mxu0 0.0
        %2609 = vmatprep.subr.mxu0 0.0
        %2610 = vmatpush1.msra.mxu0 0.0
        %2611 = vmatprep.subr.mxu0 0.0
        %2612 = vmatpush1.msra.mxu0 0.0
        %2613 = vmatprep.subr.mxu0 0.0
        %2614 = vmatpush1.msra.mxu0 0.0
        %2615 = vmatprep.subr.mxu0 0.0
        %2616 = vmatpush1.msra.mxu0 %v2585
        %2617 = vmatprep.subr.mxu0 0.0
        %2618 = vmatpush1.msra.mxu0 %v2584
        %2619 = vmatprep.subr.mxu0 0.0
        %2620 = vmatpush1.msra.mxu0 %v2583
        %2621 = vmatprep.subr.mxu0 0.0
        %2622 = vmatpush1.msra.mxu0 %v2582
        %2623 = vmatprep.subr.mxu0 0.0
        %2624 = vmatpush1.msra.mxu0 %v2581
        %2625 = vmatprep.subr.mxu0 0.0
        %2626 = vmatpush1.msra.mxu0 %v2580
        %2627 = vmatprep.subr.mxu0 0.0
        %2628 = vmatpush1.msra.mxu0 %v2579
        %2629 = vmatprep.subr.mxu0 0.0
        %2630 = vmatpush1.msra.mxu0 %v2578
        %2631 = vmatprep.subr.mxu0 0.0
        %2632 = vmatpush2.msra.mxu0 0.0
        %2633 = vmatprep.subr.mxu0 0.0
        %2634 = vmatpush2.msra.mxu0 0.0
        %2635 = vmatprep.subr.mxu0 0.0
        %2636 = vmatpush2.msra.mxu0 0.0
        %2637 = vmatprep.subr.mxu0 0.0
        %2638 = vmatpush2.msra.mxu0 0.0
        %2639 = vmatprep.subr.mxu0 0.0
        %2640 = vmatpush2.msra.mxu0 0.0
        %2641 = vmatprep.subr.mxu0 0.0
        %2642 = vmatpush2.msra.mxu0 0.0
        %2643 = vmatprep.subr.mxu0 0.0
        %2644 = vmatpush2.msra.mxu0 0.0
        %2645 = vmatprep.subr.mxu0 0.0
        %2646 = vmatpush2.msra.mxu0 0.0
        %2647 = vmatprep.subr.mxu0 0.0
        %2648 = vmatpush2.msra.mxu0 0.0
        %2649 = vmatprep.subr.mxu0 0.0
        %2650 = vmatpush2.msra.mxu0 0.0
        %2651 = vmatprep.subr.mxu0 0.0
        %2652 = vmatpush2.msra.mxu0 0.0
        %2653 = vmatprep.subr.mxu0 0.0
        %2654 = vmatpush2.msra.mxu0 0.0
        %2655 = vmatprep.subr.mxu0 0.0
        %2656 = vmatpush2.msra.mxu0 0.0
        %2657 = vmatprep.subr.mxu0 0.0
        %2658 = vmatpush2.msra.mxu0 0.0
        %2659 = vmatprep.subr.mxu0 0.0
        %2660 = vmatpush2.msra.mxu0 0.0
        %2661 = vmatprep.subr.mxu0 0.0
        %2662 = vmatpush2.msra.mxu0 0.0
        %2663 = vmatprep.mubr.f32.mxu0 0.0
        %2664 = vmatmul.mubr.f32.gmra.mxu0 %v2594
        %v2665 = vpop.f32.mrf.mxu0
        %v2666 = vadd.f32 %v2591, %v2665
        %v2667 = vpop.f32.mrf.mxu0
        %2668 = vmatprep.mubr.f32.mxu0 0.0
        %2669 = vmatmul.mubr.f32.gmra.mxu0 %v2597
        %v2670 = vpop.f32.mrf.mxu0
        %v2671 = vadd.f32 %v2591, %v2670
        %v2672 = vpop.f32.mrf.mxu0
        %2673 = vdwg.mxu0
        %v2674 = vadd.f32 %v2666, %v2262
        %v2675 = vadd.f32 %v2671, %v2263
        %v2676 = vld [vmem:[%s834] sm:$0x1]
        %v2677 = vld [vmem:[%s837] sm:$0x1]
        %v2678 = vsel %vm906, %v2674, 0.0
        %2679 = vadd.xlane.f32.xlu0 %v2678
        %v2680 = vpop.xlane.xlu0 %2679
        %v2681 = vsel %vm906, %v2675, 0.0
        %2682 = vadd.xlane.f32.xlu0 %v2681
        %v2683 = vpop.xlane.xlu0 %2682
        %v2684 = vmul.f32 %v2680, %v2215
        %v2685 = vmul.f32 %v2683, %v2215
        %v2686 = vsub.f32 %v2674, %v2684
        %v2687 = vsub.f32 %v2675, %v2685
        %v2688 = vmul.f32 %v2686, %v2686
        %v2689 = vmul.f32 %v2687, %v2687
        %v2690 = vsel %vm906, %v2688, 0.0
        %2691 = vadd.xlane.f32.xlu0 %v2690
        %v2692 = vpop.xlane.xlu0 %2691
        %v2693 = vsel %vm906, %v2689, 0.0
        %2694 = vadd.xlane.f32.xlu0 %v2693
        %v2695 = vpop.xlane.xlu0 %2694
        %v2696 = vmul.f32 %v2692, %v2215
        %v2697 = vmul.f32 %v2695, %v2215
        %v2698 = vadd.f32 %v2696, 1e-05
        %v2699 = vadd.f32 %v2697, 1e-05
        %v2700 = vrsqrt.pop %v2698
        %v2701 = vrsqrt.pop %v2699
        %v2702 = vmul.f32 %v2686, %v2700
        %v2703 = vmul.f32 %v2687, %v2701
        %v2705 = vlaneseq
        %v2706 = vshrl.u32 %v2705, 7
        %v2707 = vsub.s32 0, %v2706
        %v2708 = vrot.slane %v2676, %v2707
        %v2710 = vmul.f32 %v2702, %v2708
        %v2711 = vmul.f32 %v2703, %v2708
        %v2713 = vlaneseq
        %v2714 = vshrl.u32 %v2713, 7
        %v2715 = vsub.s32 0, %v2714
        %v2716 = vrot.slane %v2677, %v2715
        %v2718 = vadd.f32 %v2710, %v2716
        %v2719 = vadd.f32 %v2711, %v2716
        %v2720 = vmul.f32 %v2718, %v2255
        %v2721 = vmul.f32 %v2719, %v2260
        %2722 = vst.msk [vmem:[#allocation2] sm:$0xff] %vm906, %v2720
        %2723 = vst.msk [vmem:[#allocation2 + $0x8] sm:$0xff] %vm906, %v2721
        // Predicated region
        $region101: #{tpu_custom_call.1} parent=95 // pred_check
          %p2724 = pneg %p523
        $region102: #{tpu_custom_call.1} parent=95 // pred_check_branch
          %2726 = sbr.rel (%p2724) target = $region104
        $region103: #{tpu_custom_call.1} parent=95 // pred_region
          %s2728 = ssub.s32 256, 256
          %2729 = vsyncadd [#allocation3], %s2728
          %s2730 = sshll.u32 [#allocation2], 4
          %s2731 = int_to_ptr.vmem [resolvable:$true] %s2730
          %2736 = dma.vmem_to_hbm [thread:$0]  %s2731, 256, %s19, [#allocation3], 128, 128, 8
        $region104: #{tpu_custom_call.1} parent=95 // pred_fallthru
          _
        // Predicated region
        $region105: #{tpu_custom_call.1} parent=95 // pred_check
          %p2737 = pneg %p523
        $region106: #{tpu_custom_call.1} parent=95 // pred_check_branch
          %2739 = sbr.rel (%p2737) target = $region108
        $region107: #{tpu_custom_call.1} parent=95 // pred_region
          %2740 = dma.done [#allocation3], 256
        $region108: #{tpu_custom_call.1} parent=95 // pred_fallthru
          _
      $region96: #{tpu_custom_call.1} parent=5 // pred_fallthru
        _
      %p2741 = scmp.le.s32.totalorder 2, %s26
      // Predicated region
      $region109: #{tpu_custom_call.1} parent=5 // pred_check
        %p2742 = pneg %p2741
      $region110: #{tpu_custom_call.1} parent=5 // pred_check_branch
        %2744 = sbr.rel (%p2742) target = $region112
      $region111: #{tpu_custom_call.1} parent=5 // pred_region
        %s2745 = ssub.s32 %s26, 2
      $region112: #{tpu_custom_call.1} parent=5 // pred_fallthru
        _
    $region6: #{tpu_custom_call.1} parent=1 // loop_footer
      %s30 = sadd.s32 1, %s26
    $region7: #{tpu_custom_call.1} parent=1 // loop_footer_branch
      %25 = sbr.rel target = $region3
    $region8: #{tpu_custom_call.1} parent=1 // loop_exit
      _
    %2746 = vsyncpa [#allocation3], 1
    %s2747 = scalar_lea.sflag [#allocation3], 1
    %2748 = vsyncpa %s2747, 1

</llo_original>
